<compile_context>
chip_gen: v5e
topology: v5e:2x2
jax: 0.10.0
libtpu: 0.0.40
codegen_flags: <defaults>
</compile_context>

<pallas_src>
import functools

import jax
import jax.numpy as jnp
from jax.experimental import pallas as pl
from jax.experimental.pallas import tpu as pltpu

LANE = 128     # channel dim is padded to a multiple of this by the wrapper
SUBLANE = 8    # W must be a multiple of this


def _rcu_block_kernel(x_main_ref, x_top_ref, x_bot_ref, w_ref, b_ref, o_ref,
                      pbuf, qbuf, acc_ref,
                      *, W, C, TH, S, has_bias, bias_row, compute_dtype):
    """Fused RCU block: S x (relu -> conv3x3 [+bias]) then += residual.

    x_main_ref : (1, TH, W, C)   rows [r*TH, r*TH+TH) of the block input
    x_top_ref  : (1, S,  W, C)   rows [r*TH-S, r*TH)        (ignored when r == 0)
    x_bot_ref  : (1, S,  W, C)   rows [r*TH+TH, r*TH+TH+S)  (ignored when r == last)
    w_ref      : (S*3, 3C, C)    row j*3+dy = stage-j taps (dy, dx=0..2) stacked along K
    b_ref      : (n_bias, C)     f32 biases of the stages that have one
    o_ref      : (1, TH, W, C)
    pbuf/qbuf  : (TH+2S, W+2, C) ping/pong padded activation buffers (compute_dtype)
    acc_ref    : ((TH+2(S-1))*W, C) f32 matmul accumulator
    """
    r = pl.program_id(1)
    nr = pl.num_programs(1)
    R = TH + 2 * S
    cdt = compute_dtype

    # Permanent zero pad columns (SAME padding along W); qbuf is only needed
    # when there is more than one stage.
    zcol = jnp.zeros((R, 1, C), cdt)
    pbuf[:, 0:1, :] = zcol
    pbuf[:, W + 1:W + 2, :] = zcol
    if S > 1:
        qbuf[:, 0:1, :] = zcol
        qbuf[:, W + 1:W + 2, :] = zcol

    # ---- stage-0 input: relu(x), zero padded.  buffer row k <-> image row r*TH-S+k
    pbuf[S:S + TH, 1:W + 1, :] = jnp.maximum(x_main_ref[0], 0.0).astype(cdt)

    @pl.when(r > 0)
    def _():
        pbuf[0:S, 1:W + 1, :] = jnp.maximum(x_top_ref[0], 0.0).astype(cdt)

    @pl.when(r == 0)
    def _():
        pbuf[0:S, 1:W + 1, :] = jnp.zeros((S, W, C), cdt)

    @pl.when(r < nr - 1)
    def _():
        pbuf[S + TH:R, 1:W + 1, :] = jnp.maximum(x_bot_ref[0], 0.0).astype(cdt)

    @pl.when(r == nr - 1)
    def _():
        pbuf[S + TH:R, 1:W + 1, :] = jnp.zeros((S, W, C), cdt)

    # ---- fused stages (python loop -> fully unrolled at trace time) ----
    bufs = (pbuf, qbuf)
    for j in range(S):
        in_buf = bufs[j % 2]
        out_buf = bufs[(j + 1) % 2]
        rows_out = TH + 2 * (S - 1 - j)          # valid output rows of this stage
        M = rows_out * W

        # 3x3 conv as 3 MXU matmuls with K = 3C (dx taps concatenated along K).
        # Bias (only for stages that have one) is folded into the dy==0 store,
        # so the accumulator is written once and RMW'd only twice per stage.
        for dy in range(3):
            slab = in_buf[j + dy:j + dy + rows_out, :, :]           # (rows_out, W+2, C)
            patch = jnp.concatenate(
                [slab[:, 0:W, :], slab[:, 1:W + 1, :], slab[:, 2:W + 2, :]],
                axis=-1).reshape(M, 3 * C)                          # (M, 3C)
            part = jnp.dot(patch, w_ref[j * 3 + dy],
                           preferred_element_type=jnp.float32)      # (M, C) f32
            if dy == 0:
                if has_bias[j]:
                    acc_ref[0:M, :] = part + b_ref[bias_row[j]:bias_row[j] + 1, :]
                else:
                    acc_ref[0:M, :] = part
            else:
                acc_ref[0:M, :] += part

        if j < S - 1:
            # ReLU feeds the next stage.
            out_buf[j + 1:j + 1 + rows_out, 1:W + 1, :] = (
                jnp.maximum(acc_ref[0:M, :], 0.0)
                .reshape(rows_out, W, C).astype(cdt))
            # Rows outside the image act as the next stage's zero padding.  Only
            # the first / last row-tiles have any, so only they pay the fixup
            # (interior tiles take a mask-free path).
            nz = S - 1 - j
            zrows = jnp.zeros((nz, W, C), cdt)

            @pl.when(r == 0)
            def _():
                out_buf[j + 1:j + 1 + nz, 1:W + 1, :] = zrows

            @pl.when(r == nr - 1)
            def _():
                out_buf[S + TH:S + TH + nz, 1:W + 1, :] = zrows
        else:
            # Last stage: no relu; add the residual (raw input tile, already in
            # VMEM) and write out.  rows_out == TH here.
            out3 = acc_ref[0:M, :].reshape(rows_out, W, C)
            o_ref[0] = (out3 + x_main_ref[0].astype(jnp.float32)).astype(o_ref.dtype)


def _vmem_capacity_bytes():
    try:
        cap = int(getattr(pltpu.get_tpu_info(), "vmem_capacity_bytes", 0))
        if cap > 0:
            return cap
    except Exception:
        pass
    return 64 * 1024 * 1024   # conservative default (v7x per-TensorCore)


def _estimate_vmem_bytes(TH, W, C, S, cdt_bytes, io_bytes, n_bias):
    R = TH + 2 * S
    scratch = 2 * R * (W + 2) * C * cdt_bytes + (TH + 2 * (S - 1)) * W * C * 4
    io = 2 * (2 * TH * W * C + 2 * S * W * C) * io_bytes   # dbl-buffered in/out + halos
    wts = 2 * (S * 9 * C * C * cdt_bytes + n_bias * C * 4)
    return scratch + io + wts


def _pick_tile_h(H, S, N, W, C, cdt_bytes, io_bytes, n_bias, budget):
    """Largest TH dividing H, multiple of S, whose VMEM footprint fits `budget`;
    prefer choices that leave >= 4 grid steps for 2-TensorCore load balance."""
    cands = [th for th in range(S, H + 1) if H % th == 0 and th % S == 0]
    cands = [th for th in cands
             if _estimate_vmem_bytes(th, W, C, S, cdt_bytes, io_bytes, n_bias) <= budget]
    if not cands:
        return S if H % S == 0 else H
    for th in sorted(cands, reverse=True):
        if N * (H // th) >= 4:
            return th
    return max(cands)


def rcu_block(x, weights, biases, *, tile_h=None, compute_dtype=jnp.bfloat16):
    """One fused RCU block (all stages + residual add) as a single pallas_call."""
    N, H, W, C = x.shape
    S = len(weights)
    for w in weights:
        assert w.shape == (3, 3, C, C), "RCU residual add needs in_planes == out_planes"
    assert W % SUBLANE == 0, "W must be a multiple of 8 (pad in the caller)"
    # TODO(synk): general W / H padding (needs inter-stage zeroing of the padded
    # columns); currently the wrapper requires W % 8 == 0 and H % tile_h == 0.

    has_bias = tuple(b is not None for b in biases)
    bias_list = [b for b in biases if b is not None]
    bias_row, k = [], 0
    for hb in has_bias:
        bias_row.append(k if hb else -1)
        k += int(hb)
    if bias_list:
        b_all = jnp.stack([b.reshape(C) for b in bias_list]).astype(jnp.float32)
    else:
        b_all = jnp.zeros((1, C), jnp.float32)
    # (S*3, 3C, C): row j*3+dy holds stage-j's (dy, dx=0..2) taps stacked along K,
    # pre-cast to compute dtype (halves weight HBM/VMEM, no in-kernel casts).
    w_all = jnp.stack([w.reshape(3, 3 * C, C) for w in weights]) \
              .reshape(S * 3, 3 * C, C).astype(compute_dtype)

    cdt_bytes = jnp.dtype(compute_dtype).itemsize
    io_bytes = jnp.dtype(x.dtype).itemsize
    cap = _vmem_capacity_bytes()

    if tile_h is None:
        tile_h = _pick_tile_h(H, S, N, W, C, cdt_bytes, io_bytes, b_all.shape[0],
                              budget=int(cap * 0.55))
    TH = tile_h
    assert H % TH == 0 and TH % S == 0 and TH >= S and H % S == 0, (H, TH, S)
    nr = H // TH
    hs = TH // S
    R = TH + 2 * S

    est = _estimate_vmem_bytes(TH, W, C, S, cdt_bytes, io_bytes, b_all.shape[0])
    vmem_limit = int(min(max(32 << 20, est * 3 // 2), max(cap - (4 << 20), 32 << 20)))

    kernel = functools.partial(
        _rcu_block_kernel, W=W, C=C, TH=TH, S=S,
        has_bias=has_bias, bias_row=tuple(bias_row), compute_dtype=compute_dtype)

    in_specs = [
        # main tile (also serves as the residual)
        pl.BlockSpec((1, TH, W, C), lambda n, r: (n, r, 0, 0)),
        # top halo: S rows just above the tile (clamped at the image top)
        pl.BlockSpec((1, S, W, C),
                     lambda n, r: (n, jnp.maximum(r * hs - 1, 0), 0, 0)),
        # bottom halo: S rows just below the tile (clamped at the image bottom)
        pl.BlockSpec((1, S, W, C),
                     lambda n, r: (n, jnp.minimum((r + 1) * hs, H // S - 1), 0, 0)),
        pl.BlockSpec((S * 3, 3 * C, C), lambda n, r: (0, 0, 0)),
        pl.BlockSpec((b_all.shape[0], C), lambda n, r: (0, 0)),
    ]
    out_spec = pl.BlockSpec((1, TH, W, C), lambda n, r: (n, r, 0, 0))
    scratch = [
        pltpu.VMEM((R, W + 2, C), compute_dtype),                 # ping
        pltpu.VMEM((R, W + 2, C), compute_dtype),                 # pong
        pltpu.VMEM(((TH + 2 * (S - 1)) * W, C), jnp.float32),     # f32 accumulator
    ]

    return pl.pallas_call(
        kernel,
        out_shape=jax.ShapeDtypeStruct((N, H, W, C), x.dtype),
        grid=(N, nr),
        in_specs=in_specs,
        out_specs=out_spec,
        scratch_shapes=scratch,
        compiler_params=pltpu.CompilerParams(
            dimension_semantics=("parallel", "parallel"),
            vmem_limit_bytes=vmem_limit),
    )(x, x, x, w_all, b_all)


def init_rcu_params(key, in_planes, out_planes, n_blocks, n_stages):
    """Deterministic parameter init matching the PyTorch module's shapes (HWIO)."""
    assert in_planes == out_planes, "RCUBlock residual add requires equal planes"
    params = {}
    for i in range(n_blocks):
        for j in range(n_stages):
            key, wk, bk = jax.random.split(key, 3)
            cin = in_planes if (i == 0 and j == 0) else out_planes
            w = jax.random.normal(wk, (3, 3, cin, out_planes), jnp.float32) * 0.1
            b = (jax.random.normal(bk, (out_planes,), jnp.float32) * 0.1
                 if j == 0 else None)   # PyTorch: bias only for stage j == 0
            params[(i, j)] = (w, b)
    return params


def _pad_axis(a, axis, target):
    pad = target - a.shape[axis]
    if pad == 0:
        return a
    widths = [(0, 0)] * a.ndim
    widths[axis] = (0, pad)
    return jnp.pad(a, widths)


def rcu_forward(x, params, n_blocks, n_stages, *, tile_h=None,
                compute_dtype=jnp.bfloat16, hbm_dtype=None, pad_channels=True):
    """Pallas-backed RCUBlock.forward (NHWC): one fused kernel per block.

    pad_channels: zero-pad C to a multiple of 128 (exact: padded weights/bias are
      zero) so vregs/MXU lanes are full; sliced back off at the end.
    hbm_dtype: optional dtype for inter-block activations in HBM (e.g. bf16) —
      halves HBM traffic per block; f32 accumulation is kept inside the kernel.
    """
    orig_dtype = x.dtype
    C_orig = x.shape[-1]
    C = ((C_orig + LANE - 1) // LANE) * LANE if pad_channels else C_orig
    if C != C_orig:
        x = _pad_axis(x, -1, C)
    if hbm_dtype is not None:
        x = x.astype(hbm_dtype)

    for i in range(n_blocks):
        weights, biases = [], []
        for j in range(n_stages):
            w, b = params[(i, j)]
            if C != C_orig:
                w = _pad_axis(_pad_axis(w, 2, C), 3, C)
                if b is not None:
                    b = _pad_axis(b, 0, C)
            weights.append(w)
            biases.append(b)
        x = rcu_block(x, weights, biases, tile_h=tile_h,
                      compute_dtype=compute_dtype)

    x = x.astype(orig_dtype)
    if C != C_orig:
        x = x[..., :C_orig]
    return x


def rcu_forward_ref(x, params, n_blocks, n_stages):
    """Pure-JAX reference (lax.conv) for correctness checking."""
    for i in range(n_blocks):
        residual = x
        for j in range(n_stages):
            w, b = params[(i, j)]
            x = jnp.maximum(x, 0.0)
            x = jax.lax.conv_general_dilated(
                x, w, window_strides=(1, 1), padding="SAME",
                dimension_numbers=("NHWC", "HWIO", "NHWC"))
            if b is not None:
                x = x + b.reshape(1, 1, 1, -1)
        x = x + residual
    return x


if __name__ == "__main__":
    # Small shapes: batch=2, planes=4, spatial=16x16, 2 blocks x 2 stages (NHWC).
    N, C, Hdim, Wdim = 2, 4, 16, 16
    n_blocks, n_stages = 2, 2

    key = jax.random.PRNGKey(0)
    key, xkey = jax.random.split(key)
    x = jax.random.normal(xkey, (N, Hdim, Wdim, C), jnp.float32)
    params = init_rcu_params(key, C, C, n_blocks, n_stages)

    ref = jax.block_until_ready(rcu_forward_ref(x, params, n_blocks, n_stages))

    # f32 compute, TH=8: exercises both boundary row-tiles; tight check.
    out_f32 = jax.block_until_ready(
        rcu_forward(x, params, n_blocks, n_stages, tile_h=8,
                    compute_dtype=jnp.float32))
    assert out_f32.shape == ref.shape
    assert jnp.allclose(out_f32, ref, atol=1e-4, rtol=1e-4)

    # f32 compute, TH=4: exercises interior (mask-free) row-tiles as well.
    out_f32b = jax.block_until_ready(
        rcu_forward(x, params, n_blocks, n_stages, tile_h=4,
                    compute_dtype=jnp.float32))
    assert jnp.allclose(out_f32b, ref, atol=1e-4, rtol=1e-4)

    # Auto tile-size selection (derived from the device VMEM budget).
    out_auto = jax.block_until_ready(
        rcu_forward(x, params, n_blocks, n_stages, compute_dtype=jnp.float32))
    assert jnp.allclose(out_auto, ref, atol=1e-4, rtol=1e-4)

    # bf16 MXU path + bf16 inter-block activations in HBM; f32 accumulation.
    out_bf16 = jax.block_until_ready(
        rcu_forward(x, params, n_blocks, n_stages, tile_h=8,
                    compute_dtype=jnp.bfloat16, hbm_dtype=jnp.bfloat16))
    assert out_bf16.dtype == x.dtype
    assert jnp.allclose(out_bf16, ref, atol=1e-1, rtol=1e-1)

    print("KERNEL_OK")
</pallas_src>

<mosaic_0001>
module attributes {stable_mosaic.version = 11 : i64} {
  func.func @_rcu_block_kernel(%arg0: i32, %arg1: i32, %arg2: memref<1x8x16x128xf32, #tpu.memory_space<vmem>>, %arg3: memref<1x2x16x128xf32, #tpu.memory_space<vmem>>, %arg4: memref<1x2x16x128xf32, #tpu.memory_space<vmem>>, %arg5: memref<6x384x128xf32, #tpu.memory_space<vmem>>, %arg6: memref<1x128xf32, #tpu.memory_space<vmem>>, %arg7: memref<1x8x16x128xf32, #tpu.memory_space<vmem>>, %arg8: memref<12x18x128xf32, #tpu.memory_space<vmem>>, %arg9: memref<12x18x128xf32, #tpu.memory_space<vmem>>, %arg10: memref<160x128xf32, #tpu.memory_space<vmem>>) attributes {dimension_semantics = [#tpu.dimension_semantics<parallel>, #tpu.dimension_semantics<parallel>], iteration_bounds = array<i64: 2, 2>, scalar_prefetch = 0 : i64, scratch_operands = 3 : i64, tpu.core_type = #tpu.core_type<tc>, window_params = [{transform_indices = @transform_0, window_bounds = array<i64: 1, 8, 16, 128>}, {transform_indices = @transform_1, window_bounds = array<i64: 1, 2, 16, 128>}, {transform_indices = @transform_2, window_bounds = array<i64: 1, 2, 16, 128>}, {pipeline_mode = #tpu.pipeline_mode<synchronous>, transform_indices = @transform_3, window_bounds = array<i64: 6, 384, 128>}, {pipeline_mode = #tpu.pipeline_mode<synchronous>, transform_indices = @transform_4, window_bounds = array<i64: 1, 128>}, {transform_indices = @transform_5, window_bounds = array<i64: 1, 8, 16, 128>}]} {
    %cst = arith.constant 0.000000e+00 : f32
    %0 = vector.broadcast %cst : f32 to vector<12x1x128xf32>
    %c0 = arith.constant 0 : index
    %c0_0 = arith.constant 0 : index
    %c0_1 = arith.constant 0 : index
    %1 = vector.load %arg8[%c0, %c0_0, %c0_1] : memref<12x18x128xf32, #tpu.memory_space<vmem>>, vector<12x1x128xf32>
    tpu.vector_store %arg8[%c0, %c0_0, %c0_1], %0 {strides = array<i32>} : memref<12x18x128xf32, #tpu.memory_space<vmem>>, vector<12x1x128xf32>,
    %c0_2 = arith.constant 0 : index
    %c17 = arith.constant 17 : index
    %c0_3 = arith.constant 0 : index
    %2 = vector.load %arg8[%c0_2, %c17, %c0_3] : memref<12x18x128xf32, #tpu.memory_space<vmem>>, vector<12x1x128xf32>
    tpu.vector_store %arg8[%c0_2, %c17, %c0_3], %0 {strides = array<i32>} : memref<12x18x128xf32, #tpu.memory_space<vmem>>, vector<12x1x128xf32>,
    %c0_4 = arith.constant 0 : index
    %c0_5 = arith.constant 0 : index
    %c0_6 = arith.constant 0 : index
    %3 = vector.load %arg9[%c0_4, %c0_5, %c0_6] : memref<12x18x128xf32, #tpu.memory_space<vmem>>, vector<12x1x128xf32>
    tpu.vector_store %arg9[%c0_4, %c0_5, %c0_6], %0 {strides = array<i32>} : memref<12x18x128xf32, #tpu.memory_space<vmem>>, vector<12x1x128xf32>,
    %c0_7 = arith.constant 0 : index
    %c17_8 = arith.constant 17 : index
    %c0_9 = arith.constant 0 : index
    %4 = vector.load %arg9[%c0_7, %c17_8, %c0_9] : memref<12x18x128xf32, #tpu.memory_space<vmem>>, vector<12x1x128xf32>
    tpu.vector_store %arg9[%c0_7, %c17_8, %c0_9], %0 {strides = array<i32>} : memref<12x18x128xf32, #tpu.memory_space<vmem>>, vector<12x1x128xf32>,
    %c0_10 = arith.constant 0 : index
    %c0_11 = arith.constant 0 : index
    %c0_12 = arith.constant 0 : index
    %c0_13 = arith.constant 0 : index
    %5 = vector.load %arg2[%c0_10, %c0_11, %c0_12, %c0_13] : memref<1x8x16x128xf32, #tpu.memory_space<vmem>>, vector<1x8x16x128xf32>
    %6 = vector.shape_cast %5 : vector<1x8x16x128xf32> to vector<8x16x128xf32>
    %cst_14 = arith.constant 0.000000e+00 : f32
    %7 = vector.broadcast %cst_14 : f32 to vector<8x16x128xf32>
    %8 = arith.maximumf %6, %7 : vector<8x16x128xf32>
    %c2 = arith.constant 2 : index
    %c1 = arith.constant 1 : index
    %c0_15 = arith.constant 0 : index
    %9 = vector.load %arg8[%c2, %c1, %c0_15] : memref<12x18x128xf32, #tpu.memory_space<vmem>>, vector<8x16x128xf32>
    tpu.vector_store %arg8[%c2, %c1, %c0_15], %8 {strides = array<i32>} : memref<12x18x128xf32, #tpu.memory_space<vmem>>, vector<8x16x128xf32>,
    %c0_i32 = arith.constant 0 : i32
    %10 = arith.cmpi sgt, %arg1, %c0_i32 : i32
    %11 = arith.extui %10 : i1 to i32
    %c0_i32_16 = arith.constant 0 : i32
    %12 = arith.cmpi ne, %11, %c0_i32_16 : i32
    scf.if %12 {
      %c0_104 = arith.constant 0 : index
      %c0_105 = arith.constant 0 : index
      %c0_106 = arith.constant 0 : index
      %c0_107 = arith.constant 0 : index
      %113 = vector.load %arg3[%c0_104, %c0_105, %c0_106, %c0_107] : memref<1x2x16x128xf32, #tpu.memory_space<vmem>>, vector<1x2x16x128xf32>
      %114 = vector.shape_cast %113 : vector<1x2x16x128xf32> to vector<2x16x128xf32>
      %cst_108 = arith.constant 0.000000e+00 : f32
      %115 = vector.broadcast %cst_108 : f32 to vector<2x16x128xf32>
      %116 = arith.maximumf %114, %115 : vector<2x16x128xf32>
      %c0_109 = arith.constant 0 : index
      %c1_110 = arith.constant 1 : index
      %c0_111 = arith.constant 0 : index
      %117 = vector.load %arg8[%c0_109, %c1_110, %c0_111] : memref<12x18x128xf32, #tpu.memory_space<vmem>>, vector<2x16x128xf32>
      tpu.vector_store %arg8[%c0_109, %c1_110, %c0_111], %116 {strides = array<i32>} : memref<12x18x128xf32, #tpu.memory_space<vmem>>, vector<2x16x128xf32>,
    } else {
    }
    %c0_i32_17 = arith.constant 0 : i32
    %13 = arith.cmpi eq, %arg1, %c0_i32_17 : i32
    %14 = arith.extui %13 : i1 to i32
    %c0_i32_18 = arith.constant 0 : i32
    %15 = arith.cmpi ne, %14, %c0_i32_18 : i32
    scf.if %15 {
      %cst_104 = arith.constant 0.000000e+00 : f32
      %113 = vector.broadcast %cst_104 : f32 to vector<2x16x128xf32>
      %c0_105 = arith.constant 0 : index
      %c1_106 = arith.constant 1 : index
      %c0_107 = arith.constant 0 : index
      %114 = vector.load %arg8[%c0_105, %c1_106, %c0_107] : memref<12x18x128xf32, #tpu.memory_space<vmem>>, vector<2x16x128xf32>
      tpu.vector_store %arg8[%c0_105, %c1_106, %c0_107], %113 {strides = array<i32>} : memref<12x18x128xf32, #tpu.memory_space<vmem>>, vector<2x16x128xf32>,
    } else {
    }
    %c1_i32 = arith.constant 1 : i32
    %16 = arith.cmpi slt, %arg1, %c1_i32 : i32
    %17 = arith.extui %16 : i1 to i32
    %c0_i32_19 = arith.constant 0 : i32
    %18 = arith.cmpi ne, %17, %c0_i32_19 : i32
    scf.if %18 {
      %c0_104 = arith.constant 0 : index
      %c0_105 = arith.constant 0 : index
      %c0_106 = arith.constant 0 : index
      %c0_107 = arith.constant 0 : index
      %113 = vector.load %arg4[%c0_104, %c0_105, %c0_106, %c0_107] : memref<1x2x16x128xf32, #tpu.memory_space<vmem>>, vector<1x2x16x128xf32>
      %114 = vector.shape_cast %113 : vector<1x2x16x128xf32> to vector<2x16x128xf32>
      %cst_108 = arith.constant 0.000000e+00 : f32
      %115 = vector.broadcast %cst_108 : f32 to vector<2x16x128xf32>
      %116 = arith.maximumf %114, %115 : vector<2x16x128xf32>
      %c10 = arith.constant 10 : index
      %c1_109 = arith.constant 1 : index
      %c0_110 = arith.constant 0 : index
      %117 = vector.load %arg8[%c10, %c1_109, %c0_110] : memref<12x18x128xf32, #tpu.memory_space<vmem>>, vector<2x16x128xf32>
      tpu.vector_store %arg8[%c10, %c1_109, %c0_110], %116 {strides = array<i32>} : memref<12x18x128xf32, #tpu.memory_space<vmem>>, vector<2x16x128xf32>,
    } else {
    }
    %c1_i32_20 = arith.constant 1 : i32
    %19 = arith.cmpi eq, %arg1, %c1_i32_20 : i32
    %20 = arith.extui %19 : i1 to i32
    %c0_i32_21 = arith.constant 0 : i32
    %21 = arith.cmpi ne, %20, %c0_i32_21 : i32
    scf.if %21 {
      %cst_104 = arith.constant 0.000000e+00 : f32
      %113 = vector.broadcast %cst_104 : f32 to vector<2x16x128xf32>
      %c10 = arith.constant 10 : index
      %c1_105 = arith.constant 1 : index
      %c0_106 = arith.constant 0 : index
      %114 = vector.load %arg8[%c10, %c1_105, %c0_106] : memref<12x18x128xf32, #tpu.memory_space<vmem>>, vector<2x16x128xf32>
      tpu.vector_store %arg8[%c10, %c1_105, %c0_106], %113 {strides = array<i32>} : memref<12x18x128xf32, #tpu.memory_space<vmem>>, vector<2x16x128xf32>,
    } else {
    }
    %c0_22 = arith.constant 0 : index
    %c0_23 = arith.constant 0 : index
    %c0_24 = arith.constant 0 : index
    %22 = vector.load %arg8[%c0_22, %c0_23, %c0_24] : memref<12x18x128xf32, #tpu.memory_space<vmem>>, vector<10x18x128xf32>
    %23 = vector.extract_strided_slice %22 {offsets = [0, 0, 0], sizes = [10, 16, 128], strides = [1, 1, 1]} : vector<10x18x128xf32> to vector<10x16x128xf32>
    %24 = vector.extract_strided_slice %22 {offsets = [0, 1, 0], sizes = [10, 16, 128], strides = [1, 1, 1]} : vector<10x18x128xf32> to vector<10x16x128xf32>
    %25 = vector.extract_strided_slice %22 {offsets = [0, 2, 0], sizes = [10, 16, 128], strides = [1, 1, 1]} : vector<10x18x128xf32> to vector<10x16x128xf32>
    %26 = tpu.concatenate %23, %24, %25 in 2 : vector<10x16x128xf32>, vector<10x16x128xf32>, vector<10x16x128xf32> -> vector<10x16x384xf32>
    %27 = vector.shape_cast %26 : vector<10x16x384xf32> to vector<160x384xf32>
    %c0_25 = arith.constant 0 : index
    %c0_26 = arith.constant 0 : index
    %c0_27 = arith.constant 0 : index
    %28 = vector.load %arg5[%c0_25, %c0_26, %c0_27] : memref<6x384x128xf32, #tpu.memory_space<vmem>>, vector<1x384x128xf32>
    %29 = vector.shape_cast %28 : vector<1x384x128xf32> to vector<384x128xf32>
    %cst_28 = arith.constant dense<0.000000e+00> : vector<160x128xf32>
    %30 = tpu.matmul %27, %29, %cst_28 {dimension_numbers = #tpu.dot_dimension_numbers<[1], [0], [0], [1], [0, 0, 1, 1], [], []>} : vector<160x384xf32>, vector<384x128xf32>, vector<160x128xf32> -> vector<160x128xf32>
    %c0_29 = arith.constant 0 : index
    %c0_30 = arith.constant 0 : index
    %31 = vector.load %arg6[%c0_29, %c0_30] : memref<1x128xf32, #tpu.memory_space<vmem>>, vector<1x128xf32>
    %32 = vector.broadcast %31 : vector<1x128xf32> to vector<160x128xf32>
    %33 = arith.addf %30, %32 : vector<160x128xf32>
    %c0_31 = arith.constant 0 : index
    %c0_32 = arith.constant 0 : index
    %34 = vector.load %arg10[%c0_31, %c0_32] : memref<160x128xf32, #tpu.memory_space<vmem>>, vector<160x128xf32>
    tpu.vector_store %arg10[%c0_31, %c0_32], %33 {strides = array<i32>} : memref<160x128xf32, #tpu.memory_space<vmem>>, vector<160x128xf32>,
    %c1_33 = arith.constant 1 : index
    %c0_34 = arith.constant 0 : index
    %c0_35 = arith.constant 0 : index
    %35 = vector.load %arg8[%c1_33, %c0_34, %c0_35] : memref<12x18x128xf32, #tpu.memory_space<vmem>>, vector<10x18x128xf32>
    %36 = vector.extract_strided_slice %35 {offsets = [0, 0, 0], sizes = [10, 16, 128], strides = [1, 1, 1]} : vector<10x18x128xf32> to vector<10x16x128xf32>
    %37 = vector.extract_strided_slice %35 {offsets = [0, 1, 0], sizes = [10, 16, 128], strides = [1, 1, 1]} : vector<10x18x128xf32> to vector<10x16x128xf32>
    %38 = vector.extract_strided_slice %35 {offsets = [0, 2, 0], sizes = [10, 16, 128], strides = [1, 1, 1]} : vector<10x18x128xf32> to vector<10x16x128xf32>
    %39 = tpu.concatenate %36, %37, %38 in 2 : vector<10x16x128xf32>, vector<10x16x128xf32>, vector<10x16x128xf32> -> vector<10x16x384xf32>
    %40 = vector.shape_cast %39 : vector<10x16x384xf32> to vector<160x384xf32>
    %c1_36 = arith.constant 1 : index
    %c0_37 = arith.constant 0 : index
    %c0_38 = arith.constant 0 : index
    %41 = vector.load %arg5[%c1_36, %c0_37, %c0_38] : memref<6x384x128xf32, #tpu.memory_space<vmem>>, vector<1x384x128xf32>
    %42 = vector.shape_cast %41 : vector<1x384x128xf32> to vector<384x128xf32>
    %cst_39 = arith.constant dense<0.000000e+00> : vector<160x128xf32>
    %43 = tpu.matmul %40, %42, %cst_39 {dimension_numbers = #tpu.dot_dimension_numbers<[1], [0], [0], [1], [0, 0, 1, 1], [], []>} : vector<160x384xf32>, vector<384x128xf32>, vector<160x128xf32> -> vector<160x128xf32>
    %c0_40 = arith.constant 0 : index
    %c0_41 = arith.constant 0 : index
    %44 = vector.load %arg10[%c0_40, %c0_41] : memref<160x128xf32, #tpu.memory_space<vmem>>, vector<160x128xf32>
    %45 = arith.addf %44, %43 : vector<160x128xf32>
    %c0_42 = arith.constant 0 : index
    %c0_43 = arith.constant 0 : index
    %46 = vector.load %arg10[%c0_42, %c0_43] : memref<160x128xf32, #tpu.memory_space<vmem>>, vector<160x128xf32>
    tpu.vector_store %arg10[%c0_42, %c0_43], %45 {strides = array<i32>} : memref<160x128xf32, #tpu.memory_space<vmem>>, vector<160x128xf32>,
    %c2_44 = arith.constant 2 : index
    %c0_45 = arith.constant 0 : index
    %c0_46 = arith.constant 0 : index
    %47 = vector.load %arg8[%c2_44, %c0_45, %c0_46] : memref<12x18x128xf32, #tpu.memory_space<vmem>>, vector<10x18x128xf32>
    %48 = vector.extract_strided_slice %47 {offsets = [0, 0, 0], sizes = [10, 16, 128], strides = [1, 1, 1]} : vector<10x18x128xf32> to vector<10x16x128xf32>
    %49 = vector.extract_strided_slice %47 {offsets = [0, 1, 0], sizes = [10, 16, 128], strides = [1, 1, 1]} : vector<10x18x128xf32> to vector<10x16x128xf32>
    %50 = vector.extract_strided_slice %47 {offsets = [0, 2, 0], sizes = [10, 16, 128], strides = [1, 1, 1]} : vector<10x18x128xf32> to vector<10x16x128xf32>
    %51 = tpu.concatenate %48, %49, %50 in 2 : vector<10x16x128xf32>, vector<10x16x128xf32>, vector<10x16x128xf32> -> vector<10x16x384xf32>
    %52 = vector.shape_cast %51 : vector<10x16x384xf32> to vector<160x384xf32>
    %c2_47 = arith.constant 2 : index
    %c0_48 = arith.constant 0 : index
    %c0_49 = arith.constant 0 : index
    %53 = vector.load %arg5[%c2_47, %c0_48, %c0_49] : memref<6x384x128xf32, #tpu.memory_space<vmem>>, vector<1x384x128xf32>
    %54 = vector.shape_cast %53 : vector<1x384x128xf32> to vector<384x128xf32>
    %cst_50 = arith.constant dense<0.000000e+00> : vector<160x128xf32>
    %55 = tpu.matmul %52, %54, %cst_50 {dimension_numbers = #tpu.dot_dimension_numbers<[1], [0], [0], [1], [0, 0, 1, 1], [], []>} : vector<160x384xf32>, vector<384x128xf32>, vector<160x128xf32> -> vector<160x128xf32>
    %c0_51 = arith.constant 0 : index
    %c0_52 = arith.constant 0 : index
    %56 = vector.load %arg10[%c0_51, %c0_52] : memref<160x128xf32, #tpu.memory_space<vmem>>, vector<160x128xf32>
    %57 = arith.addf %56, %55 : vector<160x128xf32>
    %c0_53 = arith.constant 0 : index
    %c0_54 = arith.constant 0 : index
    %58 = vector.load %arg10[%c0_53, %c0_54] : memref<160x128xf32, #tpu.memory_space<vmem>>, vector<160x128xf32>
    tpu.vector_store %arg10[%c0_53, %c0_54], %57 {strides = array<i32>} : memref<160x128xf32, #tpu.memory_space<vmem>>, vector<160x128xf32>,
    %c0_55 = arith.constant 0 : index
    %c0_56 = arith.constant 0 : index
    %59 = vector.load %arg10[%c0_55, %c0_56] : memref<160x128xf32, #tpu.memory_space<vmem>>, vector<160x128xf32>
    %cst_57 = arith.constant 0.000000e+00 : f32
    %60 = vector.broadcast %cst_57 : f32 to vector<160x128xf32>
    %61 = arith.maximumf %59, %60 : vector<160x128xf32>
    %62 = vector.shape_cast %61 : vector<160x128xf32> to vector<10x16x128xf32>
    %c1_58 = arith.constant 1 : index
    %c1_59 = arith.constant 1 : index
    %c0_60 = arith.constant 0 : index
    %63 = vector.load %arg9[%c1_58, %c1_59, %c0_60] : memref<12x18x128xf32, #tpu.memory_space<vmem>>, vector<10x16x128xf32>
    tpu.vector_store %arg9[%c1_58, %c1_59, %c0_60], %62 {strides = array<i32>} : memref<12x18x128xf32, #tpu.memory_space<vmem>>, vector<10x16x128xf32>,
    %cst_61 = arith.constant 0.000000e+00 : f32
    %64 = vector.broadcast %cst_61 : f32 to vector<1x16x128xf32>
    %c0_i32_62 = arith.constant 0 : i32
    %65 = arith.cmpi eq, %arg1, %c0_i32_62 : i32
    %66 = arith.extui %65 : i1 to i32
    %c0_i32_63 = arith.constant 0 : i32
    %67 = arith.cmpi ne, %66, %c0_i32_63 : i32
    scf.if %67 {
      %c1_104 = arith.constant 1 : index
      %c1_105 = arith.constant 1 : index
      %c0_106 = arith.constant 0 : index
      %113 = vector.load %arg9[%c1_104, %c1_105, %c0_106] : memref<12x18x128xf32, #tpu.memory_space<vmem>>, vector<1x16x128xf32>
      tpu.vector_store %arg9[%c1_104, %c1_105, %c0_106], %64 {strides = array<i32>} : memref<12x18x128xf32, #tpu.memory_space<vmem>>, vector<1x16x128xf32>,
    } else {
    }
    %c1_i32_64 = arith.constant 1 : i32
    %68 = arith.cmpi eq, %arg1, %c1_i32_64 : i32
    %69 = arith.extui %68 : i1 to i32
    %c0_i32_65 = arith.constant 0 : i32
    %70 = arith.cmpi ne, %69, %c0_i32_65 : i32
    scf.if %70 {
      %c10 = arith.constant 10 : index
      %c1_104 = arith.constant 1 : index
      %c0_105 = arith.constant 0 : index
      %113 = vector.load %arg9[%c10, %c1_104, %c0_105] : memref<12x18x128xf32, #tpu.memory_space<vmem>>, vector<1x16x128xf32>
      tpu.vector_store %arg9[%c10, %c1_104, %c0_105], %64 {strides = array<i32>} : memref<12x18x128xf32, #tpu.memory_space<vmem>>, vector<1x16x128xf32>,
    } else {
    }
    %c1_66 = arith.constant 1 : index
    %c0_67 = arith.constant 0 : index
    %c0_68 = arith.constant 0 : index
    %71 = vector.load %arg9[%c1_66, %c0_67, %c0_68] : memref<12x18x128xf32, #tpu.memory_space<vmem>>, vector<8x18x128xf32>
    %72 = vector.extract_strided_slice %71 {offsets = [0, 0, 0], sizes = [8, 16, 128], strides = [1, 1, 1]} : vector<8x18x128xf32> to vector<8x16x128xf32>
    %73 = vector.extract_strided_slice %71 {offsets = [0, 1, 0], sizes = [8, 16, 128], strides = [1, 1, 1]} : vector<8x18x128xf32> to vector<8x16x128xf32>
    %74 = vector.extract_strided_slice %71 {offsets = [0, 2, 0], sizes = [8, 16, 128], strides = [1, 1, 1]} : vector<8x18x128xf32> to vector<8x16x128xf32>
    %75 = tpu.concatenate %72, %73, %74 in 2 : vector<8x16x128xf32>, vector<8x16x128xf32>, vector<8x16x128xf32> -> vector<8x16x384xf32>
    %76 = vector.shape_cast %75 : vector<8x16x384xf32> to vector<128x384xf32>
    %c3 = arith.constant 3 : index
    %c0_69 = arith.constant 0 : index
    %c0_70 = arith.constant 0 : index
    %77 = vector.load %arg5[%c3, %c0_69, %c0_70] : memref<6x384x128xf32, #tpu.memory_space<vmem>>, vector<1x384x128xf32>
    %78 = vector.shape_cast %77 : vector<1x384x128xf32> to vector<384x128xf32>
    %cst_71 = arith.constant dense<0.000000e+00> : vector<128x128xf32>
    %79 = tpu.matmul %76, %78, %cst_71 {dimension_numbers = #tpu.dot_dimension_numbers<[1], [0], [0], [1], [0, 0, 1, 1], [], []>} : vector<128x384xf32>, vector<384x128xf32>, vector<128x128xf32> -> vector<128x128xf32>
    %c0_72 = arith.constant 0 : index
    %c0_73 = arith.constant 0 : index
    %80 = vector.load %arg10[%c0_72, %c0_73] : memref<160x128xf32, #tpu.memory_space<vmem>>, vector<128x128xf32>
    tpu.vector_store %arg10[%c0_72, %c0_73], %79 {strides = array<i32>} : memref<160x128xf32, #tpu.memory_space<vmem>>, vector<128x128xf32>,
    %c2_74 = arith.constant 2 : index
    %c0_75 = arith.constant 0 : index
    %c0_76 = arith.constant 0 : index
    %81 = vector.load %arg9[%c2_74, %c0_75, %c0_76] : memref<12x18x128xf32, #tpu.memory_space<vmem>>, vector<8x18x128xf32>
    %82 = vector.extract_strided_slice %81 {offsets = [0, 0, 0], sizes = [8, 16, 128], strides = [1, 1, 1]} : vector<8x18x128xf32> to vector<8x16x128xf32>
    %83 = vector.extract_strided_slice %81 {offsets = [0, 1, 0], sizes = [8, 16, 128], strides = [1, 1, 1]} : vector<8x18x128xf32> to vector<8x16x128xf32>
    %84 = vector.extract_strided_slice %81 {offsets = [0, 2, 0], sizes = [8, 16, 128], strides = [1, 1, 1]} : vector<8x18x128xf32> to vector<8x16x128xf32>
    %85 = tpu.concatenate %82, %83, %84 in 2 : vector<8x16x128xf32>, vector<8x16x128xf32>, vector<8x16x128xf32> -> vector<8x16x384xf32>
    %86 = vector.shape_cast %85 : vector<8x16x384xf32> to vector<128x384xf32>
    %c4 = arith.constant 4 : index
    %c0_77 = arith.constant 0 : index
    %c0_78 = arith.constant 0 : index
    %87 = vector.load %arg5[%c4, %c0_77, %c0_78] : memref<6x384x128xf32, #tpu.memory_space<vmem>>, vector<1x384x128xf32>
    %88 = vector.shape_cast %87 : vector<1x384x128xf32> to vector<384x128xf32>
    %cst_79 = arith.constant dense<0.000000e+00> : vector<128x128xf32>
    %89 = tpu.matmul %86, %88, %cst_79 {dimension_numbers = #tpu.dot_dimension_numbers<[1], [0], [0], [1], [0, 0, 1, 1], [], []>} : vector<128x384xf32>, vector<384x128xf32>, vector<128x128xf32> -> vector<128x128xf32>
    %c0_80 = arith.constant 0 : index
    %c0_81 = arith.constant 0 : index
    %90 = vector.load %arg10[%c0_80, %c0_81] : memref<160x128xf32, #tpu.memory_space<vmem>>, vector<128x128xf32>
    %91 = arith.addf %90, %89 : vector<128x128xf32>
    %c0_82 = arith.constant 0 : index
    %c0_83 = arith.constant 0 : index
    %92 = vector.load %arg10[%c0_82, %c0_83] : memref<160x128xf32, #tpu.memory_space<vmem>>, vector<128x128xf32>
    tpu.vector_store %arg10[%c0_82, %c0_83], %91 {strides = array<i32>} : memref<160x128xf32, #tpu.memory_space<vmem>>, vector<128x128xf32>,
    %c3_84 = arith.constant 3 : index
    %c0_85 = arith.constant 0 : index
    %c0_86 = arith.constant 0 : index
    %93 = vector.load %arg9[%c3_84, %c0_85, %c0_86] : memref<12x18x128xf32, #tpu.memory_space<vmem>>, vector<8x18x128xf32>
    %94 = vector.extract_strided_slice %93 {offsets = [0, 0, 0], sizes = [8, 16, 128], strides = [1, 1, 1]} : vector<8x18x128xf32> to vector<8x16x128xf32>
    %95 = vector.extract_strided_slice %93 {offsets = [0, 1, 0], sizes = [8, 16, 128], strides = [1, 1, 1]} : vector<8x18x128xf32> to vector<8x16x128xf32>
    %96 = vector.extract_strided_slice %93 {offsets = [0, 2, 0], sizes = [8, 16, 128], strides = [1, 1, 1]} : vector<8x18x128xf32> to vector<8x16x128xf32>
    %97 = tpu.concatenate %94, %95, %96 in 2 : vector<8x16x128xf32>, vector<8x16x128xf32>, vector<8x16x128xf32> -> vector<8x16x384xf32>
    %98 = vector.shape_cast %97 : vector<8x16x384xf32> to vector<128x384xf32>
    %c5 = arith.constant 5 : index
    %c0_87 = arith.constant 0 : index
    %c0_88 = arith.constant 0 : index
    %99 = vector.load %arg5[%c5, %c0_87, %c0_88] : memref<6x384x128xf32, #tpu.memory_space<vmem>>, vector<1x384x128xf32>
    %100 = vector.shape_cast %99 : vector<1x384x128xf32> to vector<384x128xf32>
    %cst_89 = arith.constant dense<0.000000e+00> : vector<128x128xf32>
    %101 = tpu.matmul %98, %100, %cst_89 {dimension_numbers = #tpu.dot_dimension_numbers<[1], [0], [0], [1], [0, 0, 1, 1], [], []>} : vector<128x384xf32>, vector<384x128xf32>, vector<128x128xf32> -> vector<128x128xf32>
    %c0_90 = arith.constant 0 : index
    %c0_91 = arith.constant 0 : index
    %102 = vector.load %arg10[%c0_90, %c0_91] : memref<160x128xf32, #tpu.memory_space<vmem>>, vector<128x128xf32>
    %103 = arith.addf %102, %101 : vector<128x128xf32>
    %c0_92 = arith.constant 0 : index
    %c0_93 = arith.constant 0 : index
    %104 = vector.load %arg10[%c0_92, %c0_93] : memref<160x128xf32, #tpu.memory_space<vmem>>, vector<128x128xf32>
    tpu.vector_store %arg10[%c0_92, %c0_93], %103 {strides = array<i32>} : memref<160x128xf32, #tpu.memory_space<vmem>>, vector<128x128xf32>,
    %c0_94 = arith.constant 0 : index
    %c0_95 = arith.constant 0 : index
    %105 = vector.load %arg10[%c0_94, %c0_95] : memref<160x128xf32, #tpu.memory_space<vmem>>, vector<128x128xf32>
    %106 = vector.shape_cast %105 : vector<128x128xf32> to vector<8x16x128xf32>
    %c0_96 = arith.constant 0 : index
    %c0_97 = arith.constant 0 : index
    %c0_98 = arith.constant 0 : index
    %c0_99 = arith.constant 0 : index
    %107 = vector.load %arg2[%c0_96, %c0_97, %c0_98, %c0_99] : memref<1x8x16x128xf32, #tpu.memory_space<vmem>>, vector<1x8x16x128xf32>
    %108 = vector.shape_cast %107 : vector<1x8x16x128xf32> to vector<8x16x128xf32>
    %109 = arith.addf %106, %108 : vector<8x16x128xf32>
    %c0_100 = arith.constant 0 : index
    %c0_101 = arith.constant 0 : index
    %c0_102 = arith.constant 0 : index
    %c0_103 = arith.constant 0 : index
    %110 = vector.load %arg7[%c0_100, %c0_101, %c0_102, %c0_103] : memref<1x8x16x128xf32, #tpu.memory_space<vmem>>, vector<1x8x16x128xf32>
    %111 = vector.shape_cast %110 : vector<1x8x16x128xf32> to vector<8x16x128xf32>
    %112 = vector.shape_cast %109 : vector<8x16x128xf32> to vector<1x8x16x128xf32>
    tpu.vector_store %arg7[%c0_100, %c0_101, %c0_102, %c0_103], %112 {strides = array<i32>} : memref<1x8x16x128xf32, #tpu.memory_space<vmem>>, vector<1x8x16x128xf32>,
    return
  }
  func.func @transform_0(%arg0: i32, %arg1: i32) -> (i32, i32, i32, i32) {
    %c0_i32 = arith.constant 0 : i32
    %c0_i32_0 = arith.constant 0 : i32
    %c0_i32_1 = arith.constant 0 : i32
    return %arg0, %arg1, %c0_i32, %c0_i32_0 : i32, i32, i32, i32
  }
  func.func @transform_1(%arg0: i32, %arg1: i32) -> (i32, i32, i32, i32) {
    %c4_i32 = arith.constant 4 : i32
    %0 = arith.muli %arg1, %c4_i32 : i32
    %c1_i32 = arith.constant 1 : i32
    %1 = arith.subi %0, %c1_i32 : i32
    %c0_i32 = arith.constant 0 : i32
    %2 = arith.maxsi %1, %c0_i32 : i32
    %c0_i32_0 = arith.constant 0 : i32
    %c0_i32_1 = arith.constant 0 : i32
    %c0_i32_2 = arith.constant 0 : i32
    return %arg0, %2, %c0_i32_0, %c0_i32_1 : i32, i32, i32, i32
  }
  func.func @transform_2(%arg0: i32, %arg1: i32) -> (i32, i32, i32, i32) {
    %c1_i32 = arith.constant 1 : i32
    %0 = arith.addi %arg1, %c1_i32 : i32
    %c4_i32 = arith.constant 4 : i32
    %1 = arith.muli %0, %c4_i32 : i32
    %c7_i32 = arith.constant 7 : i32
    %2 = arith.minsi %1, %c7_i32 : i32
    %c0_i32 = arith.constant 0 : i32
    %c0_i32_0 = arith.constant 0 : i32
    %c0_i32_1 = arith.constant 0 : i32
    return %arg0, %2, %c0_i32, %c0_i32_0 : i32, i32, i32, i32
  }
  func.func @transform_3(%arg0: i32, %arg1: i32) -> (i32, i32, i32) {
    %c0_i32 = arith.constant 0 : i32
    %c0_i32_0 = arith.constant 0 : i32
    %c0_i32_1 = arith.constant 0 : i32
    %c0_i32_2 = arith.constant 0 : i32
    return %c0_i32, %c0_i32_0, %c0_i32_1 : i32, i32, i32
  }
  func.func @transform_4(%arg0: i32, %arg1: i32) -> (i32, i32) {
    %c0_i32 = arith.constant 0 : i32
    %c0_i32_0 = arith.constant 0 : i32
    %c0_i32_1 = arith.constant 0 : i32
    return %c0_i32, %c0_i32_0 : i32, i32
  }
  func.func @transform_5(%arg0: i32, %arg1: i32) -> (i32, i32, i32, i32) {
    %c0_i32 = arith.constant 0 : i32
    %c0_i32_0 = arith.constant 0 : i32
    %c0_i32_1 = arith.constant 0 : i32
    return %arg0, %arg1, %c0_i32, %c0_i32_0 : i32, i32, i32, i32
  }
}

</mosaic_0001>

<llo_original>
// kernel: tpu_custom_call.1
$region0: #{tpu_custom_call.1}
  #allocation0 [shape = 'u32[]', space=smem, size = 0x4, offset = 0x4, fixed_abs, tag = 'smem constant byte address 0x4 - core index']
  #allocation1 [shape = 'u32[72,128]{1,0:T(1,128)}', space=vmem, size = 0x9000, scoped, tag = 'internal scratch']
  #allocation2 [shape = 'f32[12,18,128]{2,1,0:T(8,128)}', space=vmem, size = 0x24000, scoped, tag = 'scratch operand']
  #allocation3 [shape = 'f32[12,18,128]{2,1,0:T(8,128)}', space=vmem, size = 0x24000, scoped, tag = 'scratch operand']
  #allocation4 [shape = 'f32[160,128]{1,0:T(8,128)}', space=vmem, size = 0x14000, scoped, tag = 'scratch operand']
  %s0 = inlined_call_operand.hbm [shape: f32[2,16,16,128], index: 0, kind: input, shape index: {}]
  %s1 = inlined_call_operand.hbm [shape: f32[2,16,16,128], index: 1, kind: input, shape index: {}]
  %s2 = inlined_call_operand.hbm [shape: f32[2,16,16,128], index: 2, kind: input, shape index: {}]
  %s3 = inlined_call_operand.hbm [shape: f32[6,384,128], index: 3, kind: input, shape index: {}]
  %s4 = inlined_call_operand.hbm [shape: f32[1,128], index: 4, kind: input, shape index: {}]
  %s5 = inlined_call_operand.hbm [shape: f32[2,16,16,128], index: 5, kind: output, shape index: {}]
  %s6 = sld [smem:[#allocation0]]
  $region97: #{tpu_custom_call.1} parent=0
    _
  %s8 = ssub.s32 1, %s6
  %s9 = scalar_select 0, %s8, %s6
  $region1: #{tpu_custom_call.1} parent=0
    #allocation5 [shape = 'u8[131072]{0}', space=vmem, size = 0x20000, scoped, tag = 'input window, operand 0']
    #allocation6 [shape = 's32[2]{0}', space=sflag, size = 0x8, scoped, tag = 'scoped memory for tpu_custom_call.1']
    #allocation7 [shape = 's32[2]{0}', space=sflag, size = 0x8, scoped, tag = 'scoped memory for tpu_custom_call.1']
    #allocation8 [shape = 'u8[32768]{0}', space=vmem, size = 0x8000, scoped, tag = 'input window, operand 1']
    #allocation9 [shape = 's32[2]{0}', space=sflag, size = 0x8, scoped, tag = 'scoped memory for tpu_custom_call.1']
    #allocation10 [shape = 'u8[32768]{0}', space=vmem, size = 0x8000, scoped, tag = 'input window, operand 2']
    #allocation11 [shape = 'u8[1179648]{0}', space=vmem, size = 0x120000, scoped, tag = 'input window, operand 3, single buffered']
    #allocation12 [shape = 's32[1]{0}', space=sflag, size = 0x4, scoped, tag = 'scoped memory for tpu_custom_call.1']
    #allocation13 [shape = 'u8[512]{0}', space=vmem, size = 0x400, scoped, tag = 'input window, operand 4, single buffered']
    #allocation14 [shape = 'u8[131072]{0}', space=vmem, size = 0x20000, scoped, tag = 'output window, operand 0']
    %10 = vsyncpa [#allocation6], 0
    %s11 = scalar_lea.sflag [#allocation6], 1
    %12 = vsyncpa %s11, 0
    %13 = vsyncpa [#allocation9], 0
    %s14 = scalar_lea.sflag [#allocation9], 1
    %15 = vsyncpa %s14, 0
    %16 = vsyncpa [#allocation12], 0
    %17 = vsyncpa [#allocation7], 0
    %s18 = scalar_lea.sflag [#allocation7], 1
    %19 = vsyncpa %s18, 0
    loop: start=0, step=1, limit=6
    $region2: #{tpu_custom_call.1} parent=1 // loop_pre_header
      _
    $region3: #{tpu_custom_call.1} parent=1 // loop_header
      %s21 = sphi 0, %s25
      %p22 = scmp.ge.s32.totalorder %s21, 6
      %s28 = sphi 0, %s40
      %s29 = sphi 0, %s36
      %s30 = sphi 0, %s28
      %s31 = sphi 0, %s29
      %s32 = sphi 0, %s30
      %s33 = sphi 0, %s31
      %s45 = sphi 0, %s47
      %s48 = sphi 0, %s45
      %s49 = sphi 0, %s48
      %s65 = sphi 0, %s49
      %s81 = sphi 0, %s83
      %s84 = sphi 0, %s81
      %s85 = sphi 0, %s84
      %s101 = sphi 0, %s85
      %s117 = sphi 0, %s119
      %s120 = sphi 0, %s117
      %s121 = sphi 0, %s120
      %s137 = sphi 0, %s121
      %s141 = sphi 0, %s141
      %s143 = sphi 0, %s141
      %s144 = sphi 0, %s143
      %s158 = sphi 0, %s144
      %s162 = sphi 0, %s162
      %s164 = sphi 0, %s162
      %s165 = sphi 0, %s164
      %s179 = sphi 0, %s165
      %s187 = sphi 0, %s189
      %s190 = sphi 0, %s187
      %s191 = sphi 0, %s190
      %s207 = sphi 0, %s191
    $region4: #{tpu_custom_call.1} parent=1 // loop_header_branch
      %24 = sbr.rel (%p22) target = $region8
    $region5: #{tpu_custom_call.1} parent=1 // loop_body
      %s26 = ssub.s32 %s21, 1
      %s27 = ssub.s32 %s21, 2
      %s34 = sadd.s32 1, %s29
      %p35 = scmp.ge.s32.totalorder %s34, 2
      %s36 = scalar_select %p35, 0, %s34
      %s37 = sadd.s32 1, %s28
      %s38 = scalar_select %p35, %s37, %s28
      %p39 = scmp.ge.s32.totalorder %s38, 2
      %s40 = scalar_select %p39, 0, %s38
      %s41 = ssub.s32 %s28, %s40
      %s42 = ssub.s32 %s29, %s36
      %s43 = sor.u32 %s41, %s42
      %p44 = scmp.eq.s32.totalorder %s43, 0
      %s46 = sadd.s32 %s45, 1
      %s47 = scalar_select %p44, %s45, %s46
      %p50 = pneg %p44
      %p51 = scmp.eq.s32.totalorder %s21, 3
      %p52 = por %p50, %p51
      %p53 = scmp.ne.s32.totalorder %s45, %s48
      %p54 = scmp.eq.s32.totalorder %s21, 0
      %p55 = por %p53, %p54
      %p56 = scmp.ne.s32.totalorder %s45, %s48
      %p57 = scmp.eq.s32.totalorder %s26, 3
      %p58 = por %p56, %p57
      %p59 = scmp.ne.s32.totalorder %s48, %s49
      %p60 = scmp.eq.s32.totalorder %s26, 0
      %p61 = por %p59, %p60
      %p62 = scmp.ne.s32.totalorder %s48, %s49
      %p63 = scmp.eq.s32.totalorder %s27, 3
      %p64 = por %p62, %p63
      %p66 = scmp.ne.s32.totalorder %s49, %s65
      %p67 = scmp.eq.s32.totalorder %s27, 0
      %p68 = por %p66, %p67
      %s69 = smul.u32 %s29, 4
      %s70 = ssub.s32 %s69, 1
      %p71 = scmp.gt.s32.totalorder %s70, 0
      %s72 = scalar_select %p71, %s70, 0
      %s73 = smul.u32 %s36, 4
      %s74 = ssub.s32 %s73, 1
      %p75 = scmp.gt.s32.totalorder %s74, 0
      %s76 = scalar_select %p75, %s74, 0
      %s77 = ssub.s32 %s28, %s40
      %s78 = ssub.s32 %s72, %s76
      %s79 = sor.u32 %s77, %s78
      %p80 = scmp.eq.s32.totalorder %s79, 0
      %s82 = sadd.s32 %s81, 1
      %s83 = scalar_select %p80, %s81, %s82
      %p86 = pneg %p80
      %p87 = scmp.eq.s32.totalorder %s21, 3
      %p88 = por %p86, %p87
      %p89 = scmp.ne.s32.totalorder %s81, %s84
      %p90 = scmp.eq.s32.totalorder %s21, 0
      %p91 = por %p89, %p90
      %p92 = scmp.ne.s32.totalorder %s81, %s84
      %p93 = scmp.eq.s32.totalorder %s26, 3
      %p94 = por %p92, %p93
      %p95 = scmp.ne.s32.totalorder %s84, %s85
      %p96 = scmp.eq.s32.totalorder %s26, 0
      %p97 = por %p95, %p96
      %p98 = scmp.ne.s32.totalorder %s84, %s85
      %p99 = scmp.eq.s32.totalorder %s27, 3
      %p100 = por %p98, %p99
      %p102 = scmp.ne.s32.totalorder %s85, %s101
      %p103 = scmp.eq.s32.totalorder %s27, 0
      %p104 = por %p102, %p103
      %s105 = sadd.s32 %s29, 1
      %s106 = smul.u32 %s105, 4
      %p107 = scmp.lt.s32.totalorder %s106, 7
      %s108 = scalar_select %p107, %s106, 7
      %s109 = sadd.s32 %s36, 1
      %s110 = smul.u32 %s109, 4
      %p111 = scmp.lt.s32.totalorder %s110, 7
      %s112 = scalar_select %p111, %s110, 7
      %s113 = ssub.s32 %s28, %s40
      %s114 = ssub.s32 %s108, %s112
      %s115 = sor.u32 %s113, %s114
      %p116 = scmp.eq.s32.totalorder %s115, 0
      %s118 = sadd.s32 %s117, 1
      %s119 = scalar_select %p116, %s117, %s118
      %p122 = pneg %p116
      %p123 = scmp.eq.s32.totalorder %s21, 3
      %p124 = por %p122, %p123
      %p125 = scmp.ne.s32.totalorder %s117, %s120
      %p126 = scmp.eq.s32.totalorder %s21, 0
      %p127 = por %p125, %p126
      %p128 = scmp.ne.s32.totalorder %s117, %s120
      %p129 = scmp.eq.s32.totalorder %s26, 3
      %p130 = por %p128, %p129
      %p131 = scmp.ne.s32.totalorder %s120, %s121
      %p132 = scmp.eq.s32.totalorder %s26, 0
      %p133 = por %p131, %p132
      %p134 = scmp.ne.s32.totalorder %s120, %s121
      %p135 = scmp.eq.s32.totalorder %s27, 3
      %p136 = por %p134, %p135
      %p138 = scmp.ne.s32.totalorder %s121, %s137
      %p139 = scmp.eq.s32.totalorder %s27, 0
      %p140 = por %p138, %p139
      %s142 = sadd.s32 %s141, 1
      %p145 = scmp.eq.s32.totalorder %s21, 3
      %p146 = scmp.ne.s32.totalorder %s141, %s143
      %p147 = scmp.eq.s32.totalorder %s21, 0
      %p148 = por %p146, %p147
      %p149 = scmp.ne.s32.totalorder %s141, %s143
      %p150 = scmp.eq.s32.totalorder %s26, 3
      %p151 = por %p149, %p150
      %p152 = scmp.ne.s32.totalorder %s143, %s144
      %p153 = scmp.eq.s32.totalorder %s26, 0
      %p154 = por %p152, %p153
      %p155 = scmp.ne.s32.totalorder %s143, %s144
      %p156 = scmp.eq.s32.totalorder %s27, 3
      %p157 = por %p155, %p156
      %p159 = scmp.ne.s32.totalorder %s144, %s158
      %p160 = scmp.eq.s32.totalorder %s27, 0
      %p161 = por %p159, %p160
      %s163 = sadd.s32 %s162, 1
      %p166 = scmp.eq.s32.totalorder %s21, 3
      %p167 = scmp.ne.s32.totalorder %s162, %s164
      %p168 = scmp.eq.s32.totalorder %s21, 0
      %p169 = por %p167, %p168
      %p170 = scmp.ne.s32.totalorder %s162, %s164
      %p171 = scmp.eq.s32.totalorder %s26, 3
      %p172 = por %p170, %p171
      %p173 = scmp.ne.s32.totalorder %s164, %s165
      %p174 = scmp.eq.s32.totalorder %s26, 0
      %p175 = por %p173, %p174
      %p176 = scmp.ne.s32.totalorder %s164, %s165
      %p177 = scmp.eq.s32.totalorder %s27, 3
      %p178 = por %p176, %p177
      %p180 = scmp.ne.s32.totalorder %s165, %s179
      %p181 = scmp.eq.s32.totalorder %s27, 0
      %p182 = por %p180, %p181
      %s183 = ssub.s32 %s28, %s40
      %s184 = ssub.s32 %s29, %s36
      %s185 = sor.u32 %s183, %s184
      %p186 = scmp.eq.s32.totalorder %s185, 0
      %s188 = sadd.s32 %s187, 1
      %s189 = scalar_select %p186, %s187, %s188
      %p192 = pneg %p186
      %p193 = scmp.eq.s32.totalorder %s21, 3
      %p194 = por %p192, %p193
      %p195 = scmp.ne.s32.totalorder %s187, %s190
      %p196 = scmp.eq.s32.totalorder %s21, 0
      %p197 = por %p195, %p196
      %p198 = scmp.ne.s32.totalorder %s187, %s190
      %p199 = scmp.eq.s32.totalorder %s26, 3
      %p200 = por %p198, %p199
      %p201 = scmp.ne.s32.totalorder %s190, %s191
      %p202 = scmp.eq.s32.totalorder %s26, 0
      %p203 = por %p201, %p202
      %p204 = scmp.ne.s32.totalorder %s190, %s191
      %p205 = scmp.eq.s32.totalorder %s27, 3
      %p206 = por %p204, %p205
      %p208 = scmp.ne.s32.totalorder %s191, %s207
      %p209 = scmp.eq.s32.totalorder %s27, 0
      %p210 = por %p208, %p209
      %p211 = scmp.le.s32.totalorder 1, %s21
      %p212 = scmp.lt.s32.totalorder %s21, 5
      %p213 = pnand %p211, %p212
      %p214 = pneg %p213
      // Predicated region
      $region9: #{tpu_custom_call.1} parent=5 // pred_check
        _
      $region10: #{tpu_custom_call.1} parent=5 // pred_check_branch
        %216 = sbr.rel (%p213) target = $region12
      $region11: #{tpu_custom_call.1} parent=5 // pred_region
        %s217 = ssub.s32 %s21, 1
        // Predicated region
        $region13: #{tpu_custom_call.1} parent=11 // pred_check
          %p218 = pneg %p154
        $region14: #{tpu_custom_call.1} parent=11 // pred_check_branch
          %220 = sbr.rel (%p218) target = $region16
        $region15: #{tpu_custom_call.1} parent=11 // pred_region
          %222 = vsyncadd [#allocation12], 0
          %s223 = sshll.u32 %s3, 4
          %s224 = int_to_ptr.hbm [resolvable:$true] %s223
          %s225 = sshll.u32 [#allocation11], 4
          %s226 = int_to_ptr.vmem [resolvable:$true] %s225
          %231 = dma.hbm_to_vmem [thread:$0]  %s224, 36864, %s226, [#allocation12], 128, 128, 8
        $region16: #{tpu_custom_call.1} parent=11 // pred_fallthru
          _
        // Predicated region
        $region17: #{tpu_custom_call.1} parent=11 // pred_check
          %p232 = pneg %p175
        $region18: #{tpu_custom_call.1} parent=11 // pred_check_branch
          %234 = sbr.rel (%p232) target = $region20
        $region19: #{tpu_custom_call.1} parent=11 // pred_region
          %236 = vsyncadd [#allocation12], 0
          %s238 = sshll.u32 %s4, 4
          %s239 = int_to_ptr.hbm [resolvable:$true] %s238
          %s240 = sshll.u32 [#allocation13], 4
          %s241 = int_to_ptr.vmem [resolvable:$true] %s240
          %243 = dma.hbm_to_vmem [thread:$0]  %s239, 16, %s241, [#allocation12]
        $region20: #{tpu_custom_call.1} parent=11 // pred_fallthru
          _
      $region12: #{tpu_custom_call.1} parent=5 // pred_fallthru
        _
      %p244 = scmp.lt.s32.totalorder %s21, 4
      // Predicated region
      $region21: #{tpu_custom_call.1} parent=5 // pred_check
        %p245 = pneg %p244
      $region22: #{tpu_custom_call.1} parent=5 // pred_check_branch
        %247 = sbr.rel (%p245) target = $region24
      $region23: #{tpu_custom_call.1} parent=5 // pred_region
        // Predicated region
        $region25: #{tpu_custom_call.1} parent=23 // pred_check
          %p248 = pneg %p55
        $region26: #{tpu_custom_call.1} parent=23 // pred_check_branch
          %250 = sbr.rel (%p248) target = $region28
        $region27: #{tpu_custom_call.1} parent=23 // pred_region
          %s251 = sand.u32 %s45, 1
          %s252 = scalar_lea.sflag [#allocation6], %s251
          %s253 = sand.u32 %s45, 1
          %s254 = smul.addr %s253, 128
          %s255 = scalar_lea.vmem [#allocation5], %s254
          %s256 = smul.u32 8, %s29
          %258 = vsyncadd %s252, 0
          %s259 = smul.addr %s256, 2
          %s260 = smul.addr %s28, 32
          %s261 = sadd.s32 %s259, %s260
          %s262 = smul.addr %s261, 8
          %s263 = scalar_lea.hbm %s0, %s262
          %s264 = sshll.u32 %s263, 4
          %s265 = int_to_ptr.hbm [resolvable:$true] %s264
          %s266 = sshll.u32 %s255, 4
          %s267 = int_to_ptr.vmem [resolvable:$true] %s266
          %272 = dma.hbm_to_vmem [thread:$0]  %s265, 2048, %s267, %s252, 128, 128, 8
        $region28: #{tpu_custom_call.1} parent=23 // pred_fallthru
          _
        // Predicated region
        $region29: #{tpu_custom_call.1} parent=23 // pred_check
          %p273 = pneg %p91
        $region30: #{tpu_custom_call.1} parent=23 // pred_check_branch
          %275 = sbr.rel (%p273) target = $region32
        $region31: #{tpu_custom_call.1} parent=23 // pred_region
          %s276 = sand.u32 %s21, 1
          %s277 = scalar_lea.sflag [#allocation9], %s276
          %s278 = sand.u32 %s81, 1
          %s279 = smul.addr %s278, 32
          %s280 = scalar_lea.vmem [#allocation8], %s279
          %s281 = smul.u32 %s29, 4
          %s282 = ssub.s32 %s281, 1
          %p283 = scmp.gt.s32.totalorder %s282, 0
          %s284 = scalar_select %p283, %s282, 0
          %s285 = smul.u32 2, %s284
          %287 = vsyncadd %s277, 0
          %s288 = smul.addr %s285, 2
          %s289 = smul.addr %s28, 32
          %s290 = sadd.s32 %s288, %s289
          %s291 = smul.addr %s290, 8
          %s292 = scalar_lea.hbm %s1, %s291
          %s293 = sshll.u32 %s292, 4
          %s294 = int_to_ptr.hbm [resolvable:$true] %s293
          %s295 = sshll.u32 %s280, 4
          %s296 = int_to_ptr.vmem [resolvable:$true] %s295
          %301 = dma.hbm_to_vmem [thread:$0]  %s294, 512, %s296, %s277, 128, 128, 8
        $region32: #{tpu_custom_call.1} parent=23 // pred_fallthru
          _
        // Predicated region
        $region33: #{tpu_custom_call.1} parent=23 // pred_check
          %p302 = pneg %p127
        $region34: #{tpu_custom_call.1} parent=23 // pred_check_branch
          %304 = sbr.rel (%p302) target = $region36
        $region35: #{tpu_custom_call.1} parent=23 // pred_region
          %s305 = sand.u32 %s21, 1
          %s306 = scalar_lea.sflag [#allocation9], %s305
          %s307 = sand.u32 %s117, 1
          %s308 = smul.addr %s307, 32
          %s309 = scalar_lea.vmem [#allocation10], %s308
          %s310 = sadd.s32 %s29, 1
          %s311 = smul.u32 %s310, 4
          %p312 = scmp.lt.s32.totalorder %s311, 7
          %s313 = scalar_select %p312, %s311, 7
          %s314 = smul.u32 2, %s313
          %316 = vsyncadd %s306, 0
          %s317 = smul.addr %s314, 2
          %s318 = smul.addr %s28, 32
          %s319 = sadd.s32 %s317, %s318
          %s320 = smul.addr %s319, 8
          %s321 = scalar_lea.hbm %s2, %s320
          %s322 = sshll.u32 %s321, 4
          %s323 = int_to_ptr.hbm [resolvable:$true] %s322
          %s324 = sshll.u32 %s309, 4
          %s325 = int_to_ptr.vmem [resolvable:$true] %s324
          %330 = dma.hbm_to_vmem [thread:$0]  %s323, 512, %s325, %s306, 128, 128, 8
        $region36: #{tpu_custom_call.1} parent=23 // pred_fallthru
          _
      $region24: #{tpu_custom_call.1} parent=5 // pred_fallthru
        _
      %p331 = scmp.le.s32.totalorder 1, %s21
      %p332 = scmp.lt.s32.totalorder %s21, 5
      %p333 = pnand %p331, %p332
      %p334 = pneg %p333
      // Predicated region
      $region37: #{tpu_custom_call.1} parent=5 // pred_check
        _
      $region38: #{tpu_custom_call.1} parent=5 // pred_check_branch
        %336 = sbr.rel (%p333) target = $region40
      $region39: #{tpu_custom_call.1} parent=5 // pred_region
        %s337 = ssub.s32 %s21, 1
        %s338 = sand.u32 %s48, 1
        %s339 = scalar_lea.sflag [#allocation6], %s338
        %s340 = sand.u32 %s48, 1
        %s341 = smul.addr %s340, 128
        %s342 = scalar_lea.vmem [#allocation5], %s341
        // Predicated region
        $region41: #{tpu_custom_call.1} parent=39 // pred_check
          %p343 = pneg %p61
        $region42: #{tpu_custom_call.1} parent=39 // pred_check_branch
          %345 = sbr.rel (%p343) target = $region44
        $region43: #{tpu_custom_call.1} parent=39 // pred_region
          %347 = dma.done %s339, 2048
        $region44: #{tpu_custom_call.1} parent=39 // pred_fallthru
          _
        %s348 = sand.u32 %s26, 1
        %s349 = scalar_lea.sflag [#allocation9], %s348
        %s350 = sand.u32 %s84, 1
        %s351 = smul.addr %s350, 32
        %s352 = scalar_lea.vmem [#allocation8], %s351
        // Predicated region
        $region45: #{tpu_custom_call.1} parent=39 // pred_check
          %p353 = pneg %p97
        $region46: #{tpu_custom_call.1} parent=39 // pred_check_branch
          %355 = sbr.rel (%p353) target = $region48
        $region47: #{tpu_custom_call.1} parent=39 // pred_region
          %357 = dma.done %s349, 512
        $region48: #{tpu_custom_call.1} parent=39 // pred_fallthru
          _
        %s358 = sand.u32 %s26, 1
        %s359 = scalar_lea.sflag [#allocation9], %s358
        %s360 = sand.u32 %s120, 1
        %s361 = smul.addr %s360, 32
        %s362 = scalar_lea.vmem [#allocation10], %s361
        // Predicated region
        $region49: #{tpu_custom_call.1} parent=39 // pred_check
          %p363 = pneg %p133
        $region50: #{tpu_custom_call.1} parent=39 // pred_check_branch
          %365 = sbr.rel (%p363) target = $region52
        $region51: #{tpu_custom_call.1} parent=39 // pred_region
          %367 = dma.done %s359, 512
        $region52: #{tpu_custom_call.1} parent=39 // pred_fallthru
          _
        // Predicated region
        $region53: #{tpu_custom_call.1} parent=39 // pred_check
          %p368 = pneg %p154
        $region54: #{tpu_custom_call.1} parent=39 // pred_check_branch
          %370 = sbr.rel (%p368) target = $region56
        $region55: #{tpu_custom_call.1} parent=39 // pred_region
          %372 = dma.done [#allocation12], 36864
        $region56: #{tpu_custom_call.1} parent=39 // pred_fallthru
          _
        // Predicated region
        $region57: #{tpu_custom_call.1} parent=39 // pred_check
          %p373 = pneg %p175
        $region58: #{tpu_custom_call.1} parent=39 // pred_check_branch
          %375 = sbr.rel (%p373) target = $region60
        $region59: #{tpu_custom_call.1} parent=39 // pred_region
          %377 = dma.done [#allocation12], 16
        $region60: #{tpu_custom_call.1} parent=39 // pred_fallthru
          _
        %s378 = sand.u32 %s48, 1
        %s379 = scalar_lea.sflag [#allocation6], %s378
        %s380 = sand.u32 %s48, 1
        %s381 = smul.addr %s380, 128
        %s382 = scalar_lea.vmem [#allocation5], %s381
        %p383 = pneg %p61
        %p384 = pneg %p58
        %s385 = sand.u32 %s26, 1
        %s386 = scalar_lea.sflag [#allocation9], %s385
        %s387 = sand.u32 %s84, 1
        %s388 = smul.addr %s387, 32
        %s389 = scalar_lea.vmem [#allocation8], %s388
        %p390 = pneg %p97
        %p391 = pneg %p94
        %s392 = sand.u32 %s26, 1
        %s393 = scalar_lea.sflag [#allocation9], %s392
        %s394 = sand.u32 %s120, 1
        %s395 = smul.addr %s394, 32
        %s396 = scalar_lea.vmem [#allocation10], %s395
        %p397 = pneg %p133
        %p398 = pneg %p130
        %p399 = pneg %p154
        %p400 = pneg %p151
        %p401 = pneg %p175
        %p402 = pneg %p172
        %p403 = pneg %p203
        %p404 = pneg %p200
        %s405 = sand.u32 %s190, 1
        %s406 = scalar_lea.sflag [#allocation7], %s405
        %s407 = sand.u32 %s190, 1
        %s408 = smul.addr %s407, 128
        %s409 = scalar_lea.vmem [#allocation14], %s408
        %s410 = smul.u32 8, %s31
        %s411 = smul.u32 %s31, 4
        %s412 = ssub.s32 %s411, 1
        %p413 = scmp.gt.s32.totalorder %s412, 0
        %s414 = scalar_select %p413, %s412, 0
        %s415 = smul.u32 2, %s414
        %s416 = sadd.s32 %s31, 1
        %s417 = smul.u32 %s416, 4
        %p418 = scmp.lt.s32.totalorder %s417, 7
        %s419 = scalar_select %p418, %s417, 7
        %s420 = smul.u32 2, %s419
        %s421 = smul.u32 8, %s31
        %422 = vst [vmem:[#allocation2] sm:$0x1] 0.0
        %423 = vst [vmem:[#allocation2 + $0x18] sm:$0x1] 0.0
        %424 = vst [vmem:[#allocation2 + $0x30] sm:$0x1] 0.0
        %425 = vst [vmem:[#allocation2 + $0x48] sm:$0x1] 0.0
        %426 = vst [vmem:[#allocation2 + $0x60] sm:$0x1] 0.0
        %427 = vst [vmem:[#allocation2 + $0x78] sm:$0x1] 0.0
        %428 = vst [vmem:[#allocation2 + $0x90] sm:$0x1] 0.0
        %429 = vst [vmem:[#allocation2 + $0xa8] sm:$0x1] 0.0
        %430 = vst [vmem:[#allocation2 + $0xc0] sm:$0x1] 0.0
        %431 = vst [vmem:[#allocation2 + $0xd8] sm:$0x1] 0.0
        %432 = vst [vmem:[#allocation2 + $0xf0] sm:$0x1] 0.0
        %433 = vst [vmem:[#allocation2 + $0x108] sm:$0x1] 0.0
        %434 = vst [vmem:[#allocation2 + $0x11] sm:$0x1] 0.0
        %435 = vst [vmem:[#allocation2 + $0x29] sm:$0x1] 0.0
        %436 = vst [vmem:[#allocation2 + $0x41] sm:$0x1] 0.0
        %437 = vst [vmem:[#allocation2 + $0x59] sm:$0x1] 0.0
        %438 = vst [vmem:[#allocation2 + $0x71] sm:$0x1] 0.0
        %439 = vst [vmem:[#allocation2 + $0x89] sm:$0x1] 0.0
        %440 = vst [vmem:[#allocation2 + $0xa1] sm:$0x1] 0.0
        %441 = vst [vmem:[#allocation2 + $0xb9] sm:$0x1] 0.0
        %442 = vst [vmem:[#allocation2 + $0xd1] sm:$0x1] 0.0
        %443 = vst [vmem:[#allocation2 + $0xe9] sm:$0x1] 0.0
        %444 = vst [vmem:[#allocation2 + $0x101] sm:$0x1] 0.0
        %445 = vst [vmem:[#allocation2 + $0x119] sm:$0x1] 0.0
        %446 = vst [vmem:[#allocation3] sm:$0x1] 0.0
        %447 = vst [vmem:[#allocation3 + $0x18] sm:$0x1] 0.0
        %448 = vst [vmem:[#allocation3 + $0x30] sm:$0x1] 0.0
        %449 = vst [vmem:[#allocation3 + $0x48] sm:$0x1] 0.0
        %450 = vst [vmem:[#allocation3 + $0x60] sm:$0x1] 0.0
        %451 = vst [vmem:[#allocation3 + $0x78] sm:$0x1] 0.0
        %452 = vst [vmem:[#allocation3 + $0x90] sm:$0x1] 0.0
        %453 = vst [vmem:[#allocation3 + $0xa8] sm:$0x1] 0.0
        %454 = vst [vmem:[#allocation3 + $0xc0] sm:$0x1] 0.0
        %455 = vst [vmem:[#allocation3 + $0xd8] sm:$0x1] 0.0
        %456 = vst [vmem:[#allocation3 + $0xf0] sm:$0x1] 0.0
        %457 = vst [vmem:[#allocation3 + $0x108] sm:$0x1] 0.0
        %458 = vst [vmem:[#allocation3 + $0x11] sm:$0x1] 0.0
        %459 = vst [vmem:[#allocation3 + $0x29] sm:$0x1] 0.0
        %460 = vst [vmem:[#allocation3 + $0x41] sm:$0x1] 0.0
        %461 = vst [vmem:[#allocation3 + $0x59] sm:$0x1] 0.0
        %462 = vst [vmem:[#allocation3 + $0x71] sm:$0x1] 0.0
        %463 = vst [vmem:[#allocation3 + $0x89] sm:$0x1] 0.0
        %464 = vst [vmem:[#allocation3 + $0xa1] sm:$0x1] 0.0
        %465 = vst [vmem:[#allocation3 + $0xb9] sm:$0x1] 0.0
        %466 = vst [vmem:[#allocation3 + $0xd1] sm:$0x1] 0.0
        %467 = vst [vmem:[#allocation3 + $0xe9] sm:$0x1] 0.0
        %468 = vst [vmem:[#allocation3 + $0x101] sm:$0x1] 0.0
        %469 = vst [vmem:[#allocation3 + $0x119] sm:$0x1] 0.0
        %v470 = vld [vmem:[%s342] sm:$0xff]
        %v471 = vld [vmem:[%s342 + $0x8] sm:$0xff]
        %v472 = vld [vmem:[%s342 + $0x10] sm:$0xff]
        %v473 = vld [vmem:[%s342 + $0x18] sm:$0xff]
        %v474 = vld [vmem:[%s342 + $0x20] sm:$0xff]
        %v475 = vld [vmem:[%s342 + $0x28] sm:$0xff]
        %v476 = vld [vmem:[%s342 + $0x30] sm:$0xff]
        %v477 = vld [vmem:[%s342 + $0x38] sm:$0xff]
        %v478 = vld [vmem:[%s342 + $0x40] sm:$0xff]
        %v479 = vld [vmem:[%s342 + $0x48] sm:$0xff]
        %v480 = vld [vmem:[%s342 + $0x50] sm:$0xff]
        %v481 = vld [vmem:[%s342 + $0x58] sm:$0xff]
        %v482 = vld [vmem:[%s342 + $0x60] sm:$0xff]
        %v483 = vld [vmem:[%s342 + $0x68] sm:$0xff]
        %v484 = vld [vmem:[%s342 + $0x70] sm:$0xff]
        %v485 = vld [vmem:[%s342 + $0x78] sm:$0xff]
        %v486 = vmax.f32 %v470, 0.0
        %v487 = vmax.f32 %v471, 0.0
        %v488 = vmax.f32 %v472, 0.0
        %v489 = vmax.f32 %v473, 0.0
        %v490 = vmax.f32 %v474, 0.0
        %v491 = vmax.f32 %v475, 0.0
        %v492 = vmax.f32 %v476, 0.0
        %v493 = vmax.f32 %v477, 0.0
        %v494 = vmax.f32 %v478, 0.0
        %v495 = vmax.f32 %v479, 0.0
        %v496 = vmax.f32 %v480, 0.0
        %v497 = vmax.f32 %v481, 0.0
        %v498 = vmax.f32 %v482, 0.0
        %v499 = vmax.f32 %v483, 0.0
        %v500 = vmax.f32 %v484, 0.0
        %v501 = vmax.f32 %v485, 0.0
        %s502 = scalar_lea.vmem [#allocation2], 48
        %503 = vst [vmem:[%s502 + $0x1] sm:$0xff] %v486
        %504 = vst [vmem:[%s502 + $0x9] sm:$0xff] %v487
        %505 = vst [vmem:[%s502 + $0x19] sm:$0xff] %v488
        %506 = vst [vmem:[%s502 + $0x21] sm:$0xff] %v489
        %507 = vst [vmem:[%s502 + $0x31] sm:$0xff] %v490
        %508 = vst [vmem:[%s502 + $0x39] sm:$0xff] %v491
        %509 = vst [vmem:[%s502 + $0x49] sm:$0xff] %v492
        %510 = vst [vmem:[%s502 + $0x51] sm:$0xff] %v493
        %511 = vst [vmem:[%s502 + $0x61] sm:$0xff] %v494
        %512 = vst [vmem:[%s502 + $0x69] sm:$0xff] %v495
        %513 = vst [vmem:[%s502 + $0x79] sm:$0xff] %v496
        %514 = vst [vmem:[%s502 + $0x81] sm:$0xff] %v497
        %515 = vst [vmem:[%s502 + $0x91] sm:$0xff] %v498
        %516 = vst [vmem:[%s502 + $0x99] sm:$0xff] %v499
        %517 = vst [vmem:[%s502 + $0xa9] sm:$0xff] %v500
        %518 = vst [vmem:[%s502 + $0xb1] sm:$0xff] %v501
        %p519 = scmp.gt.s32.totalorder %s31, 0
        // Predicated region
        $region61: #{tpu_custom_call.1} parent=39 // pred_check
          %p520 = pneg %p519
        $region62: #{tpu_custom_call.1} parent=39 // pred_check_branch
          %522 = sbr.rel (%p520) target = $region64
        $region63: #{tpu_custom_call.1} parent=39 // pred_region
          %v523 = vld [vmem:[%s352] sm:$0xff]
          %v524 = vld [vmem:[%s352 + $0x8] sm:$0xff]
          %v525 = vld [vmem:[%s352 + $0x10] sm:$0xff]
          %v526 = vld [vmem:[%s352 + $0x18] sm:$0xff]
          %v527 = vmax.f32 %v523, 0.0
          %v528 = vmax.f32 %v524, 0.0
          %v529 = vmax.f32 %v525, 0.0
          %v530 = vmax.f32 %v526, 0.0
          %531 = vst [vmem:[#allocation2 + $0x1] sm:$0xff] %v527
          %532 = vst [vmem:[#allocation2 + $0x9] sm:$0xff] %v528
          %533 = vst [vmem:[#allocation2 + $0x19] sm:$0xff] %v529
          %534 = vst [vmem:[#allocation2 + $0x21] sm:$0xff] %v530
        $region64: #{tpu_custom_call.1} parent=39 // pred_fallthru
          _
        %p535 = scmp.eq.s32.totalorder %s31, 0
        // Predicated region
        $region65: #{tpu_custom_call.1} parent=39 // pred_check
          %p536 = pneg %p535
        $region66: #{tpu_custom_call.1} parent=39 // pred_check_branch
          %538 = sbr.rel (%p536) target = $region68
        $region67: #{tpu_custom_call.1} parent=39 // pred_region
          %539 = vst [vmem:[#allocation2 + $0x1] sm:$0xff] 0.0
          %540 = vst [vmem:[#allocation2 + $0x9] sm:$0xff] 0.0
          %541 = vst [vmem:[#allocation2 + $0x19] sm:$0xff] 0.0
          %542 = vst [vmem:[#allocation2 + $0x21] sm:$0xff] 0.0
        $region68: #{tpu_custom_call.1} parent=39 // pred_fallthru
          _
        %p543 = scmp.lt.s32.totalorder %s31, 1
        // Predicated region
        $region69: #{tpu_custom_call.1} parent=39 // pred_check
          %p544 = pneg %p543
        $region70: #{tpu_custom_call.1} parent=39 // pred_check_branch
          %546 = sbr.rel (%p544) target = $region72
        $region71: #{tpu_custom_call.1} parent=39 // pred_region
          %v547 = vld [vmem:[%s362] sm:$0xff]
          %v548 = vld [vmem:[%s362 + $0x8] sm:$0xff]
          %v549 = vld [vmem:[%s362 + $0x10] sm:$0xff]
          %v550 = vld [vmem:[%s362 + $0x18] sm:$0xff]
          %v551 = vmax.f32 %v547, 0.0
          %v552 = vmax.f32 %v548, 0.0
          %v553 = vmax.f32 %v549, 0.0
          %v554 = vmax.f32 %v550, 0.0
          %s555 = scalar_lea.vmem [#allocation2], 240
          %556 = vst [vmem:[%s555 + $0x1] sm:$0xff] %v551
          %557 = vst [vmem:[%s555 + $0x9] sm:$0xff] %v552
          %558 = vst [vmem:[%s555 + $0x19] sm:$0xff] %v553
          %559 = vst [vmem:[%s555 + $0x21] sm:$0xff] %v554
        $region72: #{tpu_custom_call.1} parent=39 // pred_fallthru
          _
        %p560 = scmp.eq.s32.totalorder %s31, 1
        // Predicated region
        $region73: #{tpu_custom_call.1} parent=39 // pred_check
          %p561 = pneg %p560
        $region74: #{tpu_custom_call.1} parent=39 // pred_check_branch
          %563 = sbr.rel (%p561) target = $region76
        $region75: #{tpu_custom_call.1} parent=39 // pred_region
          %s564 = scalar_lea.vmem [#allocation2], 240
          %565 = vst [vmem:[%s564 + $0x1] sm:$0xff] 0.0
          %566 = vst [vmem:[%s564 + $0x9] sm:$0xff] 0.0
          %567 = vst [vmem:[%s564 + $0x19] sm:$0xff] 0.0
          %568 = vst [vmem:[%s564 + $0x21] sm:$0xff] 0.0
        $region76: #{tpu_custom_call.1} parent=39 // pred_fallthru
          _
        %v569 = vld [vmem:[#allocation2] sm:$0xff]
        %v570 = vld [vmem:[#allocation2 + $0x8] sm:$0xff]
        %v571 = vld [vmem:[#allocation2 + $0x10] sm:$0x3]
        %v572 = vld [vmem:[#allocation2 + $0x18] sm:$0xff]
        %v573 = vld [vmem:[#allocation2 + $0x20] sm:$0xff]
        %v574 = vld [vmem:[#allocation2 + $0x28] sm:$0x3]
        %v575 = vld [vmem:[#allocation2 + $0x30] sm:$0xff]
        %v576 = vld [vmem:[#allocation2 + $0x38] sm:$0xff]
        %v577 = vld [vmem:[#allocation2 + $0x40] sm:$0x3]
        %v578 = vld [vmem:[#allocation2 + $0x48] sm:$0xff]
        %v579 = vld [vmem:[#allocation2 + $0x50] sm:$0xff]
        %v580 = vld [vmem:[#allocation2 + $0x58] sm:$0x3]
        %v581 = vld [vmem:[#allocation2 + $0x60] sm:$0xff]
        %v582 = vld [vmem:[#allocation2 + $0x68] sm:$0xff]
        %v583 = vld [vmem:[#allocation2 + $0x70] sm:$0x3]
        %v584 = vld [vmem:[#allocation2 + $0x78] sm:$0xff]
        %v585 = vld [vmem:[#allocation2 + $0x80] sm:$0xff]
        %v586 = vld [vmem:[#allocation2 + $0x88] sm:$0x3]
        %v587 = vld [vmem:[#allocation2 + $0x90] sm:$0xff]
        %v588 = vld [vmem:[#allocation2 + $0x98] sm:$0xff]
        %v589 = vld [vmem:[#allocation2 + $0xa0] sm:$0x3]
        %v590 = vld [vmem:[#allocation2 + $0xa8] sm:$0xff]
        %v591 = vld [vmem:[#allocation2 + $0xb0] sm:$0xff]
        %v592 = vld [vmem:[#allocation2 + $0xb8] sm:$0x3]
        %v593 = vld [vmem:[#allocation2 + $0xc0] sm:$0xff]
        %v594 = vld [vmem:[#allocation2 + $0xc8] sm:$0xff]
        %v595 = vld [vmem:[#allocation2 + $0xd0] sm:$0x3]
        %v596 = vld [vmem:[#allocation2 + $0xd8] sm:$0xff]
        %v597 = vld [vmem:[#allocation2 + $0xe0] sm:$0xff]
        %v598 = vld [vmem:[#allocation2 + $0xe8] sm:$0x3]
        %vm629 = vcmask 1046528
        %v630 = vrot.slane %v569, 1
        %v631 = vrot.slane %v570, 1
        %v632 = vsel %vm629, %v630, %v631
        %v633 = vrot.slane %v571, 1
        %v634 = vsel %vm629, %v631, %v633
        %v635 = vrot.slane %v572, 1
        %v636 = vrot.slane %v573, 1
        %v637 = vsel %vm629, %v635, %v636
        %v638 = vrot.slane %v574, 1
        %v639 = vsel %vm629, %v636, %v638
        %v640 = vrot.slane %v575, 1
        %v641 = vrot.slane %v576, 1
        %v642 = vsel %vm629, %v640, %v641
        %v643 = vrot.slane %v577, 1
        %v644 = vsel %vm629, %v641, %v643
        %v645 = vrot.slane %v578, 1
        %v646 = vrot.slane %v579, 1
        %v647 = vsel %vm629, %v645, %v646
        %v648 = vrot.slane %v580, 1
        %v649 = vsel %vm629, %v646, %v648
        %v650 = vrot.slane %v581, 1
        %v651 = vrot.slane %v582, 1
        %v652 = vsel %vm629, %v650, %v651
        %v653 = vrot.slane %v583, 1
        %v654 = vsel %vm629, %v651, %v653
        %v655 = vrot.slane %v584, 1
        %v656 = vrot.slane %v585, 1
        %v657 = vsel %vm629, %v655, %v656
        %v658 = vrot.slane %v586, 1
        %v659 = vsel %vm629, %v656, %v658
        %v660 = vrot.slane %v587, 1
        %v661 = vrot.slane %v588, 1
        %v662 = vsel %vm629, %v660, %v661
        %v663 = vrot.slane %v589, 1
        %v664 = vsel %vm629, %v661, %v663
        %v665 = vrot.slane %v590, 1
        %v666 = vrot.slane %v591, 1
        %v667 = vsel %vm629, %v665, %v666
        %v668 = vrot.slane %v592, 1
        %v669 = vsel %vm629, %v666, %v668
        %v670 = vrot.slane %v593, 1
        %v671 = vrot.slane %v594, 1
        %v672 = vsel %vm629, %v670, %v671
        %v673 = vrot.slane %v595, 1
        %v674 = vsel %vm629, %v671, %v673
        %v675 = vrot.slane %v596, 1
        %v676 = vrot.slane %v597, 1
        %v677 = vsel %vm629, %v675, %v676
        %v678 = vrot.slane %v598, 1
        %v679 = vsel %vm629, %v676, %v678
        %vm700 = vcmask 1045504
        %v701 = vrot.slane %v569, 2
        %v702 = vrot.slane %v570, 2
        %v703 = vsel %vm700, %v701, %v702
        %v704 = vrot.slane %v571, 2
        %v705 = vsel %vm700, %v702, %v704
        %v706 = vrot.slane %v572, 2
        %v707 = vrot.slane %v573, 2
        %v708 = vsel %vm700, %v706, %v707
        %v709 = vrot.slane %v574, 2
        %v710 = vsel %vm700, %v707, %v709
        %v711 = vrot.slane %v575, 2
        %v712 = vrot.slane %v576, 2
        %v713 = vsel %vm700, %v711, %v712
        %v714 = vrot.slane %v577, 2
        %v715 = vsel %vm700, %v712, %v714
        %v716 = vrot.slane %v578, 2
        %v717 = vrot.slane %v579, 2
        %v718 = vsel %vm700, %v716, %v717
        %v719 = vrot.slane %v580, 2
        %v720 = vsel %vm700, %v717, %v719
        %v721 = vrot.slane %v581, 2
        %v722 = vrot.slane %v582, 2
        %v723 = vsel %vm700, %v721, %v722
        %v724 = vrot.slane %v583, 2
        %v725 = vsel %vm700, %v722, %v724
        %v726 = vrot.slane %v584, 2
        %v727 = vrot.slane %v585, 2
        %v728 = vsel %vm700, %v726, %v727
        %v729 = vrot.slane %v586, 2
        %v730 = vsel %vm700, %v727, %v729
        %v731 = vrot.slane %v587, 2
        %v732 = vrot.slane %v588, 2
        %v733 = vsel %vm700, %v731, %v732
        %v734 = vrot.slane %v589, 2
        %v735 = vsel %vm700, %v732, %v734
        %v736 = vrot.slane %v590, 2
        %v737 = vrot.slane %v591, 2
        %v738 = vsel %vm700, %v736, %v737
        %v739 = vrot.slane %v592, 2
        %v740 = vsel %vm700, %v737, %v739
        %v741 = vrot.slane %v593, 2
        %v742 = vrot.slane %v594, 2
        %v743 = vsel %vm700, %v741, %v742
        %v744 = vrot.slane %v595, 2
        %v745 = vsel %vm700, %v742, %v744
        %v746 = vrot.slane %v596, 2
        %v747 = vrot.slane %v597, 2
        %v748 = vsel %vm700, %v746, %v747
        %v749 = vrot.slane %v598, 2
        %v750 = vsel %vm700, %v747, %v749
        %v771 = vld [vmem:[#allocation11] sm:$0xff]
        %v772 = vld [vmem:[#allocation11 + $0x8] sm:$0xff]
        %v773 = vld [vmem:[#allocation11 + $0x10] sm:$0xff]
        %v774 = vld [vmem:[#allocation11 + $0x18] sm:$0xff]
        %v775 = vld [vmem:[#allocation11 + $0x20] sm:$0xff]
        %v776 = vld [vmem:[#allocation11 + $0x28] sm:$0xff]
        %v777 = vld [vmem:[#allocation11 + $0x30] sm:$0xff]
        %v778 = vld [vmem:[#allocation11 + $0x38] sm:$0xff]
        %v779 = vld [vmem:[#allocation11 + $0x40] sm:$0xff]
        %v780 = vld [vmem:[#allocation11 + $0x48] sm:$0xff]
        %v781 = vld [vmem:[#allocation11 + $0x50] sm:$0xff]
        %v782 = vld [vmem:[#allocation11 + $0x58] sm:$0xff]
        %v783 = vld [vmem:[#allocation11 + $0x60] sm:$0xff]
        %v784 = vld [vmem:[#allocation11 + $0x68] sm:$0xff]
        %v785 = vld [vmem:[#allocation11 + $0x70] sm:$0xff]
        %v786 = vld [vmem:[#allocation11 + $0x78] sm:$0xff]
        %v787 = vld [vmem:[#allocation11 + $0x80] sm:$0xff]
        %v788 = vld [vmem:[#allocation11 + $0x88] sm:$0xff]
        %v789 = vld [vmem:[#allocation11 + $0x90] sm:$0xff]
        %v790 = vld [vmem:[#allocation11 + $0x98] sm:$0xff]
        %v791 = vld [vmem:[#allocation11 + $0xa0] sm:$0xff]
        %v792 = vld [vmem:[#allocation11 + $0xa8] sm:$0xff]
        %v793 = vld [vmem:[#allocation11 + $0xb0] sm:$0xff]
        %v794 = vld [vmem:[#allocation11 + $0xb8] sm:$0xff]
        %v795 = vld [vmem:[#allocation11 + $0xc0] sm:$0xff]
        %v796 = vld [vmem:[#allocation11 + $0xc8] sm:$0xff]
        %v797 = vld [vmem:[#allocation11 + $0xd0] sm:$0xff]
        %v798 = vld [vmem:[#allocation11 + $0xd8] sm:$0xff]
        %v799 = vld [vmem:[#allocation11 + $0xe0] sm:$0xff]
        %v800 = vld [vmem:[#allocation11 + $0xe8] sm:$0xff]
        %v801 = vld [vmem:[#allocation11 + $0xf0] sm:$0xff]
        %v802 = vld [vmem:[#allocation11 + $0xf8] sm:$0xff]
        %v803 = vld [vmem:[#allocation11 + $0x100] sm:$0xff]
        %v804 = vld [vmem:[#allocation11 + $0x108] sm:$0xff]
        %v805 = vld [vmem:[#allocation11 + $0x110] sm:$0xff]
        %v806 = vld [vmem:[#allocation11 + $0x118] sm:$0xff]
        %v807 = vld [vmem:[#allocation11 + $0x120] sm:$0xff]
        %v808 = vld [vmem:[#allocation11 + $0x128] sm:$0xff]
        %v809 = vld [vmem:[#allocation11 + $0x130] sm:$0xff]
        %v810 = vld [vmem:[#allocation11 + $0x138] sm:$0xff]
        %v811 = vld [vmem:[#allocation11 + $0x140] sm:$0xff]
        %v812 = vld [vmem:[#allocation11 + $0x148] sm:$0xff]
        %v813 = vld [vmem:[#allocation11 + $0x150] sm:$0xff]
        %v814 = vld [vmem:[#allocation11 + $0x158] sm:$0xff]
        %v815 = vld [vmem:[#allocation11 + $0x160] sm:$0xff]
        %v816 = vld [vmem:[#allocation11 + $0x168] sm:$0xff]
        %v817 = vld [vmem:[#allocation11 + $0x170] sm:$0xff]
        %v818 = vld [vmem:[#allocation11 + $0x178] sm:$0xff]
        %v819 = vld [vmem:[#allocation13] sm:$0x1]
        %v821 = vperm.slane %v819, 0
        %823 = vmatpush.msra.mxu0 %v786
        %824 = vmatpush.msra.mxu0 %v785
        %825 = vmatpush.msra.mxu0 %v784
        %826 = vmatpush.msra.mxu0 %v783
        %827 = vmatpush.msra.mxu0 %v782
        %828 = vmatpush.msra.mxu0 %v781
        %829 = vmatpush.msra.mxu0 %v780
        %830 = vmatpush.msra.mxu0 %v779
        %831 = vmatpush.msra.mxu0 %v778
        %832 = vmatpush.msra.mxu0 %v777
        %833 = vmatpush.msra.mxu0 %v776
        %834 = vmatpush.msra.mxu0 %v775
        %835 = vmatpush.msra.mxu0 %v774
        %836 = vmatpush.msra.mxu0 %v773
        %837 = vmatpush.msra.mxu0 %v772
        %838 = vmatpush.msra.mxu0 %v771
        %839 = vmatmul.f32.gmra.mxu0 %v569
        %v840 = vpop.f32.mrf.mxu0
        %v841 = vadd.f32 %v821, %v840
        %842 = vmatmul.f32.gmra.mxu0 %v570
        %v843 = vpop.f32.mrf.mxu0
        %v844 = vadd.f32 %v821, %v843
        %845 = vmatmul.f32.gmra.mxu0 %v572
        %v846 = vpop.f32.mrf.mxu0
        %v847 = vadd.f32 %v821, %v846
        %848 = vmatmul.f32.gmra.mxu0 %v573
        %v849 = vpop.f32.mrf.mxu0
        %v850 = vadd.f32 %v821, %v849
        %851 = vmatmul.f32.gmra.mxu0 %v575
        %v852 = vpop.f32.mrf.mxu0
        %v853 = vadd.f32 %v821, %v852
        %854 = vmatmul.f32.gmra.mxu0 %v576
        %v855 = vpop.f32.mrf.mxu0
        %v856 = vadd.f32 %v821, %v855
        %857 = vmatmul.f32.gmra.mxu0 %v578
        %v858 = vpop.f32.mrf.mxu0
        %v859 = vadd.f32 %v821, %v858
        %860 = vmatmul.f32.gmra.mxu0 %v579
        %v861 = vpop.f32.mrf.mxu0
        %v862 = vadd.f32 %v821, %v861
        %863 = vmatmul.f32.gmra.mxu0 %v581
        %v864 = vpop.f32.mrf.mxu0
        %v865 = vadd.f32 %v821, %v864
        %866 = vmatmul.f32.gmra.mxu0 %v582
        %v867 = vpop.f32.mrf.mxu0
        %v868 = vadd.f32 %v821, %v867
        %869 = vmatmul.f32.gmra.mxu0 %v584
        %v870 = vpop.f32.mrf.mxu0
        %v871 = vadd.f32 %v821, %v870
        %872 = vmatmul.f32.gmra.mxu0 %v585
        %v873 = vpop.f32.mrf.mxu0
        %v874 = vadd.f32 %v821, %v873
        %875 = vmatmul.f32.gmra.mxu0 %v587
        %v876 = vpop.f32.mrf.mxu0
        %v877 = vadd.f32 %v821, %v876
        %878 = vmatmul.f32.gmra.mxu0 %v588
        %v879 = vpop.f32.mrf.mxu0
        %v880 = vadd.f32 %v821, %v879
        %881 = vmatmul.f32.gmra.mxu0 %v590
        %v882 = vpop.f32.mrf.mxu0
        %v883 = vadd.f32 %v821, %v882
        %884 = vmatmul.f32.gmra.mxu0 %v591
        %v885 = vpop.f32.mrf.mxu0
        %v886 = vadd.f32 %v821, %v885
        %887 = vmatmul.f32.gmra.mxu0 %v593
        %v888 = vpop.f32.mrf.mxu0
        %v889 = vadd.f32 %v821, %v888
        %890 = vmatmul.f32.gmra.mxu0 %v594
        %v891 = vpop.f32.mrf.mxu0
        %v892 = vadd.f32 %v821, %v891
        %893 = vmatmul.f32.gmra.mxu0 %v596
        %v894 = vpop.f32.mrf.mxu0
        %v895 = vadd.f32 %v821, %v894
        %896 = vmatmul.f32.gmra.mxu0 %v597
        %v897 = vpop.f32.mrf.mxu0
        %v898 = vadd.f32 %v821, %v897
        %899 = vdwg.mxu0
        %900 = vmatpush.msra.mxu0 %v802
        %901 = vmatpush.msra.mxu0 %v801
        %902 = vmatpush.msra.mxu0 %v800
        %903 = vmatpush.msra.mxu0 %v799
        %904 = vmatpush.msra.mxu0 %v798
        %905 = vmatpush.msra.mxu0 %v797
        %906 = vmatpush.msra.mxu0 %v796
        %907 = vmatpush.msra.mxu0 %v795
        %908 = vmatpush.msra.mxu0 %v794
        %909 = vmatpush.msra.mxu0 %v793
        %910 = vmatpush.msra.mxu0 %v792
        %911 = vmatpush.msra.mxu0 %v791
        %912 = vmatpush.msra.mxu0 %v790
        %913 = vmatpush.msra.mxu0 %v789
        %914 = vmatpush.msra.mxu0 %v788
        %915 = vmatpush.msra.mxu0 %v787
        %916 = vmatmul.f32.gmra.mxu0 %v632
        %v917 = vpop.f32.mrf.mxu0
        %v918 = vadd.f32 %v841, %v917
        %919 = vmatmul.f32.gmra.mxu0 %v634
        %v920 = vpop.f32.mrf.mxu0
        %v921 = vadd.f32 %v844, %v920
        %922 = vmatmul.f32.gmra.mxu0 %v637
        %v923 = vpop.f32.mrf.mxu0
        %v924 = vadd.f32 %v847, %v923
        %925 = vmatmul.f32.gmra.mxu0 %v639
        %v926 = vpop.f32.mrf.mxu0
        %v927 = vadd.f32 %v850, %v926
        %928 = vmatmul.f32.gmra.mxu0 %v642
        %v929 = vpop.f32.mrf.mxu0
        %v930 = vadd.f32 %v853, %v929
        %931 = vmatmul.f32.gmra.mxu0 %v644
        %v932 = vpop.f32.mrf.mxu0
        %v933 = vadd.f32 %v856, %v932
        %934 = vmatmul.f32.gmra.mxu0 %v647
        %v935 = vpop.f32.mrf.mxu0
        %v936 = vadd.f32 %v859, %v935
        %937 = vmatmul.f32.gmra.mxu0 %v649
        %v938 = vpop.f32.mrf.mxu0
        %v939 = vadd.f32 %v862, %v938
        %940 = vmatmul.f32.gmra.mxu0 %v652
        %v941 = vpop.f32.mrf.mxu0
        %v942 = vadd.f32 %v865, %v941
        %943 = vmatmul.f32.gmra.mxu0 %v654
        %v944 = vpop.f32.mrf.mxu0
        %v945 = vadd.f32 %v868, %v944
        %946 = vmatmul.f32.gmra.mxu0 %v657
        %v947 = vpop.f32.mrf.mxu0
        %v948 = vadd.f32 %v871, %v947
        %949 = vmatmul.f32.gmra.mxu0 %v659
        %v950 = vpop.f32.mrf.mxu0
        %v951 = vadd.f32 %v874, %v950
        %952 = vmatmul.f32.gmra.mxu0 %v662
        %v953 = vpop.f32.mrf.mxu0
        %v954 = vadd.f32 %v877, %v953
        %955 = vmatmul.f32.gmra.mxu0 %v664
        %v956 = vpop.f32.mrf.mxu0
        %v957 = vadd.f32 %v880, %v956
        %958 = vmatmul.f32.gmra.mxu0 %v667
        %v959 = vpop.f32.mrf.mxu0
        %v960 = vadd.f32 %v883, %v959
        %961 = vmatmul.f32.gmra.mxu0 %v669
        %v962 = vpop.f32.mrf.mxu0
        %v963 = vadd.f32 %v886, %v962
        %964 = vmatmul.f32.gmra.mxu0 %v672
        %v965 = vpop.f32.mrf.mxu0
        %v966 = vadd.f32 %v889, %v965
        %967 = vmatmul.f32.gmra.mxu0 %v674
        %v968 = vpop.f32.mrf.mxu0
        %v969 = vadd.f32 %v892, %v968
        %970 = vmatmul.f32.gmra.mxu0 %v677
        %v971 = vpop.f32.mrf.mxu0
        %v972 = vadd.f32 %v895, %v971
        %973 = vmatmul.f32.gmra.mxu0 %v679
        %v974 = vpop.f32.mrf.mxu0
        %v975 = vadd.f32 %v898, %v974
        %976 = vdwg.mxu0
        %977 = vmatpush.msra.mxu0 %v818
        %978 = vmatpush.msra.mxu0 %v817
        %979 = vmatpush.msra.mxu0 %v816
        %980 = vmatpush.msra.mxu0 %v815
        %981 = vmatpush.msra.mxu0 %v814
        %982 = vmatpush.msra.mxu0 %v813
        %983 = vmatpush.msra.mxu0 %v812
        %984 = vmatpush.msra.mxu0 %v811
        %985 = vmatpush.msra.mxu0 %v810
        %986 = vmatpush.msra.mxu0 %v809
        %987 = vmatpush.msra.mxu0 %v808
        %988 = vmatpush.msra.mxu0 %v807
        %989 = vmatpush.msra.mxu0 %v806
        %990 = vmatpush.msra.mxu0 %v805
        %991 = vmatpush.msra.mxu0 %v804
        %992 = vmatpush.msra.mxu0 %v803
        %993 = vmatmul.f32.gmra.mxu0 %v703
        %v994 = vpop.f32.mrf.mxu0
        %v995 = vadd.f32 %v918, %v994
        %996 = vmatmul.f32.gmra.mxu0 %v705
        %v997 = vpop.f32.mrf.mxu0
        %v998 = vadd.f32 %v921, %v997
        %999 = vmatmul.f32.gmra.mxu0 %v708
        %v1000 = vpop.f32.mrf.mxu0
        %v1001 = vadd.f32 %v924, %v1000
        %1002 = vmatmul.f32.gmra.mxu0 %v710
        %v1003 = vpop.f32.mrf.mxu0
        %v1004 = vadd.f32 %v927, %v1003
        %1005 = vmatmul.f32.gmra.mxu0 %v713
        %v1006 = vpop.f32.mrf.mxu0
        %v1007 = vadd.f32 %v930, %v1006
        %1008 = vmatmul.f32.gmra.mxu0 %v715
        %v1009 = vpop.f32.mrf.mxu0
        %v1010 = vadd.f32 %v933, %v1009
        %1011 = vmatmul.f32.gmra.mxu0 %v718
        %v1012 = vpop.f32.mrf.mxu0
        %v1013 = vadd.f32 %v936, %v1012
        %1014 = vmatmul.f32.gmra.mxu0 %v720
        %v1015 = vpop.f32.mrf.mxu0
        %v1016 = vadd.f32 %v939, %v1015
        %1017 = vmatmul.f32.gmra.mxu0 %v723
        %v1018 = vpop.f32.mrf.mxu0
        %v1019 = vadd.f32 %v942, %v1018
        %1020 = vmatmul.f32.gmra.mxu0 %v725
        %v1021 = vpop.f32.mrf.mxu0
        %v1022 = vadd.f32 %v945, %v1021
        %1023 = vmatmul.f32.gmra.mxu0 %v728
        %v1024 = vpop.f32.mrf.mxu0
        %v1025 = vadd.f32 %v948, %v1024
        %1026 = vmatmul.f32.gmra.mxu0 %v730
        %v1027 = vpop.f32.mrf.mxu0
        %v1028 = vadd.f32 %v951, %v1027
        %1029 = vmatmul.f32.gmra.mxu0 %v733
        %v1030 = vpop.f32.mrf.mxu0
        %v1031 = vadd.f32 %v954, %v1030
        %1032 = vmatmul.f32.gmra.mxu0 %v735
        %v1033 = vpop.f32.mrf.mxu0
        %v1034 = vadd.f32 %v957, %v1033
        %1035 = vmatmul.f32.gmra.mxu0 %v738
        %v1036 = vpop.f32.mrf.mxu0
        %v1037 = vadd.f32 %v960, %v1036
        %1038 = vmatmul.f32.gmra.mxu0 %v740
        %v1039 = vpop.f32.mrf.mxu0
        %v1040 = vadd.f32 %v963, %v1039
        %1041 = vmatmul.f32.gmra.mxu0 %v743
        %v1042 = vpop.f32.mrf.mxu0
        %v1043 = vadd.f32 %v966, %v1042
        %1044 = vmatmul.f32.gmra.mxu0 %v745
        %v1045 = vpop.f32.mrf.mxu0
        %v1046 = vadd.f32 %v969, %v1045
        %1047 = vmatmul.f32.gmra.mxu0 %v748
        %v1048 = vpop.f32.mrf.mxu0
        %v1049 = vadd.f32 %v972, %v1048
        %1050 = vmatmul.f32.gmra.mxu0 %v750
        %v1051 = vpop.f32.mrf.mxu0
        %v1052 = vadd.f32 %v975, %v1051
        %1053 = vdwg.mxu0
        %1054 = vst [vmem:[#allocation4] sm:$0xff] %v995
        %1055 = vst [vmem:[#allocation4 + $0x8] sm:$0xff] %v998
        %1056 = vst [vmem:[#allocation4 + $0x10] sm:$0xff] %v1001
        %1057 = vst [vmem:[#allocation4 + $0x18] sm:$0xff] %v1004
        %1058 = vst [vmem:[#allocation4 + $0x20] sm:$0xff] %v1007
        %1059 = vst [vmem:[#allocation4 + $0x28] sm:$0xff] %v1010
        %1060 = vst [vmem:[#allocation4 + $0x30] sm:$0xff] %v1013
        %1061 = vst [vmem:[#allocation4 + $0x38] sm:$0xff] %v1016
        %1062 = vst [vmem:[#allocation4 + $0x40] sm:$0xff] %v1019
        %1063 = vst [vmem:[#allocation4 + $0x48] sm:$0xff] %v1022
        %1064 = vst [vmem:[#allocation4 + $0x50] sm:$0xff] %v1025
        %1065 = vst [vmem:[#allocation4 + $0x58] sm:$0xff] %v1028
        %1066 = vst [vmem:[#allocation4 + $0x60] sm:$0xff] %v1031
        %1067 = vst [vmem:[#allocation4 + $0x68] sm:$0xff] %v1034
        %1068 = vst [vmem:[#allocation4 + $0x70] sm:$0xff] %v1037
        %1069 = vst [vmem:[#allocation4 + $0x78] sm:$0xff] %v1040
        %1070 = vst [vmem:[#allocation4 + $0x80] sm:$0xff] %v1043
        %1071 = vst [vmem:[#allocation4 + $0x88] sm:$0xff] %v1046
        %1072 = vst [vmem:[#allocation4 + $0x90] sm:$0xff] %v1049
        %1073 = vst [vmem:[#allocation4 + $0x98] sm:$0xff] %v1052
        %s1074 = scalar_lea.vmem [#allocation2], 24
        %v1075 = vld [vmem:[%s1074] sm:$0xff]
        %v1076 = vld [vmem:[%s1074 + $0x8] sm:$0xff]
        %v1077 = vld [vmem:[%s1074 + $0x10] sm:$0x3]
        %v1078 = vld [vmem:[%s1074 + $0x18] sm:$0xff]
        %v1079 = vld [vmem:[%s1074 + $0x20] sm:$0xff]
        %v1080 = vld [vmem:[%s1074 + $0x28] sm:$0x3]
        %v1081 = vld [vmem:[%s1074 + $0x30] sm:$0xff]
        %v1082 = vld [vmem:[%s1074 + $0x38] sm:$0xff]
        %v1083 = vld [vmem:[%s1074 + $0x40] sm:$0x3]
        %v1084 = vld [vmem:[%s1074 + $0x48] sm:$0xff]
        %v1085 = vld [vmem:[%s1074 + $0x50] sm:$0xff]
        %v1086 = vld [vmem:[%s1074 + $0x58] sm:$0x3]
        %v1087 = vld [vmem:[%s1074 + $0x60] sm:$0xff]
        %v1088 = vld [vmem:[%s1074 + $0x68] sm:$0xff]
        %v1089 = vld [vmem:[%s1074 + $0x70] sm:$0x3]
        %v1090 = vld [vmem:[%s1074 + $0x78] sm:$0xff]
        %v1091 = vld [vmem:[%s1074 + $0x80] sm:$0xff]
        %v1092 = vld [vmem:[%s1074 + $0x88] sm:$0x3]
        %v1093 = vld [vmem:[%s1074 + $0x90] sm:$0xff]
        %v1094 = vld [vmem:[%s1074 + $0x98] sm:$0xff]
        %v1095 = vld [vmem:[%s1074 + $0xa0] sm:$0x3]
        %v1096 = vld [vmem:[%s1074 + $0xa8] sm:$0xff]
        %v1097 = vld [vmem:[%s1074 + $0xb0] sm:$0xff]
        %v1098 = vld [vmem:[%s1074 + $0xb8] sm:$0x3]
        %v1099 = vld [vmem:[%s1074 + $0xc0] sm:$0xff]
        %v1100 = vld [vmem:[%s1074 + $0xc8] sm:$0xff]
        %v1101 = vld [vmem:[%s1074 + $0xd0] sm:$0x3]
        %v1102 = vld [vmem:[%s1074 + $0xd8] sm:$0xff]
        %v1103 = vld [vmem:[%s1074 + $0xe0] sm:$0xff]
        %v1104 = vld [vmem:[%s1074 + $0xe8] sm:$0x3]
        %v1135 = vrot.slane %v1075, 1
        %v1136 = vrot.slane %v1076, 1
        %v1137 = vsel %vm629, %v1135, %v1136
        %v1138 = vrot.slane %v1077, 1
        %v1139 = vsel %vm629, %v1136, %v1138
        %v1140 = vrot.slane %v1078, 1
        %v1141 = vrot.slane %v1079, 1
        %v1142 = vsel %vm629, %v1140, %v1141
        %v1143 = vrot.slane %v1080, 1
        %v1144 = vsel %vm629, %v1141, %v1143
        %v1145 = vrot.slane %v1081, 1
        %v1146 = vrot.slane %v1082, 1
        %v1147 = vsel %vm629, %v1145, %v1146
        %v1148 = vrot.slane %v1083, 1
        %v1149 = vsel %vm629, %v1146, %v1148
        %v1150 = vrot.slane %v1084, 1
        %v1151 = vrot.slane %v1085, 1
        %v1152 = vsel %vm629, %v1150, %v1151
        %v1153 = vrot.slane %v1086, 1
        %v1154 = vsel %vm629, %v1151, %v1153
        %v1155 = vrot.slane %v1087, 1
        %v1156 = vrot.slane %v1088, 1
        %v1157 = vsel %vm629, %v1155, %v1156
        %v1158 = vrot.slane %v1089, 1
        %v1159 = vsel %vm629, %v1156, %v1158
        %v1160 = vrot.slane %v1090, 1
        %v1161 = vrot.slane %v1091, 1
        %v1162 = vsel %vm629, %v1160, %v1161
        %v1163 = vrot.slane %v1092, 1
        %v1164 = vsel %vm629, %v1161, %v1163
        %v1165 = vrot.slane %v1093, 1
        %v1166 = vrot.slane %v1094, 1
        %v1167 = vsel %vm629, %v1165, %v1166
        %v1168 = vrot.slane %v1095, 1
        %v1169 = vsel %vm629, %v1166, %v1168
        %v1170 = vrot.slane %v1096, 1
        %v1171 = vrot.slane %v1097, 1
        %v1172 = vsel %vm629, %v1170, %v1171
        %v1173 = vrot.slane %v1098, 1
        %v1174 = vsel %vm629, %v1171, %v1173
        %v1175 = vrot.slane %v1099, 1
        %v1176 = vrot.slane %v1100, 1
        %v1177 = vsel %vm629, %v1175, %v1176
        %v1178 = vrot.slane %v1101, 1
        %v1179 = vsel %vm629, %v1176, %v1178
        %v1180 = vrot.slane %v1102, 1
        %v1181 = vrot.slane %v1103, 1
        %v1182 = vsel %vm629, %v1180, %v1181
        %v1183 = vrot.slane %v1104, 1
        %v1184 = vsel %vm629, %v1181, %v1183
        %v1205 = vrot.slane %v1075, 2
        %v1206 = vrot.slane %v1076, 2
        %v1207 = vsel %vm700, %v1205, %v1206
        %v1208 = vrot.slane %v1077, 2
        %v1209 = vsel %vm700, %v1206, %v1208
        %v1210 = vrot.slane %v1078, 2
        %v1211 = vrot.slane %v1079, 2
        %v1212 = vsel %vm700, %v1210, %v1211
        %v1213 = vrot.slane %v1080, 2
        %v1214 = vsel %vm700, %v1211, %v1213
        %v1215 = vrot.slane %v1081, 2
        %v1216 = vrot.slane %v1082, 2
        %v1217 = vsel %vm700, %v1215, %v1216
        %v1218 = vrot.slane %v1083, 2
        %v1219 = vsel %vm700, %v1216, %v1218
        %v1220 = vrot.slane %v1084, 2
        %v1221 = vrot.slane %v1085, 2
        %v1222 = vsel %vm700, %v1220, %v1221
        %v1223 = vrot.slane %v1086, 2
        %v1224 = vsel %vm700, %v1221, %v1223
        %v1225 = vrot.slane %v1087, 2
        %v1226 = vrot.slane %v1088, 2
        %v1227 = vsel %vm700, %v1225, %v1226
        %v1228 = vrot.slane %v1089, 2
        %v1229 = vsel %vm700, %v1226, %v1228
        %v1230 = vrot.slane %v1090, 2
        %v1231 = vrot.slane %v1091, 2
        %v1232 = vsel %vm700, %v1230, %v1231
        %v1233 = vrot.slane %v1092, 2
        %v1234 = vsel %vm700, %v1231, %v1233
        %v1235 = vrot.slane %v1093, 2
        %v1236 = vrot.slane %v1094, 2
        %v1237 = vsel %vm700, %v1235, %v1236
        %v1238 = vrot.slane %v1095, 2
        %v1239 = vsel %vm700, %v1236, %v1238
        %v1240 = vrot.slane %v1096, 2
        %v1241 = vrot.slane %v1097, 2
        %v1242 = vsel %vm700, %v1240, %v1241
        %v1243 = vrot.slane %v1098, 2
        %v1244 = vsel %vm700, %v1241, %v1243
        %v1245 = vrot.slane %v1099, 2
        %v1246 = vrot.slane %v1100, 2
        %v1247 = vsel %vm700, %v1245, %v1246
        %v1248 = vrot.slane %v1101, 2
        %v1249 = vsel %vm700, %v1246, %v1248
        %v1250 = vrot.slane %v1102, 2
        %v1251 = vrot.slane %v1103, 2
        %v1252 = vsel %vm700, %v1250, %v1251
        %v1253 = vrot.slane %v1104, 2
        %v1254 = vsel %vm700, %v1251, %v1253
        %s1275 = scalar_lea.vmem [#allocation11], 384
        %v1276 = vld [vmem:[%s1275] sm:$0xff]
        %v1277 = vld [vmem:[%s1275 + $0x8] sm:$0xff]
        %v1278 = vld [vmem:[%s1275 + $0x10] sm:$0xff]
        %v1279 = vld [vmem:[%s1275 + $0x18] sm:$0xff]
        %v1280 = vld [vmem:[%s1275 + $0x20] sm:$0xff]
        %v1281 = vld [vmem:[%s1275 + $0x28] sm:$0xff]
        %v1282 = vld [vmem:[%s1275 + $0x30] sm:$0xff]
        %v1283 = vld [vmem:[%s1275 + $0x38] sm:$0xff]
        %v1284 = vld [vmem:[%s1275 + $0x40] sm:$0xff]
        %v1285 = vld [vmem:[%s1275 + $0x48] sm:$0xff]
        %v1286 = vld [vmem:[%s1275 + $0x50] sm:$0xff]
        %v1287 = vld [vmem:[%s1275 + $0x58] sm:$0xff]
        %v1288 = vld [vmem:[%s1275 + $0x60] sm:$0xff]
        %v1289 = vld [vmem:[%s1275 + $0x68] sm:$0xff]
        %v1290 = vld [vmem:[%s1275 + $0x70] sm:$0xff]
        %v1291 = vld [vmem:[%s1275 + $0x78] sm:$0xff]
        %v1292 = vld [vmem:[%s1275 + $0x80] sm:$0xff]
        %v1293 = vld [vmem:[%s1275 + $0x88] sm:$0xff]
        %v1294 = vld [vmem:[%s1275 + $0x90] sm:$0xff]
        %v1295 = vld [vmem:[%s1275 + $0x98] sm:$0xff]
        %v1296 = vld [vmem:[%s1275 + $0xa0] sm:$0xff]
        %v1297 = vld [vmem:[%s1275 + $0xa8] sm:$0xff]
        %v1298 = vld [vmem:[%s1275 + $0xb0] sm:$0xff]
        %v1299 = vld [vmem:[%s1275 + $0xb8] sm:$0xff]
        %v1300 = vld [vmem:[%s1275 + $0xc0] sm:$0xff]
        %v1301 = vld [vmem:[%s1275 + $0xc8] sm:$0xff]
        %v1302 = vld [vmem:[%s1275 + $0xd0] sm:$0xff]
        %v1303 = vld [vmem:[%s1275 + $0xd8] sm:$0xff]
        %v1304 = vld [vmem:[%s1275 + $0xe0] sm:$0xff]
        %v1305 = vld [vmem:[%s1275 + $0xe8] sm:$0xff]
        %v1306 = vld [vmem:[%s1275 + $0xf0] sm:$0xff]
        %v1307 = vld [vmem:[%s1275 + $0xf8] sm:$0xff]
        %v1308 = vld [vmem:[%s1275 + $0x100] sm:$0xff]
        %v1309 = vld [vmem:[%s1275 + $0x108] sm:$0xff]
        %v1310 = vld [vmem:[%s1275 + $0x110] sm:$0xff]
        %v1311 = vld [vmem:[%s1275 + $0x118] sm:$0xff]
        %v1312 = vld [vmem:[%s1275 + $0x120] sm:$0xff]
        %v1313 = vld [vmem:[%s1275 + $0x128] sm:$0xff]
        %v1314 = vld [vmem:[%s1275 + $0x130] sm:$0xff]
        %v1315 = vld [vmem:[%s1275 + $0x138] sm:$0xff]
        %v1316 = vld [vmem:[%s1275 + $0x140] sm:$0xff]
        %v1317 = vld [vmem:[%s1275 + $0x148] sm:$0xff]
        %v1318 = vld [vmem:[%s1275 + $0x150] sm:$0xff]
        %v1319 = vld [vmem:[%s1275 + $0x158] sm:$0xff]
        %v1320 = vld [vmem:[%s1275 + $0x160] sm:$0xff]
        %v1321 = vld [vmem:[%s1275 + $0x168] sm:$0xff]
        %v1322 = vld [vmem:[%s1275 + $0x170] sm:$0xff]
        %v1323 = vld [vmem:[%s1275 + $0x178] sm:$0xff]
        %1324 = vmatpush.msra.mxu0 %v1291
        %1325 = vmatpush.msra.mxu0 %v1290
        %1326 = vmatpush.msra.mxu0 %v1289
        %1327 = vmatpush.msra.mxu0 %v1288
        %1328 = vmatpush.msra.mxu0 %v1287
        %1329 = vmatpush.msra.mxu0 %v1286
        %1330 = vmatpush.msra.mxu0 %v1285
        %1331 = vmatpush.msra.mxu0 %v1284
        %1332 = vmatpush.msra.mxu0 %v1283
        %1333 = vmatpush.msra.mxu0 %v1282
        %1334 = vmatpush.msra.mxu0 %v1281
        %1335 = vmatpush.msra.mxu0 %v1280
        %1336 = vmatpush.msra.mxu0 %v1279
        %1337 = vmatpush.msra.mxu0 %v1278
        %1338 = vmatpush.msra.mxu0 %v1277
        %1339 = vmatpush.msra.mxu0 %v1276
        %1340 = vmatmul.f32.gmra.mxu0 %v1075
        %v1341 = vpop.f32.mrf.mxu0
        %v1342 = vadd.f32 0.0, %v1341
        %1343 = vmatmul.f32.gmra.mxu0 %v1076
        %v1344 = vpop.f32.mrf.mxu0
        %v1345 = vadd.f32 0.0, %v1344
        %1346 = vmatmul.f32.gmra.mxu0 %v1078
        %v1347 = vpop.f32.mrf.mxu0
        %v1348 = vadd.f32 0.0, %v1347
        %1349 = vmatmul.f32.gmra.mxu0 %v1079
        %v1350 = vpop.f32.mrf.mxu0
        %v1351 = vadd.f32 0.0, %v1350
        %1352 = vmatmul.f32.gmra.mxu0 %v1081
        %v1353 = vpop.f32.mrf.mxu0
        %v1354 = vadd.f32 0.0, %v1353
        %1355 = vmatmul.f32.gmra.mxu0 %v1082
        %v1356 = vpop.f32.mrf.mxu0
        %v1357 = vadd.f32 0.0, %v1356
        %1358 = vmatmul.f32.gmra.mxu0 %v1084
        %v1359 = vpop.f32.mrf.mxu0
        %v1360 = vadd.f32 0.0, %v1359
        %1361 = vmatmul.f32.gmra.mxu0 %v1085
        %v1362 = vpop.f32.mrf.mxu0
        %v1363 = vadd.f32 0.0, %v1362
        %1364 = vmatmul.f32.gmra.mxu0 %v1087
        %v1365 = vpop.f32.mrf.mxu0
        %v1366 = vadd.f32 0.0, %v1365
        %1367 = vmatmul.f32.gmra.mxu0 %v1088
        %v1368 = vpop.f32.mrf.mxu0
        %v1369 = vadd.f32 0.0, %v1368
        %1370 = vmatmul.f32.gmra.mxu0 %v1090
        %v1371 = vpop.f32.mrf.mxu0
        %v1372 = vadd.f32 0.0, %v1371
        %1373 = vmatmul.f32.gmra.mxu0 %v1091
        %v1374 = vpop.f32.mrf.mxu0
        %v1375 = vadd.f32 0.0, %v1374
        %1376 = vmatmul.f32.gmra.mxu0 %v1093
        %v1377 = vpop.f32.mrf.mxu0
        %v1378 = vadd.f32 0.0, %v1377
        %1379 = vmatmul.f32.gmra.mxu0 %v1094
        %v1380 = vpop.f32.mrf.mxu0
        %v1381 = vadd.f32 0.0, %v1380
        %1382 = vmatmul.f32.gmra.mxu0 %v1096
        %v1383 = vpop.f32.mrf.mxu0
        %v1384 = vadd.f32 0.0, %v1383
        %1385 = vmatmul.f32.gmra.mxu0 %v1097
        %v1386 = vpop.f32.mrf.mxu0
        %v1387 = vadd.f32 0.0, %v1386
        %1388 = vmatmul.f32.gmra.mxu0 %v1099
        %v1389 = vpop.f32.mrf.mxu0
        %v1390 = vadd.f32 0.0, %v1389
        %1391 = vmatmul.f32.gmra.mxu0 %v1100
        %v1392 = vpop.f32.mrf.mxu0
        %v1393 = vadd.f32 0.0, %v1392
        %1394 = vmatmul.f32.gmra.mxu0 %v1102
        %v1395 = vpop.f32.mrf.mxu0
        %v1396 = vadd.f32 0.0, %v1395
        %1397 = vmatmul.f32.gmra.mxu0 %v1103
        %v1398 = vpop.f32.mrf.mxu0
        %v1399 = vadd.f32 0.0, %v1398
        %1400 = vdwg.mxu0
        %1401 = vmatpush.msra.mxu0 %v1307
        %1402 = vmatpush.msra.mxu0 %v1306
        %1403 = vmatpush.msra.mxu0 %v1305
        %1404 = vmatpush.msra.mxu0 %v1304
        %1405 = vmatpush.msra.mxu0 %v1303
        %1406 = vmatpush.msra.mxu0 %v1302
        %1407 = vmatpush.msra.mxu0 %v1301
        %1408 = vmatpush.msra.mxu0 %v1300
        %1409 = vmatpush.msra.mxu0 %v1299
        %1410 = vmatpush.msra.mxu0 %v1298
        %1411 = vmatpush.msra.mxu0 %v1297
        %1412 = vmatpush.msra.mxu0 %v1296
        %1413 = vmatpush.msra.mxu0 %v1295
        %1414 = vmatpush.msra.mxu0 %v1294
        %1415 = vmatpush.msra.mxu0 %v1293
        %1416 = vmatpush.msra.mxu0 %v1292
        %1417 = vmatmul.f32.gmra.mxu0 %v1137
        %v1418 = vpop.f32.mrf.mxu0
        %v1419 = vadd.f32 %v1342, %v1418
        %1420 = vmatmul.f32.gmra.mxu0 %v1139
        %v1421 = vpop.f32.mrf.mxu0
        %v1422 = vadd.f32 %v1345, %v1421
        %1423 = vmatmul.f32.gmra.mxu0 %v1142
        %v1424 = vpop.f32.mrf.mxu0
        %v1425 = vadd.f32 %v1348, %v1424
        %1426 = vmatmul.f32.gmra.mxu0 %v1144
        %v1427 = vpop.f32.mrf.mxu0
        %v1428 = vadd.f32 %v1351, %v1427
        %1429 = vmatmul.f32.gmra.mxu0 %v1147
        %v1430 = vpop.f32.mrf.mxu0
        %v1431 = vadd.f32 %v1354, %v1430
        %1432 = vmatmul.f32.gmra.mxu0 %v1149
        %v1433 = vpop.f32.mrf.mxu0
        %v1434 = vadd.f32 %v1357, %v1433
        %1435 = vmatmul.f32.gmra.mxu0 %v1152
        %v1436 = vpop.f32.mrf.mxu0
        %v1437 = vadd.f32 %v1360, %v1436
        %1438 = vmatmul.f32.gmra.mxu0 %v1154
        %v1439 = vpop.f32.mrf.mxu0
        %v1440 = vadd.f32 %v1363, %v1439
        %1441 = vmatmul.f32.gmra.mxu0 %v1157
        %v1442 = vpop.f32.mrf.mxu0
        %v1443 = vadd.f32 %v1366, %v1442
        %1444 = vmatmul.f32.gmra.mxu0 %v1159
        %v1445 = vpop.f32.mrf.mxu0
        %v1446 = vadd.f32 %v1369, %v1445
        %1447 = vmatmul.f32.gmra.mxu0 %v1162
        %v1448 = vpop.f32.mrf.mxu0
        %v1449 = vadd.f32 %v1372, %v1448
        %1450 = vmatmul.f32.gmra.mxu0 %v1164
        %v1451 = vpop.f32.mrf.mxu0
        %v1452 = vadd.f32 %v1375, %v1451
        %1453 = vmatmul.f32.gmra.mxu0 %v1167
        %v1454 = vpop.f32.mrf.mxu0
        %v1455 = vadd.f32 %v1378, %v1454
        %1456 = vmatmul.f32.gmra.mxu0 %v1169
        %v1457 = vpop.f32.mrf.mxu0
        %v1458 = vadd.f32 %v1381, %v1457
        %1459 = vmatmul.f32.gmra.mxu0 %v1172
        %v1460 = vpop.f32.mrf.mxu0
        %v1461 = vadd.f32 %v1384, %v1460
        %1462 = vmatmul.f32.gmra.mxu0 %v1174
        %v1463 = vpop.f32.mrf.mxu0
        %v1464 = vadd.f32 %v1387, %v1463
        %1465 = vmatmul.f32.gmra.mxu0 %v1177
        %v1466 = vpop.f32.mrf.mxu0
        %v1467 = vadd.f32 %v1390, %v1466
        %1468 = vmatmul.f32.gmra.mxu0 %v1179
        %v1469 = vpop.f32.mrf.mxu0
        %v1470 = vadd.f32 %v1393, %v1469
        %1471 = vmatmul.f32.gmra.mxu0 %v1182
        %v1472 = vpop.f32.mrf.mxu0
        %v1473 = vadd.f32 %v1396, %v1472
        %1474 = vmatmul.f32.gmra.mxu0 %v1184
        %v1475 = vpop.f32.mrf.mxu0
        %v1476 = vadd.f32 %v1399, %v1475
        %1477 = vdwg.mxu0
        %1478 = vmatpush.msra.mxu0 %v1323
        %1479 = vmatpush.msra.mxu0 %v1322
        %1480 = vmatpush.msra.mxu0 %v1321
        %1481 = vmatpush.msra.mxu0 %v1320
        %1482 = vmatpush.msra.mxu0 %v1319
        %1483 = vmatpush.msra.mxu0 %v1318
        %1484 = vmatpush.msra.mxu0 %v1317
        %1485 = vmatpush.msra.mxu0 %v1316
        %1486 = vmatpush.msra.mxu0 %v1315
        %1487 = vmatpush.msra.mxu0 %v1314
        %1488 = vmatpush.msra.mxu0 %v1313
        %1489 = vmatpush.msra.mxu0 %v1312
        %1490 = vmatpush.msra.mxu0 %v1311
        %1491 = vmatpush.msra.mxu0 %v1310
        %1492 = vmatpush.msra.mxu0 %v1309
        %1493 = vmatpush.msra.mxu0 %v1308
        %1494 = vmatmul.f32.gmra.mxu0 %v1207
        %v1495 = vpop.f32.mrf.mxu0
        %v1496 = vadd.f32 %v1419, %v1495
        %1497 = vmatmul.f32.gmra.mxu0 %v1209
        %v1498 = vpop.f32.mrf.mxu0
        %v1499 = vadd.f32 %v1422, %v1498
        %1500 = vmatmul.f32.gmra.mxu0 %v1212
        %v1501 = vpop.f32.mrf.mxu0
        %v1502 = vadd.f32 %v1425, %v1501
        %1503 = vmatmul.f32.gmra.mxu0 %v1214
        %v1504 = vpop.f32.mrf.mxu0
        %v1505 = vadd.f32 %v1428, %v1504
        %1506 = vmatmul.f32.gmra.mxu0 %v1217
        %v1507 = vpop.f32.mrf.mxu0
        %v1508 = vadd.f32 %v1431, %v1507
        %1509 = vmatmul.f32.gmra.mxu0 %v1219
        %v1510 = vpop.f32.mrf.mxu0
        %v1511 = vadd.f32 %v1434, %v1510
        %1512 = vmatmul.f32.gmra.mxu0 %v1222
        %v1513 = vpop.f32.mrf.mxu0
        %v1514 = vadd.f32 %v1437, %v1513
        %1515 = vmatmul.f32.gmra.mxu0 %v1224
        %v1516 = vpop.f32.mrf.mxu0
        %v1517 = vadd.f32 %v1440, %v1516
        %1518 = vmatmul.f32.gmra.mxu0 %v1227
        %v1519 = vpop.f32.mrf.mxu0
        %v1520 = vadd.f32 %v1443, %v1519
        %1521 = vmatmul.f32.gmra.mxu0 %v1229
        %v1522 = vpop.f32.mrf.mxu0
        %v1523 = vadd.f32 %v1446, %v1522
        %1524 = vmatmul.f32.gmra.mxu0 %v1232
        %v1525 = vpop.f32.mrf.mxu0
        %v1526 = vadd.f32 %v1449, %v1525
        %1527 = vmatmul.f32.gmra.mxu0 %v1234
        %v1528 = vpop.f32.mrf.mxu0
        %v1529 = vadd.f32 %v1452, %v1528
        %1530 = vmatmul.f32.gmra.mxu0 %v1237
        %v1531 = vpop.f32.mrf.mxu0
        %v1532 = vadd.f32 %v1455, %v1531
        %1533 = vmatmul.f32.gmra.mxu0 %v1239
        %v1534 = vpop.f32.mrf.mxu0
        %v1535 = vadd.f32 %v1458, %v1534
        %1536 = vmatmul.f32.gmra.mxu0 %v1242
        %v1537 = vpop.f32.mrf.mxu0
        %v1538 = vadd.f32 %v1461, %v1537
        %1539 = vmatmul.f32.gmra.mxu0 %v1244
        %v1540 = vpop.f32.mrf.mxu0
        %v1541 = vadd.f32 %v1464, %v1540
        %1542 = vmatmul.f32.gmra.mxu0 %v1247
        %v1543 = vpop.f32.mrf.mxu0
        %v1544 = vadd.f32 %v1467, %v1543
        %1545 = vmatmul.f32.gmra.mxu0 %v1249
        %v1546 = vpop.f32.mrf.mxu0
        %v1547 = vadd.f32 %v1470, %v1546
        %1548 = vmatmul.f32.gmra.mxu0 %v1252
        %v1549 = vpop.f32.mrf.mxu0
        %v1550 = vadd.f32 %v1473, %v1549
        %1551 = vmatmul.f32.gmra.mxu0 %v1254
        %v1552 = vpop.f32.mrf.mxu0
        %v1553 = vadd.f32 %v1476, %v1552
        %1554 = vdwg.mxu0
        %v1555 = vld [vmem:[#allocation4] sm:$0xff]
        %v1556 = vld [vmem:[#allocation4 + $0x8] sm:$0xff]
        %v1557 = vld [vmem:[#allocation4 + $0x10] sm:$0xff]
        %v1558 = vld [vmem:[#allocation4 + $0x18] sm:$0xff]
        %v1559 = vld [vmem:[#allocation4 + $0x20] sm:$0xff]
        %v1560 = vld [vmem:[#allocation4 + $0x28] sm:$0xff]
        %v1561 = vld [vmem:[#allocation4 + $0x30] sm:$0xff]
        %v1562 = vld [vmem:[#allocation4 + $0x38] sm:$0xff]
        %v1563 = vld [vmem:[#allocation4 + $0x40] sm:$0xff]
        %v1564 = vld [vmem:[#allocation4 + $0x48] sm:$0xff]
        %v1565 = vld [vmem:[#allocation4 + $0x50] sm:$0xff]
        %v1566 = vld [vmem:[#allocation4 + $0x58] sm:$0xff]
        %v1567 = vld [vmem:[#allocation4 + $0x60] sm:$0xff]
        %v1568 = vld [vmem:[#allocation4 + $0x68] sm:$0xff]
        %v1569 = vld [vmem:[#allocation4 + $0x70] sm:$0xff]
        %v1570 = vld [vmem:[#allocation4 + $0x78] sm:$0xff]
        %v1571 = vld [vmem:[#allocation4 + $0x80] sm:$0xff]
        %v1572 = vld [vmem:[#allocation4 + $0x88] sm:$0xff]
        %v1573 = vld [vmem:[#allocation4 + $0x90] sm:$0xff]
        %v1574 = vld [vmem:[#allocation4 + $0x98] sm:$0xff]
        %v1575 = vadd.f32 %v1555, %v1496
        %v1576 = vadd.f32 %v1556, %v1499
        %v1577 = vadd.f32 %v1557, %v1502
        %v1578 = vadd.f32 %v1558, %v1505
        %v1579 = vadd.f32 %v1559, %v1508
        %v1580 = vadd.f32 %v1560, %v1511
        %v1581 = vadd.f32 %v1561, %v1514
        %v1582 = vadd.f32 %v1562, %v1517
        %v1583 = vadd.f32 %v1563, %v1520
        %v1584 = vadd.f32 %v1564, %v1523
        %v1585 = vadd.f32 %v1565, %v1526
        %v1586 = vadd.f32 %v1566, %v1529
        %v1587 = vadd.f32 %v1567, %v1532
        %v1588 = vadd.f32 %v1568, %v1535
        %v1589 = vadd.f32 %v1569, %v1538
        %v1590 = vadd.f32 %v1570, %v1541
        %v1591 = vadd.f32 %v1571, %v1544
        %v1592 = vadd.f32 %v1572, %v1547
        %v1593 = vadd.f32 %v1573, %v1550
        %v1594 = vadd.f32 %v1574, %v1553
        %1595 = vst [vmem:[#allocation4] sm:$0xff] %v1575
        %1596 = vst [vmem:[#allocation4 + $0x8] sm:$0xff] %v1576
        %1597 = vst [vmem:[#allocation4 + $0x10] sm:$0xff] %v1577
        %1598 = vst [vmem:[#allocation4 + $0x18] sm:$0xff] %v1578
        %1599 = vst [vmem:[#allocation4 + $0x20] sm:$0xff] %v1579
        %1600 = vst [vmem:[#allocation4 + $0x28] sm:$0xff] %v1580
        %1601 = vst [vmem:[#allocation4 + $0x30] sm:$0xff] %v1581
        %1602 = vst [vmem:[#allocation4 + $0x38] sm:$0xff] %v1582
        %1603 = vst [vmem:[#allocation4 + $0x40] sm:$0xff] %v1583
        %1604 = vst [vmem:[#allocation4 + $0x48] sm:$0xff] %v1584
        %1605 = vst [vmem:[#allocation4 + $0x50] sm:$0xff] %v1585
        %1606 = vst [vmem:[#allocation4 + $0x58] sm:$0xff] %v1586
        %1607 = vst [vmem:[#allocation4 + $0x60] sm:$0xff] %v1587
        %1608 = vst [vmem:[#allocation4 + $0x68] sm:$0xff] %v1588
        %1609 = vst [vmem:[#allocation4 + $0x70] sm:$0xff] %v1589
        %1610 = vst [vmem:[#allocation4 + $0x78] sm:$0xff] %v1590
        %1611 = vst [vmem:[#allocation4 + $0x80] sm:$0xff] %v1591
        %1612 = vst [vmem:[#allocation4 + $0x88] sm:$0xff] %v1592
        %1613 = vst [vmem:[#allocation4 + $0x90] sm:$0xff] %v1593
        %1614 = vst [vmem:[#allocation4 + $0x98] sm:$0xff] %v1594
        %v1615 = vld [vmem:[%s502] sm:$0xff]
        %v1616 = vld [vmem:[%s502 + $0x8] sm:$0xff]
        %v1617 = vld [vmem:[%s502 + $0x10] sm:$0x3]
        %v1618 = vld [vmem:[%s502 + $0x18] sm:$0xff]
        %v1619 = vld [vmem:[%s502 + $0x20] sm:$0xff]
        %v1620 = vld [vmem:[%s502 + $0x28] sm:$0x3]
        %v1621 = vld [vmem:[%s502 + $0x30] sm:$0xff]
        %v1622 = vld [vmem:[%s502 + $0x38] sm:$0xff]
        %v1623 = vld [vmem:[%s502 + $0x40] sm:$0x3]
        %v1624 = vld [vmem:[%s502 + $0x48] sm:$0xff]
        %v1625 = vld [vmem:[%s502 + $0x50] sm:$0xff]
        %v1626 = vld [vmem:[%s502 + $0x58] sm:$0x3]
        %v1627 = vld [vmem:[%s502 + $0x60] sm:$0xff]
        %v1628 = vld [vmem:[%s502 + $0x68] sm:$0xff]
        %v1629 = vld [vmem:[%s502 + $0x70] sm:$0x3]
        %v1630 = vld [vmem:[%s502 + $0x78] sm:$0xff]
        %v1631 = vld [vmem:[%s502 + $0x80] sm:$0xff]
        %v1632 = vld [vmem:[%s502 + $0x88] sm:$0x3]
        %v1633 = vld [vmem:[%s502 + $0x90] sm:$0xff]
        %v1634 = vld [vmem:[%s502 + $0x98] sm:$0xff]
        %v1635 = vld [vmem:[%s502 + $0xa0] sm:$0x3]
        %v1636 = vld [vmem:[%s502 + $0xa8] sm:$0xff]
        %v1637 = vld [vmem:[%s502 + $0xb0] sm:$0xff]
        %v1638 = vld [vmem:[%s502 + $0xb8] sm:$0x3]
        %v1639 = vld [vmem:[%s502 + $0xc0] sm:$0xff]
        %v1640 = vld [vmem:[%s502 + $0xc8] sm:$0xff]
        %v1641 = vld [vmem:[%s502 + $0xd0] sm:$0x3]
        %v1642 = vld [vmem:[%s502 + $0xd8] sm:$0xff]
        %v1643 = vld [vmem:[%s502 + $0xe0] sm:$0xff]
        %v1644 = vld [vmem:[%s502 + $0xe8] sm:$0x3]
        %v1675 = vrot.slane %v1615, 1
        %v1676 = vrot.slane %v1616, 1
        %v1677 = vsel %vm629, %v1675, %v1676
        %v1678 = vrot.slane %v1617, 1
        %v1679 = vsel %vm629, %v1676, %v1678
        %v1680 = vrot.slane %v1618, 1
        %v1681 = vrot.slane %v1619, 1
        %v1682 = vsel %vm629, %v1680, %v1681
        %v1683 = vrot.slane %v1620, 1
        %v1684 = vsel %vm629, %v1681, %v1683
        %v1685 = vrot.slane %v1621, 1
        %v1686 = vrot.slane %v1622, 1
        %v1687 = vsel %vm629, %v1685, %v1686
        %v1688 = vrot.slane %v1623, 1
        %v1689 = vsel %vm629, %v1686, %v1688
        %v1690 = vrot.slane %v1624, 1
        %v1691 = vrot.slane %v1625, 1
        %v1692 = vsel %vm629, %v1690, %v1691
        %v1693 = vrot.slane %v1626, 1
        %v1694 = vsel %vm629, %v1691, %v1693
        %v1695 = vrot.slane %v1627, 1
        %v1696 = vrot.slane %v1628, 1
        %v1697 = vsel %vm629, %v1695, %v1696
        %v1698 = vrot.slane %v1629, 1
        %v1699 = vsel %vm629, %v1696, %v1698
        %v1700 = vrot.slane %v1630, 1
        %v1701 = vrot.slane %v1631, 1
        %v1702 = vsel %vm629, %v1700, %v1701
        %v1703 = vrot.slane %v1632, 1
        %v1704 = vsel %vm629, %v1701, %v1703
        %v1705 = vrot.slane %v1633, 1
        %v1706 = vrot.slane %v1634, 1
        %v1707 = vsel %vm629, %v1705, %v1706
        %v1708 = vrot.slane %v1635, 1
        %v1709 = vsel %vm629, %v1706, %v1708
        %v1710 = vrot.slane %v1636, 1
        %v1711 = vrot.slane %v1637, 1
        %v1712 = vsel %vm629, %v1710, %v1711
        %v1713 = vrot.slane %v1638, 1
        %v1714 = vsel %vm629, %v1711, %v1713
        %v1715 = vrot.slane %v1639, 1
        %v1716 = vrot.slane %v1640, 1
        %v1717 = vsel %vm629, %v1715, %v1716
        %v1718 = vrot.slane %v1641, 1
        %v1719 = vsel %vm629, %v1716, %v1718
        %v1720 = vrot.slane %v1642, 1
        %v1721 = vrot.slane %v1643, 1
        %v1722 = vsel %vm629, %v1720, %v1721
        %v1723 = vrot.slane %v1644, 1
        %v1724 = vsel %vm629, %v1721, %v1723
        %v1745 = vrot.slane %v1615, 2
        %v1746 = vrot.slane %v1616, 2
        %v1747 = vsel %vm700, %v1745, %v1746
        %v1748 = vrot.slane %v1617, 2
        %v1749 = vsel %vm700, %v1746, %v1748
        %v1750 = vrot.slane %v1618, 2
        %v1751 = vrot.slane %v1619, 2
        %v1752 = vsel %vm700, %v1750, %v1751
        %v1753 = vrot.slane %v1620, 2
        %v1754 = vsel %vm700, %v1751, %v1753
        %v1755 = vrot.slane %v1621, 2
        %v1756 = vrot.slane %v1622, 2
        %v1757 = vsel %vm700, %v1755, %v1756
        %v1758 = vrot.slane %v1623, 2
        %v1759 = vsel %vm700, %v1756, %v1758
        %v1760 = vrot.slane %v1624, 2
        %v1761 = vrot.slane %v1625, 2
        %v1762 = vsel %vm700, %v1760, %v1761
        %v1763 = vrot.slane %v1626, 2
        %v1764 = vsel %vm700, %v1761, %v1763
        %v1765 = vrot.slane %v1627, 2
        %v1766 = vrot.slane %v1628, 2
        %v1767 = vsel %vm700, %v1765, %v1766
        %v1768 = vrot.slane %v1629, 2
        %v1769 = vsel %vm700, %v1766, %v1768
        %v1770 = vrot.slane %v1630, 2
        %v1771 = vrot.slane %v1631, 2
        %v1772 = vsel %vm700, %v1770, %v1771
        %v1773 = vrot.slane %v1632, 2
        %v1774 = vsel %vm700, %v1771, %v1773
        %v1775 = vrot.slane %v1633, 2
        %v1776 = vrot.slane %v1634, 2
        %v1777 = vsel %vm700, %v1775, %v1776
        %v1778 = vrot.slane %v1635, 2
        %v1779 = vsel %vm700, %v1776, %v1778
        %v1780 = vrot.slane %v1636, 2
        %v1781 = vrot.slane %v1637, 2
        %v1782 = vsel %vm700, %v1780, %v1781
        %v1783 = vrot.slane %v1638, 2
        %v1784 = vsel %vm700, %v1781, %v1783
        %v1785 = vrot.slane %v1639, 2
        %v1786 = vrot.slane %v1640, 2
        %v1787 = vsel %vm700, %v1785, %v1786
        %v1788 = vrot.slane %v1641, 2
        %v1789 = vsel %vm700, %v1786, %v1788
        %v1790 = vrot.slane %v1642, 2
        %v1791 = vrot.slane %v1643, 2
        %v1792 = vsel %vm700, %v1790, %v1791
        %v1793 = vrot.slane %v1644, 2
        %v1794 = vsel %vm700, %v1791, %v1793
        %s1815 = scalar_lea.vmem [#allocation11], 768
        %v1816 = vld [vmem:[%s1815] sm:$0xff]
        %v1817 = vld [vmem:[%s1815 + $0x8] sm:$0xff]
        %v1818 = vld [vmem:[%s1815 + $0x10] sm:$0xff]
        %v1819 = vld [vmem:[%s1815 + $0x18] sm:$0xff]
        %v1820 = vld [vmem:[%s1815 + $0x20] sm:$0xff]
        %v1821 = vld [vmem:[%s1815 + $0x28] sm:$0xff]
        %v1822 = vld [vmem:[%s1815 + $0x30] sm:$0xff]
        %v1823 = vld [vmem:[%s1815 + $0x38] sm:$0xff]
        %v1824 = vld [vmem:[%s1815 + $0x40] sm:$0xff]
        %v1825 = vld [vmem:[%s1815 + $0x48] sm:$0xff]
        %v1826 = vld [vmem:[%s1815 + $0x50] sm:$0xff]
        %v1827 = vld [vmem:[%s1815 + $0x58] sm:$0xff]
        %v1828 = vld [vmem:[%s1815 + $0x60] sm:$0xff]
        %v1829 = vld [vmem:[%s1815 + $0x68] sm:$0xff]
        %v1830 = vld [vmem:[%s1815 + $0x70] sm:$0xff]
        %v1831 = vld [vmem:[%s1815 + $0x78] sm:$0xff]
        %v1832 = vld [vmem:[%s1815 + $0x80] sm:$0xff]
        %v1833 = vld [vmem:[%s1815 + $0x88] sm:$0xff]
        %v1834 = vld [vmem:[%s1815 + $0x90] sm:$0xff]
        %v1835 = vld [vmem:[%s1815 + $0x98] sm:$0xff]
        %v1836 = vld [vmem:[%s1815 + $0xa0] sm:$0xff]
        %v1837 = vld [vmem:[%s1815 + $0xa8] sm:$0xff]
        %v1838 = vld [vmem:[%s1815 + $0xb0] sm:$0xff]
        %v1839 = vld [vmem:[%s1815 + $0xb8] sm:$0xff]
        %v1840 = vld [vmem:[%s1815 + $0xc0] sm:$0xff]
        %v1841 = vld [vmem:[%s1815 + $0xc8] sm:$0xff]
        %v1842 = vld [vmem:[%s1815 + $0xd0] sm:$0xff]
        %v1843 = vld [vmem:[%s1815 + $0xd8] sm:$0xff]
        %v1844 = vld [vmem:[%s1815 + $0xe0] sm:$0xff]
        %v1845 = vld [vmem:[%s1815 + $0xe8] sm:$0xff]
        %v1846 = vld [vmem:[%s1815 + $0xf0] sm:$0xff]
        %v1847 = vld [vmem:[%s1815 + $0xf8] sm:$0xff]
        %v1848 = vld [vmem:[%s1815 + $0x100] sm:$0xff]
        %v1849 = vld [vmem:[%s1815 + $0x108] sm:$0xff]
        %v1850 = vld [vmem:[%s1815 + $0x110] sm:$0xff]
        %v1851 = vld [vmem:[%s1815 + $0x118] sm:$0xff]
        %v1852 = vld [vmem:[%s1815 + $0x120] sm:$0xff]
        %v1853 = vld [vmem:[%s1815 + $0x128] sm:$0xff]
        %v1854 = vld [vmem:[%s1815 + $0x130] sm:$0xff]
        %v1855 = vld [vmem:[%s1815 + $0x138] sm:$0xff]
        %v1856 = vld [vmem:[%s1815 + $0x140] sm:$0xff]
        %v1857 = vld [vmem:[%s1815 + $0x148] sm:$0xff]
        %v1858 = vld [vmem:[%s1815 + $0x150] sm:$0xff]
        %v1859 = vld [vmem:[%s1815 + $0x158] sm:$0xff]
        %v1860 = vld [vmem:[%s1815 + $0x160] sm:$0xff]
        %v1861 = vld [vmem:[%s1815 + $0x168] sm:$0xff]
        %v1862 = vld [vmem:[%s1815 + $0x170] sm:$0xff]
        %v1863 = vld [vmem:[%s1815 + $0x178] sm:$0xff]
        %1864 = vmatpush.msra.mxu0 %v1831
        %1865 = vmatpush.msra.mxu0 %v1830
        %1866 = vmatpush.msra.mxu0 %v1829
        %1867 = vmatpush.msra.mxu0 %v1828
        %1868 = vmatpush.msra.mxu0 %v1827
        %1869 = vmatpush.msra.mxu0 %v1826
        %1870 = vmatpush.msra.mxu0 %v1825
        %1871 = vmatpush.msra.mxu0 %v1824
        %1872 = vmatpush.msra.mxu0 %v1823
        %1873 = vmatpush.msra.mxu0 %v1822
        %1874 = vmatpush.msra.mxu0 %v1821
        %1875 = vmatpush.msra.mxu0 %v1820
        %1876 = vmatpush.msra.mxu0 %v1819
        %1877 = vmatpush.msra.mxu0 %v1818
        %1878 = vmatpush.msra.mxu0 %v1817
        %1879 = vmatpush.msra.mxu0 %v1816
        %1880 = vmatmul.f32.gmra.mxu0 %v1615
        %v1881 = vpop.f32.mrf.mxu0
        %v1882 = vadd.f32 0.0, %v1881
        %1883 = vmatmul.f32.gmra.mxu0 %v1616
        %v1884 = vpop.f32.mrf.mxu0
        %v1885 = vadd.f32 0.0, %v1884
        %1886 = vmatmul.f32.gmra.mxu0 %v1618
        %v1887 = vpop.f32.mrf.mxu0
        %v1888 = vadd.f32 0.0, %v1887
        %1889 = vmatmul.f32.gmra.mxu0 %v1619
        %v1890 = vpop.f32.mrf.mxu0
        %v1891 = vadd.f32 0.0, %v1890
        %1892 = vmatmul.f32.gmra.mxu0 %v1621
        %v1893 = vpop.f32.mrf.mxu0
        %v1894 = vadd.f32 0.0, %v1893
        %1895 = vmatmul.f32.gmra.mxu0 %v1622
        %v1896 = vpop.f32.mrf.mxu0
        %v1897 = vadd.f32 0.0, %v1896
        %1898 = vmatmul.f32.gmra.mxu0 %v1624
        %v1899 = vpop.f32.mrf.mxu0
        %v1900 = vadd.f32 0.0, %v1899
        %1901 = vmatmul.f32.gmra.mxu0 %v1625
        %v1902 = vpop.f32.mrf.mxu0
        %v1903 = vadd.f32 0.0, %v1902
        %1904 = vmatmul.f32.gmra.mxu0 %v1627
        %v1905 = vpop.f32.mrf.mxu0
        %v1906 = vadd.f32 0.0, %v1905
        %1907 = vmatmul.f32.gmra.mxu0 %v1628
        %v1908 = vpop.f32.mrf.mxu0
        %v1909 = vadd.f32 0.0, %v1908
        %1910 = vmatmul.f32.gmra.mxu0 %v1630
        %v1911 = vpop.f32.mrf.mxu0
        %v1912 = vadd.f32 0.0, %v1911
        %1913 = vmatmul.f32.gmra.mxu0 %v1631
        %v1914 = vpop.f32.mrf.mxu0
        %v1915 = vadd.f32 0.0, %v1914
        %1916 = vmatmul.f32.gmra.mxu0 %v1633
        %v1917 = vpop.f32.mrf.mxu0
        %v1918 = vadd.f32 0.0, %v1917
        %1919 = vmatmul.f32.gmra.mxu0 %v1634
        %v1920 = vpop.f32.mrf.mxu0
        %v1921 = vadd.f32 0.0, %v1920
        %1922 = vmatmul.f32.gmra.mxu0 %v1636
        %v1923 = vpop.f32.mrf.mxu0
        %v1924 = vadd.f32 0.0, %v1923
        %1925 = vmatmul.f32.gmra.mxu0 %v1637
        %v1926 = vpop.f32.mrf.mxu0
        %v1927 = vadd.f32 0.0, %v1926
        %1928 = vmatmul.f32.gmra.mxu0 %v1639
        %v1929 = vpop.f32.mrf.mxu0
        %v1930 = vadd.f32 0.0, %v1929
        %1931 = vmatmul.f32.gmra.mxu0 %v1640
        %v1932 = vpop.f32.mrf.mxu0
        %v1933 = vadd.f32 0.0, %v1932
        %1934 = vmatmul.f32.gmra.mxu0 %v1642
        %v1935 = vpop.f32.mrf.mxu0
        %v1936 = vadd.f32 0.0, %v1935
        %1937 = vmatmul.f32.gmra.mxu0 %v1643
        %v1938 = vpop.f32.mrf.mxu0
        %v1939 = vadd.f32 0.0, %v1938
        %1940 = vdwg.mxu0
        %1941 = vmatpush.msra.mxu0 %v1847
        %1942 = vmatpush.msra.mxu0 %v1846
        %1943 = vmatpush.msra.mxu0 %v1845
        %1944 = vmatpush.msra.mxu0 %v1844
        %1945 = vmatpush.msra.mxu0 %v1843
        %1946 = vmatpush.msra.mxu0 %v1842
        %1947 = vmatpush.msra.mxu0 %v1841
        %1948 = vmatpush.msra.mxu0 %v1840
        %1949 = vmatpush.msra.mxu0 %v1839
        %1950 = vmatpush.msra.mxu0 %v1838
        %1951 = vmatpush.msra.mxu0 %v1837
        %1952 = vmatpush.msra.mxu0 %v1836
        %1953 = vmatpush.msra.mxu0 %v1835
        %1954 = vmatpush.msra.mxu0 %v1834
        %1955 = vmatpush.msra.mxu0 %v1833
        %1956 = vmatpush.msra.mxu0 %v1832
        %1957 = vmatmul.f32.gmra.mxu0 %v1677
        %v1958 = vpop.f32.mrf.mxu0
        %v1959 = vadd.f32 %v1882, %v1958
        %1960 = vmatmul.f32.gmra.mxu0 %v1679
        %v1961 = vpop.f32.mrf.mxu0
        %v1962 = vadd.f32 %v1885, %v1961
        %1963 = vmatmul.f32.gmra.mxu0 %v1682
        %v1964 = vpop.f32.mrf.mxu0
        %v1965 = vadd.f32 %v1888, %v1964
        %1966 = vmatmul.f32.gmra.mxu0 %v1684
        %v1967 = vpop.f32.mrf.mxu0
        %v1968 = vadd.f32 %v1891, %v1967
        %1969 = vmatmul.f32.gmra.mxu0 %v1687
        %v1970 = vpop.f32.mrf.mxu0
        %v1971 = vadd.f32 %v1894, %v1970
        %1972 = vmatmul.f32.gmra.mxu0 %v1689
        %v1973 = vpop.f32.mrf.mxu0
        %v1974 = vadd.f32 %v1897, %v1973
        %1975 = vmatmul.f32.gmra.mxu0 %v1692
        %v1976 = vpop.f32.mrf.mxu0
        %v1977 = vadd.f32 %v1900, %v1976
        %1978 = vmatmul.f32.gmra.mxu0 %v1694
        %v1979 = vpop.f32.mrf.mxu0
        %v1980 = vadd.f32 %v1903, %v1979
        %1981 = vmatmul.f32.gmra.mxu0 %v1697
        %v1982 = vpop.f32.mrf.mxu0
        %v1983 = vadd.f32 %v1906, %v1982
        %1984 = vmatmul.f32.gmra.mxu0 %v1699
        %v1985 = vpop.f32.mrf.mxu0
        %v1986 = vadd.f32 %v1909, %v1985
        %1987 = vmatmul.f32.gmra.mxu0 %v1702
        %v1988 = vpop.f32.mrf.mxu0
        %v1989 = vadd.f32 %v1912, %v1988
        %1990 = vmatmul.f32.gmra.mxu0 %v1704
        %v1991 = vpop.f32.mrf.mxu0
        %v1992 = vadd.f32 %v1915, %v1991
        %1993 = vmatmul.f32.gmra.mxu0 %v1707
        %v1994 = vpop.f32.mrf.mxu0
        %v1995 = vadd.f32 %v1918, %v1994
        %1996 = vmatmul.f32.gmra.mxu0 %v1709
        %v1997 = vpop.f32.mrf.mxu0
        %v1998 = vadd.f32 %v1921, %v1997
        %1999 = vmatmul.f32.gmra.mxu0 %v1712
        %v2000 = vpop.f32.mrf.mxu0
        %v2001 = vadd.f32 %v1924, %v2000
        %2002 = vmatmul.f32.gmra.mxu0 %v1714
        %v2003 = vpop.f32.mrf.mxu0
        %v2004 = vadd.f32 %v1927, %v2003
        %2005 = vmatmul.f32.gmra.mxu0 %v1717
        %v2006 = vpop.f32.mrf.mxu0
        %v2007 = vadd.f32 %v1930, %v2006
        %2008 = vmatmul.f32.gmra.mxu0 %v1719
        %v2009 = vpop.f32.mrf.mxu0
        %v2010 = vadd.f32 %v1933, %v2009
        %2011 = vmatmul.f32.gmra.mxu0 %v1722
        %v2012 = vpop.f32.mrf.mxu0
        %v2013 = vadd.f32 %v1936, %v2012
        %2014 = vmatmul.f32.gmra.mxu0 %v1724
        %v2015 = vpop.f32.mrf.mxu0
        %v2016 = vadd.f32 %v1939, %v2015
        %2017 = vdwg.mxu0
        %2018 = vmatpush.msra.mxu0 %v1863
        %2019 = vmatpush.msra.mxu0 %v1862
        %2020 = vmatpush.msra.mxu0 %v1861
        %2021 = vmatpush.msra.mxu0 %v1860
        %2022 = vmatpush.msra.mxu0 %v1859
        %2023 = vmatpush.msra.mxu0 %v1858
        %2024 = vmatpush.msra.mxu0 %v1857
        %2025 = vmatpush.msra.mxu0 %v1856
        %2026 = vmatpush.msra.mxu0 %v1855
        %2027 = vmatpush.msra.mxu0 %v1854
        %2028 = vmatpush.msra.mxu0 %v1853
        %2029 = vmatpush.msra.mxu0 %v1852
        %2030 = vmatpush.msra.mxu0 %v1851
        %2031 = vmatpush.msra.mxu0 %v1850
        %2032 = vmatpush.msra.mxu0 %v1849
        %2033 = vmatpush.msra.mxu0 %v1848
        %2034 = vmatmul.f32.gmra.mxu0 %v1747
        %v2035 = vpop.f32.mrf.mxu0
        %v2036 = vadd.f32 %v1959, %v2035
        %2037 = vmatmul.f32.gmra.mxu0 %v1749
        %v2038 = vpop.f32.mrf.mxu0
        %v2039 = vadd.f32 %v1962, %v2038
        %2040 = vmatmul.f32.gmra.mxu0 %v1752
        %v2041 = vpop.f32.mrf.mxu0
        %v2042 = vadd.f32 %v1965, %v2041
        %2043 = vmatmul.f32.gmra.mxu0 %v1754
        %v2044 = vpop.f32.mrf.mxu0
        %v2045 = vadd.f32 %v1968, %v2044
        %2046 = vmatmul.f32.gmra.mxu0 %v1757
        %v2047 = vpop.f32.mrf.mxu0
        %v2048 = vadd.f32 %v1971, %v2047
        %2049 = vmatmul.f32.gmra.mxu0 %v1759
        %v2050 = vpop.f32.mrf.mxu0
        %v2051 = vadd.f32 %v1974, %v2050
        %2052 = vmatmul.f32.gmra.mxu0 %v1762
        %v2053 = vpop.f32.mrf.mxu0
        %v2054 = vadd.f32 %v1977, %v2053
        %2055 = vmatmul.f32.gmra.mxu0 %v1764
        %v2056 = vpop.f32.mrf.mxu0
        %v2057 = vadd.f32 %v1980, %v2056
        %2058 = vmatmul.f32.gmra.mxu0 %v1767
        %v2059 = vpop.f32.mrf.mxu0
        %v2060 = vadd.f32 %v1983, %v2059
        %2061 = vmatmul.f32.gmra.mxu0 %v1769
        %v2062 = vpop.f32.mrf.mxu0
        %v2063 = vadd.f32 %v1986, %v2062
        %2064 = vmatmul.f32.gmra.mxu0 %v1772
        %v2065 = vpop.f32.mrf.mxu0
        %v2066 = vadd.f32 %v1989, %v2065
        %2067 = vmatmul.f32.gmra.mxu0 %v1774
        %v2068 = vpop.f32.mrf.mxu0
        %v2069 = vadd.f32 %v1992, %v2068
        %2070 = vmatmul.f32.gmra.mxu0 %v1777
        %v2071 = vpop.f32.mrf.mxu0
        %v2072 = vadd.f32 %v1995, %v2071
        %2073 = vmatmul.f32.gmra.mxu0 %v1779
        %v2074 = vpop.f32.mrf.mxu0
        %v2075 = vadd.f32 %v1998, %v2074
        %2076 = vmatmul.f32.gmra.mxu0 %v1782
        %v2077 = vpop.f32.mrf.mxu0
        %v2078 = vadd.f32 %v2001, %v2077
        %2079 = vmatmul.f32.gmra.mxu0 %v1784
        %v2080 = vpop.f32.mrf.mxu0
        %v2081 = vadd.f32 %v2004, %v2080
        %2082 = vmatmul.f32.gmra.mxu0 %v1787
        %v2083 = vpop.f32.mrf.mxu0
        %v2084 = vadd.f32 %v2007, %v2083
        %2085 = vmatmul.f32.gmra.mxu0 %v1789
        %v2086 = vpop.f32.mrf.mxu0
        %v2087 = vadd.f32 %v2010, %v2086
        %2088 = vmatmul.f32.gmra.mxu0 %v1792
        %v2089 = vpop.f32.mrf.mxu0
        %v2090 = vadd.f32 %v2013, %v2089
        %2091 = vmatmul.f32.gmra.mxu0 %v1794
        %v2092 = vpop.f32.mrf.mxu0
        %v2093 = vadd.f32 %v2016, %v2092
        %2094 = vdwg.mxu0
        %v2095 = vld [vmem:[#allocation4] sm:$0xff]
        %v2096 = vld [vmem:[#allocation4 + $0x8] sm:$0xff]
        %v2097 = vld [vmem:[#allocation4 + $0x10] sm:$0xff]
        %v2098 = vld [vmem:[#allocation4 + $0x18] sm:$0xff]
        %v2099 = vld [vmem:[#allocation4 + $0x20] sm:$0xff]
        %v2100 = vld [vmem:[#allocation4 + $0x28] sm:$0xff]
        %v2101 = vld [vmem:[#allocation4 + $0x30] sm:$0xff]
        %v2102 = vld [vmem:[#allocation4 + $0x38] sm:$0xff]
        %v2103 = vld [vmem:[#allocation4 + $0x40] sm:$0xff]
        %v2104 = vld [vmem:[#allocation4 + $0x48] sm:$0xff]
        %v2105 = vld [vmem:[#allocation4 + $0x50] sm:$0xff]
        %v2106 = vld [vmem:[#allocation4 + $0x58] sm:$0xff]
        %v2107 = vld [vmem:[#allocation4 + $0x60] sm:$0xff]
        %v2108 = vld [vmem:[#allocation4 + $0x68] sm:$0xff]
        %v2109 = vld [vmem:[#allocation4 + $0x70] sm:$0xff]
        %v2110 = vld [vmem:[#allocation4 + $0x78] sm:$0xff]
        %v2111 = vld [vmem:[#allocation4 + $0x80] sm:$0xff]
        %v2112 = vld [vmem:[#allocation4 + $0x88] sm:$0xff]
        %v2113 = vld [vmem:[#allocation4 + $0x90] sm:$0xff]
        %v2114 = vld [vmem:[#allocation4 + $0x98] sm:$0xff]
        %v2115 = vadd.f32 %v2095, %v2036
        %v2116 = vadd.f32 %v2096, %v2039
        %v2117 = vadd.f32 %v2097, %v2042
        %v2118 = vadd.f32 %v2098, %v2045
        %v2119 = vadd.f32 %v2099, %v2048
        %v2120 = vadd.f32 %v2100, %v2051
        %v2121 = vadd.f32 %v2101, %v2054
        %v2122 = vadd.f32 %v2102, %v2057
        %v2123 = vadd.f32 %v2103, %v2060
        %v2124 = vadd.f32 %v2104, %v2063
        %v2125 = vadd.f32 %v2105, %v2066
        %v2126 = vadd.f32 %v2106, %v2069
        %v2127 = vadd.f32 %v2107, %v2072
        %v2128 = vadd.f32 %v2108, %v2075
        %v2129 = vadd.f32 %v2109, %v2078
        %v2130 = vadd.f32 %v2110, %v2081
        %v2131 = vadd.f32 %v2111, %v2084
        %v2132 = vadd.f32 %v2112, %v2087
        %v2133 = vadd.f32 %v2113, %v2090
        %v2134 = vadd.f32 %v2114, %v2093
        %2135 = vst [vmem:[#allocation4] sm:$0xff] %v2115
        %2136 = vst [vmem:[#allocation4 + $0x8] sm:$0xff] %v2116
        %2137 = vst [vmem:[#allocation4 + $0x10] sm:$0xff] %v2117
        %2138 = vst [vmem:[#allocation4 + $0x18] sm:$0xff] %v2118
        %2139 = vst [vmem:[#allocation4 + $0x20] sm:$0xff] %v2119
        %2140 = vst [vmem:[#allocation4 + $0x28] sm:$0xff] %v2120
        %2141 = vst [vmem:[#allocation4 + $0x30] sm:$0xff] %v2121
        %2142 = vst [vmem:[#allocation4 + $0x38] sm:$0xff] %v2122
        %2143 = vst [vmem:[#allocation4 + $0x40] sm:$0xff] %v2123
        %2144 = vst [vmem:[#allocation4 + $0x48] sm:$0xff] %v2124
        %2145 = vst [vmem:[#allocation4 + $0x50] sm:$0xff] %v2125
        %2146 = vst [vmem:[#allocation4 + $0x58] sm:$0xff] %v2126
        %2147 = vst [vmem:[#allocation4 + $0x60] sm:$0xff] %v2127
        %2148 = vst [vmem:[#allocation4 + $0x68] sm:$0xff] %v2128
        %2149 = vst [vmem:[#allocation4 + $0x70] sm:$0xff] %v2129
        %2150 = vst [vmem:[#allocation4 + $0x78] sm:$0xff] %v2130
        %2151 = vst [vmem:[#allocation4 + $0x80] sm:$0xff] %v2131
        %2152 = vst [vmem:[#allocation4 + $0x88] sm:$0xff] %v2132
        %2153 = vst [vmem:[#allocation4 + $0x90] sm:$0xff] %v2133
        %2154 = vst [vmem:[#allocation4 + $0x98] sm:$0xff] %v2134
        %v2155 = vld [vmem:[#allocation4] sm:$0xff]
        %v2156 = vld [vmem:[#allocation4 + $0x8] sm:$0xff]
        %v2157 = vld [vmem:[#allocation4 + $0x10] sm:$0xff]
        %v2158 = vld [vmem:[#allocation4 + $0x18] sm:$0xff]
        %v2159 = vld [vmem:[#allocation4 + $0x20] sm:$0xff]
        %v2160 = vld [vmem:[#allocation4 + $0x28] sm:$0xff]
        %v2161 = vld [vmem:[#allocation4 + $0x30] sm:$0xff]
        %v2162 = vld [vmem:[#allocation4 + $0x38] sm:$0xff]
        %v2163 = vld [vmem:[#allocation4 + $0x40] sm:$0xff]
        %v2164 = vld [vmem:[#allocation4 + $0x48] sm:$0xff]
        %v2165 = vld [vmem:[#allocation4 + $0x50] sm:$0xff]
        %v2166 = vld [vmem:[#allocation4 + $0x58] sm:$0xff]
        %v2167 = vld [vmem:[#allocation4 + $0x60] sm:$0xff]
        %v2168 = vld [vmem:[#allocation4 + $0x68] sm:$0xff]
        %v2169 = vld [vmem:[#allocation4 + $0x70] sm:$0xff]
        %v2170 = vld [vmem:[#allocation4 + $0x78] sm:$0xff]
        %v2171 = vld [vmem:[#allocation4 + $0x80] sm:$0xff]
        %v2172 = vld [vmem:[#allocation4 + $0x88] sm:$0xff]
        %v2173 = vld [vmem:[#allocation4 + $0x90] sm:$0xff]
        %v2174 = vld [vmem:[#allocation4 + $0x98] sm:$0xff]
        %v2175 = vmax.f32 %v2155, 0.0
        %v2176 = vmax.f32 %v2156, 0.0
        %v2177 = vmax.f32 %v2157, 0.0
        %v2178 = vmax.f32 %v2158, 0.0
        %v2179 = vmax.f32 %v2159, 0.0
        %v2180 = vmax.f32 %v2160, 0.0
        %v2181 = vmax.f32 %v2161, 0.0
        %v2182 = vmax.f32 %v2162, 0.0
        %v2183 = vmax.f32 %v2163, 0.0
        %v2184 = vmax.f32 %v2164, 0.0
        %v2185 = vmax.f32 %v2165, 0.0
        %v2186 = vmax.f32 %v2166, 0.0
        %v2187 = vmax.f32 %v2167, 0.0
        %v2188 = vmax.f32 %v2168, 0.0
        %v2189 = vmax.f32 %v2169, 0.0
        %v2190 = vmax.f32 %v2170, 0.0
        %v2191 = vmax.f32 %v2171, 0.0
        %v2192 = vmax.f32 %v2172, 0.0
        %v2193 = vmax.f32 %v2173, 0.0
        %v2194 = vmax.f32 %v2174, 0.0
        %s2195 = scalar_lea.vmem [#allocation3], 24
        %2196 = vst [vmem:[%s2195 + $0x1] sm:$0xff] %v2175
        %2197 = vst [vmem:[%s2195 + $0x9] sm:$0xff] %v2176
        %2198 = vst [vmem:[%s2195 + $0x19] sm:$0xff] %v2177
        %2199 = vst [vmem:[%s2195 + $0x21] sm:$0xff] %v2178
        %2200 = vst [vmem:[%s2195 + $0x31] sm:$0xff] %v2179
        %2201 = vst [vmem:[%s2195 + $0x39] sm:$0xff] %v2180
        %2202 = vst [vmem:[%s2195 + $0x49] sm:$0xff] %v2181
        %2203 = vst [vmem:[%s2195 + $0x51] sm:$0xff] %v2182
        %2204 = vst [vmem:[%s2195 + $0x61] sm:$0xff] %v2183
        %2205 = vst [vmem:[%s2195 + $0x69] sm:$0xff] %v2184
        %2206 = vst [vmem:[%s2195 + $0x79] sm:$0xff] %v2185
        %2207 = vst [vmem:[%s2195 + $0x81] sm:$0xff] %v2186
        %2208 = vst [vmem:[%s2195 + $0x91] sm:$0xff] %v2187
        %2209 = vst [vmem:[%s2195 + $0x99] sm:$0xff] %v2188
        %2210 = vst [vmem:[%s2195 + $0xa9] sm:$0xff] %v2189
        %2211 = vst [vmem:[%s2195 + $0xb1] sm:$0xff] %v2190
        %2212 = vst [vmem:[%s2195 + $0xc1] sm:$0xff] %v2191
        %2213 = vst [vmem:[%s2195 + $0xc9] sm:$0xff] %v2192
        %2214 = vst [vmem:[%s2195 + $0xd9] sm:$0xff] %v2193
        %2215 = vst [vmem:[%s2195 + $0xe1] sm:$0xff] %v2194
        // Predicated region
        $region77: #{tpu_custom_call.1} parent=39 // pred_check
          %p2216 = pneg %p535
        $region78: #{tpu_custom_call.1} parent=39 // pred_check_branch
          %2218 = sbr.rel (%p2216) target = $region80
        $region79: #{tpu_custom_call.1} parent=39 // pred_region
          %2219 = vst [vmem:[%s2195 + $0x1] sm:$0xff] 0.0
          %2220 = vst [vmem:[%s2195 + $0x9] sm:$0xff] 0.0
        $region80: #{tpu_custom_call.1} parent=39 // pred_fallthru
          _
        // Predicated region
        $region81: #{tpu_custom_call.1} parent=39 // pred_check
          %p2221 = pneg %p560
        $region82: #{tpu_custom_call.1} parent=39 // pred_check_branch
          %2223 = sbr.rel (%p2221) target = $region84
        $region83: #{tpu_custom_call.1} parent=39 // pred_region
          %s2224 = scalar_lea.vmem [#allocation3], 240
          %2225 = vst [vmem:[%s2224 + $0x1] sm:$0xff] 0.0
          %2226 = vst [vmem:[%s2224 + $0x9] sm:$0xff] 0.0
        $region84: #{tpu_custom_call.1} parent=39 // pred_fallthru
          _
        %v2227 = vld [vmem:[%s2195] sm:$0xff]
        %v2228 = vld [vmem:[%s2195 + $0x8] sm:$0xff]
        %v2229 = vld [vmem:[%s2195 + $0x10] sm:$0x3]
        %v2230 = vld [vmem:[%s2195 + $0x18] sm:$0xff]
        %v2231 = vld [vmem:[%s2195 + $0x20] sm:$0xff]
        %v2232 = vld [vmem:[%s2195 + $0x28] sm:$0x3]
        %v2233 = vld [vmem:[%s2195 + $0x30] sm:$0xff]
        %v2234 = vld [vmem:[%s2195 + $0x38] sm:$0xff]
        %v2235 = vld [vmem:[%s2195 + $0x40] sm:$0x3]
        %v2236 = vld [vmem:[%s2195 + $0x48] sm:$0xff]
        %v2237 = vld [vmem:[%s2195 + $0x50] sm:$0xff]
        %v2238 = vld [vmem:[%s2195 + $0x58] sm:$0x3]
        %v2239 = vld [vmem:[%s2195 + $0x60] sm:$0xff]
        %v2240 = vld [vmem:[%s2195 + $0x68] sm:$0xff]
        %v2241 = vld [vmem:[%s2195 + $0x70] sm:$0x3]
        %v2242 = vld [vmem:[%s2195 + $0x78] sm:$0xff]
        %v2243 = vld [vmem:[%s2195 + $0x80] sm:$0xff]
        %v2244 = vld [vmem:[%s2195 + $0x88] sm:$0x3]
        %v2245 = vld [vmem:[%s2195 + $0x90] sm:$0xff]
        %v2246 = vld [vmem:[%s2195 + $0x98] sm:$0xff]
        %v2247 = vld [vmem:[%s2195 + $0xa0] sm:$0x3]
        %v2248 = vld [vmem:[%s2195 + $0xa8] sm:$0xff]
        %v2249 = vld [vmem:[%s2195 + $0xb0] sm:$0xff]
        %v2250 = vld [vmem:[%s2195 + $0xb8] sm:$0x3]
        %v2275 = vrot.slane %v2227, 1
        %v2276 = vrot.slane %v2228, 1
        %v2277 = vsel %vm629, %v2275, %v2276
        %v2278 = vrot.slane %v2229, 1
        %v2279 = vsel %vm629, %v2276, %v2278
        %v2280 = vrot.slane %v2230, 1
        %v2281 = vrot.slane %v2231, 1
        %v2282 = vsel %vm629, %v2280, %v2281
        %v2283 = vrot.slane %v2232, 1
        %v2284 = vsel %vm629, %v2281, %v2283
        %v2285 = vrot.slane %v2233, 1
        %v2286 = vrot.slane %v2234, 1
        %v2287 = vsel %vm629, %v2285, %v2286
        %v2288 = vrot.slane %v2235, 1
        %v2289 = vsel %vm629, %v2286, %v2288
        %v2290 = vrot.slane %v2236, 1
        %v2291 = vrot.slane %v2237, 1
        %v2292 = vsel %vm629, %v2290, %v2291
        %v2293 = vrot.slane %v2238, 1
        %v2294 = vsel %vm629, %v2291, %v2293
        %v2295 = vrot.slane %v2239, 1
        %v2296 = vrot.slane %v2240, 1
        %v2297 = vsel %vm629, %v2295, %v2296
        %v2298 = vrot.slane %v2241, 1
        %v2299 = vsel %vm629, %v2296, %v2298
        %v2300 = vrot.slane %v2242, 1
        %v2301 = vrot.slane %v2243, 1
        %v2302 = vsel %vm629, %v2300, %v2301
        %v2303 = vrot.slane %v2244, 1
        %v2304 = vsel %vm629, %v2301, %v2303
        %v2305 = vrot.slane %v2245, 1
        %v2306 = vrot.slane %v2246, 1
        %v2307 = vsel %vm629, %v2305, %v2306
        %v2308 = vrot.slane %v2247, 1
        %v2309 = vsel %vm629, %v2306, %v2308
        %v2310 = vrot.slane %v2248, 1
        %v2311 = vrot.slane %v2249, 1
        %v2312 = vsel %vm629, %v2310, %v2311
        %v2313 = vrot.slane %v2250, 1
        %v2314 = vsel %vm629, %v2311, %v2313
        %v2331 = vrot.slane %v2227, 2
        %v2332 = vrot.slane %v2228, 2
        %v2333 = vsel %vm700, %v2331, %v2332
        %v2334 = vrot.slane %v2229, 2
        %v2335 = vsel %vm700, %v2332, %v2334
        %v2336 = vrot.slane %v2230, 2
        %v2337 = vrot.slane %v2231, 2
        %v2338 = vsel %vm700, %v2336, %v2337
        %v2339 = vrot.slane %v2232, 2
        %v2340 = vsel %vm700, %v2337, %v2339
        %v2341 = vrot.slane %v2233, 2
        %v2342 = vrot.slane %v2234, 2
        %v2343 = vsel %vm700, %v2341, %v2342
        %v2344 = vrot.slane %v2235, 2
        %v2345 = vsel %vm700, %v2342, %v2344
        %v2346 = vrot.slane %v2236, 2
        %v2347 = vrot.slane %v2237, 2
        %v2348 = vsel %vm700, %v2346, %v2347
        %v2349 = vrot.slane %v2238, 2
        %v2350 = vsel %vm700, %v2347, %v2349
        %v2351 = vrot.slane %v2239, 2
        %v2352 = vrot.slane %v2240, 2
        %v2353 = vsel %vm700, %v2351, %v2352
        %v2354 = vrot.slane %v2241, 2
        %v2355 = vsel %vm700, %v2352, %v2354
        %v2356 = vrot.slane %v2242, 2
        %v2357 = vrot.slane %v2243, 2
        %v2358 = vsel %vm700, %v2356, %v2357
        %v2359 = vrot.slane %v2244, 2
        %v2360 = vsel %vm700, %v2357, %v2359
        %v2361 = vrot.slane %v2245, 2
        %v2362 = vrot.slane %v2246, 2
        %v2363 = vsel %vm700, %v2361, %v2362
        %v2364 = vrot.slane %v2247, 2
        %v2365 = vsel %vm700, %v2362, %v2364
        %v2366 = vrot.slane %v2248, 2
        %v2367 = vrot.slane %v2249, 2
        %v2368 = vsel %vm700, %v2366, %v2367
        %v2369 = vrot.slane %v2250, 2
        %v2370 = vsel %vm700, %v2367, %v2369
        %s2387 = scalar_lea.vmem [#allocation11], 1152
        %v2388 = vld [vmem:[%s2387] sm:$0xff]
        %v2389 = vld [vmem:[%s2387 + $0x8] sm:$0xff]
        %v2390 = vld [vmem:[%s2387 + $0x10] sm:$0xff]
        %v2391 = vld [vmem:[%s2387 + $0x18] sm:$0xff]
        %v2392 = vld [vmem:[%s2387 + $0x20] sm:$0xff]
        %v2393 = vld [vmem:[%s2387 + $0x28] sm:$0xff]
        %v2394 = vld [vmem:[%s2387 + $0x30] sm:$0xff]
        %v2395 = vld [vmem:[%s2387 + $0x38] sm:$0xff]
        %v2396 = vld [vmem:[%s2387 + $0x40] sm:$0xff]
        %v2397 = vld [vmem:[%s2387 + $0x48] sm:$0xff]
        %v2398 = vld [vmem:[%s2387 + $0x50] sm:$0xff]
        %v2399 = vld [vmem:[%s2387 + $0x58] sm:$0xff]
        %v2400 = vld [vmem:[%s2387 + $0x60] sm:$0xff]
        %v2401 = vld [vmem:[%s2387 + $0x68] sm:$0xff]
        %v2402 = vld [vmem:[%s2387 + $0x70] sm:$0xff]
        %v2403 = vld [vmem:[%s2387 + $0x78] sm:$0xff]
        %v2404 = vld [vmem:[%s2387 + $0x80] sm:$0xff]
        %v2405 = vld [vmem:[%s2387 + $0x88] sm:$0xff]
        %v2406 = vld [vmem:[%s2387 + $0x90] sm:$0xff]
        %v2407 = vld [vmem:[%s2387 + $0x98] sm:$0xff]
        %v2408 = vld [vmem:[%s2387 + $0xa0] sm:$0xff]
        %v2409 = vld [vmem:[%s2387 + $0xa8] sm:$0xff]
        %v2410 = vld [vmem:[%s2387 + $0xb0] sm:$0xff]
        %v2411 = vld [vmem:[%s2387 + $0xb8] sm:$0xff]
        %v2412 = vld [vmem:[%s2387 + $0xc0] sm:$0xff]
        %v2413 = vld [vmem:[%s2387 + $0xc8] sm:$0xff]
        %v2414 = vld [vmem:[%s2387 + $0xd0] sm:$0xff]
        %v2415 = vld [vmem:[%s2387 + $0xd8] sm:$0xff]
        %v2416 = vld [vmem:[%s2387 + $0xe0] sm:$0xff]
        %v2417 = vld [vmem:[%s2387 + $0xe8] sm:$0xff]
        %v2418 = vld [vmem:[%s2387 + $0xf0] sm:$0xff]
        %v2419 = vld [vmem:[%s2387 + $0xf8] sm:$0xff]
        %v2420 = vld [vmem:[%s2387 + $0x100] sm:$0xff]
        %v2421 = vld [vmem:[%s2387 + $0x108] sm:$0xff]
        %v2422 = vld [vmem:[%s2387 + $0x110] sm:$0xff]
        %v2423 = vld [vmem:[%s2387 + $0x118] sm:$0xff]
        %v2424 = vld [vmem:[%s2387 + $0x120] sm:$0xff]
        %v2425 = vld [vmem:[%s2387 + $0x128] sm:$0xff]
        %v2426 = vld [vmem:[%s2387 + $0x130] sm:$0xff]
        %v2427 = vld [vmem:[%s2387 + $0x138] sm:$0xff]
        %v2428 = vld [vmem:[%s2387 + $0x140] sm:$0xff]
        %v2429 = vld [vmem:[%s2387 + $0x148] sm:$0xff]
        %v2430 = vld [vmem:[%s2387 + $0x150] sm:$0xff]
        %v2431 = vld [vmem:[%s2387 + $0x158] sm:$0xff]
        %v2432 = vld [vmem:[%s2387 + $0x160] sm:$0xff]
        %v2433 = vld [vmem:[%s2387 + $0x168] sm:$0xff]
        %v2434 = vld [vmem:[%s2387 + $0x170] sm:$0xff]
        %v2435 = vld [vmem:[%s2387 + $0x178] sm:$0xff]
        %2436 = vmatpush.msra.mxu0 %v2403
        %2437 = vmatpush.msra.mxu0 %v2402
        %2438 = vmatpush.msra.mxu0 %v2401
        %2439 = vmatpush.msra.mxu0 %v2400
        %2440 = vmatpush.msra.mxu0 %v2399
        %2441 = vmatpush.msra.mxu0 %v2398
        %2442 = vmatpush.msra.mxu0 %v2397
        %2443 = vmatpush.msra.mxu0 %v2396
        %2444 = vmatpush.msra.mxu0 %v2395
        %2445 = vmatpush.msra.mxu0 %v2394
        %2446 = vmatpush.msra.mxu0 %v2393
        %2447 = vmatpush.msra.mxu0 %v2392
        %2448 = vmatpush.msra.mxu0 %v2391
        %2449 = vmatpush.msra.mxu0 %v2390
        %2450 = vmatpush.msra.mxu0 %v2389
        %2451 = vmatpush.msra.mxu0 %v2388
        %2452 = vmatmul.f32.gmra.mxu0 %v2227
        %v2453 = vpop.f32.mrf.mxu0
        %v2454 = vadd.f32 0.0, %v2453
        %2455 = vmatmul.f32.gmra.mxu0 %v2228
        %v2456 = vpop.f32.mrf.mxu0
        %v2457 = vadd.f32 0.0, %v2456
        %2458 = vmatmul.f32.gmra.mxu0 %v2230
        %v2459 = vpop.f32.mrf.mxu0
        %v2460 = vadd.f32 0.0, %v2459
        %2461 = vmatmul.f32.gmra.mxu0 %v2231
        %v2462 = vpop.f32.mrf.mxu0
        %v2463 = vadd.f32 0.0, %v2462
        %2464 = vmatmul.f32.gmra.mxu0 %v2233
        %v2465 = vpop.f32.mrf.mxu0
        %v2466 = vadd.f32 0.0, %v2465
        %2467 = vmatmul.f32.gmra.mxu0 %v2234
        %v2468 = vpop.f32.mrf.mxu0
        %v2469 = vadd.f32 0.0, %v2468
        %2470 = vmatmul.f32.gmra.mxu0 %v2236
        %v2471 = vpop.f32.mrf.mxu0
        %v2472 = vadd.f32 0.0, %v2471
        %2473 = vmatmul.f32.gmra.mxu0 %v2237
        %v2474 = vpop.f32.mrf.mxu0
        %v2475 = vadd.f32 0.0, %v2474
        %2476 = vmatmul.f32.gmra.mxu0 %v2239
        %v2477 = vpop.f32.mrf.mxu0
        %v2478 = vadd.f32 0.0, %v2477
        %2479 = vmatmul.f32.gmra.mxu0 %v2240
        %v2480 = vpop.f32.mrf.mxu0
        %v2481 = vadd.f32 0.0, %v2480
        %2482 = vmatmul.f32.gmra.mxu0 %v2242
        %v2483 = vpop.f32.mrf.mxu0
        %v2484 = vadd.f32 0.0, %v2483
        %2485 = vmatmul.f32.gmra.mxu0 %v2243
        %v2486 = vpop.f32.mrf.mxu0
        %v2487 = vadd.f32 0.0, %v2486
        %2488 = vmatmul.f32.gmra.mxu0 %v2245
        %v2489 = vpop.f32.mrf.mxu0
        %v2490 = vadd.f32 0.0, %v2489
        %2491 = vmatmul.f32.gmra.mxu0 %v2246
        %v2492 = vpop.f32.mrf.mxu0
        %v2493 = vadd.f32 0.0, %v2492
        %2494 = vmatmul.f32.gmra.mxu0 %v2248
        %v2495 = vpop.f32.mrf.mxu0
        %v2496 = vadd.f32 0.0, %v2495
        %2497 = vmatmul.f32.gmra.mxu0 %v2249
        %v2498 = vpop.f32.mrf.mxu0
        %v2499 = vadd.f32 0.0, %v2498
        %2500 = vdwg.mxu0
        %2501 = vmatpush.msra.mxu0 %v2419
        %2502 = vmatpush.msra.mxu0 %v2418
        %2503 = vmatpush.msra.mxu0 %v2417
        %2504 = vmatpush.msra.mxu0 %v2416
        %2505 = vmatpush.msra.mxu0 %v2415
        %2506 = vmatpush.msra.mxu0 %v2414
        %2507 = vmatpush.msra.mxu0 %v2413
        %2508 = vmatpush.msra.mxu0 %v2412
        %2509 = vmatpush.msra.mxu0 %v2411
        %2510 = vmatpush.msra.mxu0 %v2410
        %2511 = vmatpush.msra.mxu0 %v2409
        %2512 = vmatpush.msra.mxu0 %v2408
        %2513 = vmatpush.msra.mxu0 %v2407
        %2514 = vmatpush.msra.mxu0 %v2406
        %2515 = vmatpush.msra.mxu0 %v2405
        %2516 = vmatpush.msra.mxu0 %v2404
        %2517 = vmatmul.f32.gmra.mxu0 %v2277
        %v2518 = vpop.f32.mrf.mxu0
        %v2519 = vadd.f32 %v2454, %v2518
        %2520 = vmatmul.f32.gmra.mxu0 %v2279
        %v2521 = vpop.f32.mrf.mxu0
        %v2522 = vadd.f32 %v2457, %v2521
        %2523 = vmatmul.f32.gmra.mxu0 %v2282
        %v2524 = vpop.f32.mrf.mxu0
        %v2525 = vadd.f32 %v2460, %v2524
        %2526 = vmatmul.f32.gmra.mxu0 %v2284
        %v2527 = vpop.f32.mrf.mxu0
        %v2528 = vadd.f32 %v2463, %v2527
        %2529 = vmatmul.f32.gmra.mxu0 %v2287
        %v2530 = vpop.f32.mrf.mxu0
        %v2531 = vadd.f32 %v2466, %v2530
        %2532 = vmatmul.f32.gmra.mxu0 %v2289
        %v2533 = vpop.f32.mrf.mxu0
        %v2534 = vadd.f32 %v2469, %v2533
        %2535 = vmatmul.f32.gmra.mxu0 %v2292
        %v2536 = vpop.f32.mrf.mxu0
        %v2537 = vadd.f32 %v2472, %v2536
        %2538 = vmatmul.f32.gmra.mxu0 %v2294
        %v2539 = vpop.f32.mrf.mxu0
        %v2540 = vadd.f32 %v2475, %v2539
        %2541 = vmatmul.f32.gmra.mxu0 %v2297
        %v2542 = vpop.f32.mrf.mxu0
        %v2543 = vadd.f32 %v2478, %v2542
        %2544 = vmatmul.f32.gmra.mxu0 %v2299
        %v2545 = vpop.f32.mrf.mxu0
        %v2546 = vadd.f32 %v2481, %v2545
        %2547 = vmatmul.f32.gmra.mxu0 %v2302
        %v2548 = vpop.f32.mrf.mxu0
        %v2549 = vadd.f32 %v2484, %v2548
        %2550 = vmatmul.f32.gmra.mxu0 %v2304
        %v2551 = vpop.f32.mrf.mxu0
        %v2552 = vadd.f32 %v2487, %v2551
        %2553 = vmatmul.f32.gmra.mxu0 %v2307
        %v2554 = vpop.f32.mrf.mxu0
        %v2555 = vadd.f32 %v2490, %v2554
        %2556 = vmatmul.f32.gmra.mxu0 %v2309
        %v2557 = vpop.f32.mrf.mxu0
        %v2558 = vadd.f32 %v2493, %v2557
        %2559 = vmatmul.f32.gmra.mxu0 %v2312
        %v2560 = vpop.f32.mrf.mxu0
        %v2561 = vadd.f32 %v2496, %v2560
        %2562 = vmatmul.f32.gmra.mxu0 %v2314
        %v2563 = vpop.f32.mrf.mxu0
        %v2564 = vadd.f32 %v2499, %v2563
        %2565 = vdwg.mxu0
        %2566 = vmatpush.msra.mxu0 %v2435
        %2567 = vmatpush.msra.mxu0 %v2434
        %2568 = vmatpush.msra.mxu0 %v2433
        %2569 = vmatpush.msra.mxu0 %v2432
        %2570 = vmatpush.msra.mxu0 %v2431
        %2571 = vmatpush.msra.mxu0 %v2430
        %2572 = vmatpush.msra.mxu0 %v2429
        %2573 = vmatpush.msra.mxu0 %v2428
        %2574 = vmatpush.msra.mxu0 %v2427
        %2575 = vmatpush.msra.mxu0 %v2426
        %2576 = vmatpush.msra.mxu0 %v2425
        %2577 = vmatpush.msra.mxu0 %v2424
        %2578 = vmatpush.msra.mxu0 %v2423
        %2579 = vmatpush.msra.mxu0 %v2422
        %2580 = vmatpush.msra.mxu0 %v2421
        %2581 = vmatpush.msra.mxu0 %v2420
        %2582 = vmatmul.f32.gmra.mxu0 %v2333
        %v2583 = vpop.f32.mrf.mxu0
        %v2584 = vadd.f32 %v2519, %v2583
        %2585 = vmatmul.f32.gmra.mxu0 %v2335
        %v2586 = vpop.f32.mrf.mxu0
        %v2587 = vadd.f32 %v2522, %v2586
        %2588 = vmatmul.f32.gmra.mxu0 %v2338
        %v2589 = vpop.f32.mrf.mxu0
        %v2590 = vadd.f32 %v2525, %v2589
        %2591 = vmatmul.f32.gmra.mxu0 %v2340
        %v2592 = vpop.f32.mrf.mxu0
        %v2593 = vadd.f32 %v2528, %v2592
        %2594 = vmatmul.f32.gmra.mxu0 %v2343
        %v2595 = vpop.f32.mrf.mxu0
        %v2596 = vadd.f32 %v2531, %v2595
        %2597 = vmatmul.f32.gmra.mxu0 %v2345
        %v2598 = vpop.f32.mrf.mxu0
        %v2599 = vadd.f32 %v2534, %v2598
        %2600 = vmatmul.f32.gmra.mxu0 %v2348
        %v2601 = vpop.f32.mrf.mxu0
        %v2602 = vadd.f32 %v2537, %v2601
        %2603 = vmatmul.f32.gmra.mxu0 %v2350
        %v2604 = vpop.f32.mrf.mxu0
        %v2605 = vadd.f32 %v2540, %v2604
        %2606 = vmatmul.f32.gmra.mxu0 %v2353
        %v2607 = vpop.f32.mrf.mxu0
        %v2608 = vadd.f32 %v2543, %v2607
        %2609 = vmatmul.f32.gmra.mxu0 %v2355
        %v2610 = vpop.f32.mrf.mxu0
        %v2611 = vadd.f32 %v2546, %v2610
        %2612 = vmatmul.f32.gmra.mxu0 %v2358
        %v2613 = vpop.f32.mrf.mxu0
        %v2614 = vadd.f32 %v2549, %v2613
        %2615 = vmatmul.f32.gmra.mxu0 %v2360
        %v2616 = vpop.f32.mrf.mxu0
        %v2617 = vadd.f32 %v2552, %v2616
        %2618 = vmatmul.f32.gmra.mxu0 %v2363
        %v2619 = vpop.f32.mrf.mxu0
        %v2620 = vadd.f32 %v2555, %v2619
        %2621 = vmatmul.f32.gmra.mxu0 %v2365
        %v2622 = vpop.f32.mrf.mxu0
        %v2623 = vadd.f32 %v2558, %v2622
        %2624 = vmatmul.f32.gmra.mxu0 %v2368
        %v2625 = vpop.f32.mrf.mxu0
        %v2626 = vadd.f32 %v2561, %v2625
        %2627 = vmatmul.f32.gmra.mxu0 %v2370
        %v2628 = vpop.f32.mrf.mxu0
        %v2629 = vadd.f32 %v2564, %v2628
        %2630 = vdwg.mxu0
        %2631 = vst [vmem:[#allocation4] sm:$0xff] %v2584
        %2632 = vst [vmem:[#allocation4 + $0x8] sm:$0xff] %v2587
        %2633 = vst [vmem:[#allocation4 + $0x10] sm:$0xff] %v2590
        %2634 = vst [vmem:[#allocation4 + $0x18] sm:$0xff] %v2593
        %2635 = vst [vmem:[#allocation4 + $0x20] sm:$0xff] %v2596
        %2636 = vst [vmem:[#allocation4 + $0x28] sm:$0xff] %v2599
        %2637 = vst [vmem:[#allocation4 + $0x30] sm:$0xff] %v2602
        %2638 = vst [vmem:[#allocation4 + $0x38] sm:$0xff] %v2605
        %2639 = vst [vmem:[#allocation4 + $0x40] sm:$0xff] %v2608
        %2640 = vst [vmem:[#allocation4 + $0x48] sm:$0xff] %v2611
        %2641 = vst [vmem:[#allocation4 + $0x50] sm:$0xff] %v2614
        %2642 = vst [vmem:[#allocation4 + $0x58] sm:$0xff] %v2617
        %2643 = vst [vmem:[#allocation4 + $0x60] sm:$0xff] %v2620
        %2644 = vst [vmem:[#allocation4 + $0x68] sm:$0xff] %v2623
        %2645 = vst [vmem:[#allocation4 + $0x70] sm:$0xff] %v2626
        %2646 = vst [vmem:[#allocation4 + $0x78] sm:$0xff] %v2629
        %s2647 = scalar_lea.vmem [#allocation3], 48
        %v2648 = vld [vmem:[%s2647] sm:$0xff]
        %v2649 = vld [vmem:[%s2647 + $0x8] sm:$0xff]
        %v2650 = vld [vmem:[%s2647 + $0x10] sm:$0x3]
        %v2651 = vld [vmem:[%s2647 + $0x18] sm:$0xff]
        %v2652 = vld [vmem:[%s2647 + $0x20] sm:$0xff]
        %v2653 = vld [vmem:[%s2647 + $0x28] sm:$0x3]
        %v2654 = vld [vmem:[%s2647 + $0x30] sm:$0xff]
        %v2655 = vld [vmem:[%s2647 + $0x38] sm:$0xff]
        %v2656 = vld [vmem:[%s2647 + $0x40] sm:$0x3]
        %v2657 = vld [vmem:[%s2647 + $0x48] sm:$0xff]
        %v2658 = vld [vmem:[%s2647 + $0x50] sm:$0xff]
        %v2659 = vld [vmem:[%s2647 + $0x58] sm:$0x3]
        %v2660 = vld [vmem:[%s2647 + $0x60] sm:$0xff]
        %v2661 = vld [vmem:[%s2647 + $0x68] sm:$0xff]
        %v2662 = vld [vmem:[%s2647 + $0x70] sm:$0x3]
        %v2663 = vld [vmem:[%s2647 + $0x78] sm:$0xff]
        %v2664 = vld [vmem:[%s2647 + $0x80] sm:$0xff]
        %v2665 = vld [vmem:[%s2647 + $0x88] sm:$0x3]
        %v2666 = vld [vmem:[%s2647 + $0x90] sm:$0xff]
        %v2667 = vld [vmem:[%s2647 + $0x98] sm:$0xff]
        %v2668 = vld [vmem:[%s2647 + $0xa0] sm:$0x3]
        %v2669 = vld [vmem:[%s2647 + $0xa8] sm:$0xff]
        %v2670 = vld [vmem:[%s2647 + $0xb0] sm:$0xff]
        %v2671 = vld [vmem:[%s2647 + $0xb8] sm:$0x3]
        %v2696 = vrot.slane %v2648, 1
        %v2697 = vrot.slane %v2649, 1
        %v2698 = vsel %vm629, %v2696, %v2697
        %v2699 = vrot.slane %v2650, 1
        %v2700 = vsel %vm629, %v2697, %v2699
        %v2701 = vrot.slane %v2651, 1
        %v2702 = vrot.slane %v2652, 1
        %v2703 = vsel %vm629, %v2701, %v2702
        %v2704 = vrot.slane %v2653, 1
        %v2705 = vsel %vm629, %v2702, %v2704
        %v2706 = vrot.slane %v2654, 1
        %v2707 = vrot.slane %v2655, 1
        %v2708 = vsel %vm629, %v2706, %v2707
        %v2709 = vrot.slane %v2656, 1
        %v2710 = vsel %vm629, %v2707, %v2709
        %v2711 = vrot.slane %v2657, 1
        %v2712 = vrot.slane %v2658, 1
        %v2713 = vsel %vm629, %v2711, %v2712
        %v2714 = vrot.slane %v2659, 1
        %v2715 = vsel %vm629, %v2712, %v2714
        %v2716 = vrot.slane %v2660, 1
        %v2717 = vrot.slane %v2661, 1
        %v2718 = vsel %vm629, %v2716, %v2717
        %v2719 = vrot.slane %v2662, 1
        %v2720 = vsel %vm629, %v2717, %v2719
        %v2721 = vrot.slane %v2663, 1
        %v2722 = vrot.slane %v2664, 1
        %v2723 = vsel %vm629, %v2721, %v2722
        %v2724 = vrot.slane %v2665, 1
        %v2725 = vsel %vm629, %v2722, %v2724
        %v2726 = vrot.slane %v2666, 1
        %v2727 = vrot.slane %v2667, 1
        %v2728 = vsel %vm629, %v2726, %v2727
        %v2729 = vrot.slane %v2668, 1
        %v2730 = vsel %vm629, %v2727, %v2729
        %v2731 = vrot.slane %v2669, 1
        %v2732 = vrot.slane %v2670, 1
        %v2733 = vsel %vm629, %v2731, %v2732
        %v2734 = vrot.slane %v2671, 1
        %v2735 = vsel %vm629, %v2732, %v2734
        %v2752 = vrot.slane %v2648, 2
        %v2753 = vrot.slane %v2649, 2
        %v2754 = vsel %vm700, %v2752, %v2753
        %v2755 = vrot.slane %v2650, 2
        %v2756 = vsel %vm700, %v2753, %v2755
        %v2757 = vrot.slane %v2651, 2
        %v2758 = vrot.slane %v2652, 2
        %v2759 = vsel %vm700, %v2757, %v2758
        %v2760 = vrot.slane %v2653, 2
        %v2761 = vsel %vm700, %v2758, %v2760
        %v2762 = vrot.slane %v2654, 2
        %v2763 = vrot.slane %v2655, 2
        %v2764 = vsel %vm700, %v2762, %v2763
        %v2765 = vrot.slane %v2656, 2
        %v2766 = vsel %vm700, %v2763, %v2765
        %v2767 = vrot.slane %v2657, 2
        %v2768 = vrot.slane %v2658, 2
        %v2769 = vsel %vm700, %v2767, %v2768
        %v2770 = vrot.slane %v2659, 2
        %v2771 = vsel %vm700, %v2768, %v2770
        %v2772 = vrot.slane %v2660, 2
        %v2773 = vrot.slane %v2661, 2
        %v2774 = vsel %vm700, %v2772, %v2773
        %v2775 = vrot.slane %v2662, 2
        %v2776 = vsel %vm700, %v2773, %v2775
        %v2777 = vrot.slane %v2663, 2
        %v2778 = vrot.slane %v2664, 2
        %v2779 = vsel %vm700, %v2777, %v2778
        %v2780 = vrot.slane %v2665, 2
        %v2781 = vsel %vm700, %v2778, %v2780
        %v2782 = vrot.slane %v2666, 2
        %v2783 = vrot.slane %v2667, 2
        %v2784 = vsel %vm700, %v2782, %v2783
        %v2785 = vrot.slane %v2668, 2
        %v2786 = vsel %vm700, %v2783, %v2785
        %v2787 = vrot.slane %v2669, 2
        %v2788 = vrot.slane %v2670, 2
        %v2789 = vsel %vm700, %v2787, %v2788
        %v2790 = vrot.slane %v2671, 2
        %v2791 = vsel %vm700, %v2788, %v2790
        %s2808 = scalar_lea.vmem [#allocation11], 1536
        %v2809 = vld [vmem:[%s2808] sm:$0xff]
        %v2810 = vld [vmem:[%s2808 + $0x8] sm:$0xff]
        %v2811 = vld [vmem:[%s2808 + $0x10] sm:$0xff]
        %v2812 = vld [vmem:[%s2808 + $0x18] sm:$0xff]
        %v2813 = vld [vmem:[%s2808 + $0x20] sm:$0xff]
        %v2814 = vld [vmem:[%s2808 + $0x28] sm:$0xff]
        %v2815 = vld [vmem:[%s2808 + $0x30] sm:$0xff]
        %v2816 = vld [vmem:[%s2808 + $0x38] sm:$0xff]
        %v2817 = vld [vmem:[%s2808 + $0x40] sm:$0xff]
        %v2818 = vld [vmem:[%s2808 + $0x48] sm:$0xff]
        %v2819 = vld [vmem:[%s2808 + $0x50] sm:$0xff]
        %v2820 = vld [vmem:[%s2808 + $0x58] sm:$0xff]
        %v2821 = vld [vmem:[%s2808 + $0x60] sm:$0xff]
        %v2822 = vld [vmem:[%s2808 + $0x68] sm:$0xff]
        %v2823 = vld [vmem:[%s2808 + $0x70] sm:$0xff]
        %v2824 = vld [vmem:[%s2808 + $0x78] sm:$0xff]
        %v2825 = vld [vmem:[%s2808 + $0x80] sm:$0xff]
        %v2826 = vld [vmem:[%s2808 + $0x88] sm:$0xff]
        %v2827 = vld [vmem:[%s2808 + $0x90] sm:$0xff]
        %v2828 = vld [vmem:[%s2808 + $0x98] sm:$0xff]
        %v2829 = vld [vmem:[%s2808 + $0xa0] sm:$0xff]
        %v2830 = vld [vmem:[%s2808 + $0xa8] sm:$0xff]
        %v2831 = vld [vmem:[%s2808 + $0xb0] sm:$0xff]
        %v2832 = vld [vmem:[%s2808 + $0xb8] sm:$0xff]
        %v2833 = vld [vmem:[%s2808 + $0xc0] sm:$0xff]
        %v2834 = vld [vmem:[%s2808 + $0xc8] sm:$0xff]
        %v2835 = vld [vmem:[%s2808 + $0xd0] sm:$0xff]
        %v2836 = vld [vmem:[%s2808 + $0xd8] sm:$0xff]
        %v2837 = vld [vmem:[%s2808 + $0xe0] sm:$0xff]
        %v2838 = vld [vmem:[%s2808 + $0xe8] sm:$0xff]
        %v2839 = vld [vmem:[%s2808 + $0xf0] sm:$0xff]
        %v2840 = vld [vmem:[%s2808 + $0xf8] sm:$0xff]
        %v2841 = vld [vmem:[%s2808 + $0x100] sm:$0xff]
        %v2842 = vld [vmem:[%s2808 + $0x108] sm:$0xff]
        %v2843 = vld [vmem:[%s2808 + $0x110] sm:$0xff]
        %v2844 = vld [vmem:[%s2808 + $0x118] sm:$0xff]
        %v2845 = vld [vmem:[%s2808 + $0x120] sm:$0xff]
        %v2846 = vld [vmem:[%s2808 + $0x128] sm:$0xff]
        %v2847 = vld [vmem:[%s2808 + $0x130] sm:$0xff]
        %v2848 = vld [vmem:[%s2808 + $0x138] sm:$0xff]
        %v2849 = vld [vmem:[%s2808 + $0x140] sm:$0xff]
        %v2850 = vld [vmem:[%s2808 + $0x148] sm:$0xff]
        %v2851 = vld [vmem:[%s2808 + $0x150] sm:$0xff]
        %v2852 = vld [vmem:[%s2808 + $0x158] sm:$0xff]
        %v2853 = vld [vmem:[%s2808 + $0x160] sm:$0xff]
        %v2854 = vld [vmem:[%s2808 + $0x168] sm:$0xff]
        %v2855 = vld [vmem:[%s2808 + $0x170] sm:$0xff]
        %v2856 = vld [vmem:[%s2808 + $0x178] sm:$0xff]
        %2857 = vmatpush.msra.mxu0 %v2824
        %2858 = vmatpush.msra.mxu0 %v2823
        %2859 = vmatpush.msra.mxu0 %v2822
        %2860 = vmatpush.msra.mxu0 %v2821
        %2861 = vmatpush.msra.mxu0 %v2820
        %2862 = vmatpush.msra.mxu0 %v2819
        %2863 = vmatpush.msra.mxu0 %v2818
        %2864 = vmatpush.msra.mxu0 %v2817
        %2865 = vmatpush.msra.mxu0 %v2816
        %2866 = vmatpush.msra.mxu0 %v2815
        %2867 = vmatpush.msra.mxu0 %v2814
        %2868 = vmatpush.msra.mxu0 %v2813
        %2869 = vmatpush.msra.mxu0 %v2812
        %2870 = vmatpush.msra.mxu0 %v2811
        %2871 = vmatpush.msra.mxu0 %v2810
        %2872 = vmatpush.msra.mxu0 %v2809
        %2873 = vmatmul.f32.gmra.mxu0 %v2648
        %v2874 = vpop.f32.mrf.mxu0
        %v2875 = vadd.f32 0.0, %v2874
        %2876 = vmatmul.f32.gmra.mxu0 %v2649
        %v2877 = vpop.f32.mrf.mxu0
        %v2878 = vadd.f32 0.0, %v2877
        %2879 = vmatmul.f32.gmra.mxu0 %v2651
        %v2880 = vpop.f32.mrf.mxu0
        %v2881 = vadd.f32 0.0, %v2880
        %2882 = vmatmul.f32.gmra.mxu0 %v2652
        %v2883 = vpop.f32.mrf.mxu0
        %v2884 = vadd.f32 0.0, %v2883
        %2885 = vmatmul.f32.gmra.mxu0 %v2654
        %v2886 = vpop.f32.mrf.mxu0
        %v2887 = vadd.f32 0.0, %v2886
        %2888 = vmatmul.f32.gmra.mxu0 %v2655
        %v2889 = vpop.f32.mrf.mxu0
        %v2890 = vadd.f32 0.0, %v2889
        %2891 = vmatmul.f32.gmra.mxu0 %v2657
        %v2892 = vpop.f32.mrf.mxu0
        %v2893 = vadd.f32 0.0, %v2892
        %2894 = vmatmul.f32.gmra.mxu0 %v2658
        %v2895 = vpop.f32.mrf.mxu0
        %v2896 = vadd.f32 0.0, %v2895
        %2897 = vmatmul.f32.gmra.mxu0 %v2660
        %v2898 = vpop.f32.mrf.mxu0
        %v2899 = vadd.f32 0.0, %v2898
        %2900 = vmatmul.f32.gmra.mxu0 %v2661
        %v2901 = vpop.f32.mrf.mxu0
        %v2902 = vadd.f32 0.0, %v2901
        %2903 = vmatmul.f32.gmra.mxu0 %v2663
        %v2904 = vpop.f32.mrf.mxu0
        %v2905 = vadd.f32 0.0, %v2904
        %2906 = vmatmul.f32.gmra.mxu0 %v2664
        %v2907 = vpop.f32.mrf.mxu0
        %v2908 = vadd.f32 0.0, %v2907
        %2909 = vmatmul.f32.gmra.mxu0 %v2666
        %v2910 = vpop.f32.mrf.mxu0
        %v2911 = vadd.f32 0.0, %v2910
        %2912 = vmatmul.f32.gmra.mxu0 %v2667
        %v2913 = vpop.f32.mrf.mxu0
        %v2914 = vadd.f32 0.0, %v2913
        %2915 = vmatmul.f32.gmra.mxu0 %v2669
        %v2916 = vpop.f32.mrf.mxu0
        %v2917 = vadd.f32 0.0, %v2916
        %2918 = vmatmul.f32.gmra.mxu0 %v2670
        %v2919 = vpop.f32.mrf.mxu0
        %v2920 = vadd.f32 0.0, %v2919
        %2921 = vdwg.mxu0
        %2922 = vmatpush.msra.mxu0 %v2840
        %2923 = vmatpush.msra.mxu0 %v2839
        %2924 = vmatpush.msra.mxu0 %v2838
        %2925 = vmatpush.msra.mxu0 %v2837
        %2926 = vmatpush.msra.mxu0 %v2836
        %2927 = vmatpush.msra.mxu0 %v2835
        %2928 = vmatpush.msra.mxu0 %v2834
        %2929 = vmatpush.msra.mxu0 %v2833
        %2930 = vmatpush.msra.mxu0 %v2832
        %2931 = vmatpush.msra.mxu0 %v2831
        %2932 = vmatpush.msra.mxu0 %v2830
        %2933 = vmatpush.msra.mxu0 %v2829
        %2934 = vmatpush.msra.mxu0 %v2828
        %2935 = vmatpush.msra.mxu0 %v2827
        %2936 = vmatpush.msra.mxu0 %v2826
        %2937 = vmatpush.msra.mxu0 %v2825
        %2938 = vmatmul.f32.gmra.mxu0 %v2698
        %v2939 = vpop.f32.mrf.mxu0
        %v2940 = vadd.f32 %v2875, %v2939
        %2941 = vmatmul.f32.gmra.mxu0 %v2700
        %v2942 = vpop.f32.mrf.mxu0
        %v2943 = vadd.f32 %v2878, %v2942
        %2944 = vmatmul.f32.gmra.mxu0 %v2703
        %v2945 = vpop.f32.mrf.mxu0
        %v2946 = vadd.f32 %v2881, %v2945
        %2947 = vmatmul.f32.gmra.mxu0 %v2705
        %v2948 = vpop.f32.mrf.mxu0
        %v2949 = vadd.f32 %v2884, %v2948
        %2950 = vmatmul.f32.gmra.mxu0 %v2708
        %v2951 = vpop.f32.mrf.mxu0
        %v2952 = vadd.f32 %v2887, %v2951
        %2953 = vmatmul.f32.gmra.mxu0 %v2710
        %v2954 = vpop.f32.mrf.mxu0
        %v2955 = vadd.f32 %v2890, %v2954
        %2956 = vmatmul.f32.gmra.mxu0 %v2713
        %v2957 = vpop.f32.mrf.mxu0
        %v2958 = vadd.f32 %v2893, %v2957
        %2959 = vmatmul.f32.gmra.mxu0 %v2715
        %v2960 = vpop.f32.mrf.mxu0
        %v2961 = vadd.f32 %v2896, %v2960
        %2962 = vmatmul.f32.gmra.mxu0 %v2718
        %v2963 = vpop.f32.mrf.mxu0
        %v2964 = vadd.f32 %v2899, %v2963
        %2965 = vmatmul.f32.gmra.mxu0 %v2720
        %v2966 = vpop.f32.mrf.mxu0
        %v2967 = vadd.f32 %v2902, %v2966
        %2968 = vmatmul.f32.gmra.mxu0 %v2723
        %v2969 = vpop.f32.mrf.mxu0
        %v2970 = vadd.f32 %v2905, %v2969
        %2971 = vmatmul.f32.gmra.mxu0 %v2725
        %v2972 = vpop.f32.mrf.mxu0
        %v2973 = vadd.f32 %v2908, %v2972
        %2974 = vmatmul.f32.gmra.mxu0 %v2728
        %v2975 = vpop.f32.mrf.mxu0
        %v2976 = vadd.f32 %v2911, %v2975
        %2977 = vmatmul.f32.gmra.mxu0 %v2730
        %v2978 = vpop.f32.mrf.mxu0
        %v2979 = vadd.f32 %v2914, %v2978
        %2980 = vmatmul.f32.gmra.mxu0 %v2733
        %v2981 = vpop.f32.mrf.mxu0
        %v2982 = vadd.f32 %v2917, %v2981
        %2983 = vmatmul.f32.gmra.mxu0 %v2735
        %v2984 = vpop.f32.mrf.mxu0
        %v2985 = vadd.f32 %v2920, %v2984
        %2986 = vdwg.mxu0
        %2987 = vmatpush.msra.mxu0 %v2856
        %2988 = vmatpush.msra.mxu0 %v2855
        %2989 = vmatpush.msra.mxu0 %v2854
        %2990 = vmatpush.msra.mxu0 %v2853
        %2991 = vmatpush.msra.mxu0 %v2852
        %2992 = vmatpush.msra.mxu0 %v2851
        %2993 = vmatpush.msra.mxu0 %v2850
        %2994 = vmatpush.msra.mxu0 %v2849
        %2995 = vmatpush.msra.mxu0 %v2848
        %2996 = vmatpush.msra.mxu0 %v2847
        %2997 = vmatpush.msra.mxu0 %v2846
        %2998 = vmatpush.msra.mxu0 %v2845
        %2999 = vmatpush.msra.mxu0 %v2844
        %3000 = vmatpush.msra.mxu0 %v2843
        %3001 = vmatpush.msra.mxu0 %v2842
        %3002 = vmatpush.msra.mxu0 %v2841
        %3003 = vmatmul.f32.gmra.mxu0 %v2754
        %v3004 = vpop.f32.mrf.mxu0
        %v3005 = vadd.f32 %v2940, %v3004
        %3006 = vmatmul.f32.gmra.mxu0 %v2756
        %v3007 = vpop.f32.mrf.mxu0
        %v3008 = vadd.f32 %v2943, %v3007
        %3009 = vmatmul.f32.gmra.mxu0 %v2759
        %v3010 = vpop.f32.mrf.mxu0
        %v3011 = vadd.f32 %v2946, %v3010
        %3012 = vmatmul.f32.gmra.mxu0 %v2761
        %v3013 = vpop.f32.mrf.mxu0
        %v3014 = vadd.f32 %v2949, %v3013
        %3015 = vmatmul.f32.gmra.mxu0 %v2764
        %v3016 = vpop.f32.mrf.mxu0
        %v3017 = vadd.f32 %v2952, %v3016
        %3018 = vmatmul.f32.gmra.mxu0 %v2766
        %v3019 = vpop.f32.mrf.mxu0
        %v3020 = vadd.f32 %v2955, %v3019
        %3021 = vmatmul.f32.gmra.mxu0 %v2769
        %v3022 = vpop.f32.mrf.mxu0
        %v3023 = vadd.f32 %v2958, %v3022
        %3024 = vmatmul.f32.gmra.mxu0 %v2771
        %v3025 = vpop.f32.mrf.mxu0
        %v3026 = vadd.f32 %v2961, %v3025
        %3027 = vmatmul.f32.gmra.mxu0 %v2774
        %v3028 = vpop.f32.mrf.mxu0
        %v3029 = vadd.f32 %v2964, %v3028
        %3030 = vmatmul.f32.gmra.mxu0 %v2776
        %v3031 = vpop.f32.mrf.mxu0
        %v3032 = vadd.f32 %v2967, %v3031
        %3033 = vmatmul.f32.gmra.mxu0 %v2779
        %v3034 = vpop.f32.mrf.mxu0
        %v3035 = vadd.f32 %v2970, %v3034
        %3036 = vmatmul.f32.gmra.mxu0 %v2781
        %v3037 = vpop.f32.mrf.mxu0
        %v3038 = vadd.f32 %v2973, %v3037
        %3039 = vmatmul.f32.gmra.mxu0 %v2784
        %v3040 = vpop.f32.mrf.mxu0
        %v3041 = vadd.f32 %v2976, %v3040
        %3042 = vmatmul.f32.gmra.mxu0 %v2786
        %v3043 = vpop.f32.mrf.mxu0
        %v3044 = vadd.f32 %v2979, %v3043
        %3045 = vmatmul.f32.gmra.mxu0 %v2789
        %v3046 = vpop.f32.mrf.mxu0
        %v3047 = vadd.f32 %v2982, %v3046
        %3048 = vmatmul.f32.gmra.mxu0 %v2791
        %v3049 = vpop.f32.mrf.mxu0
        %v3050 = vadd.f32 %v2985, %v3049
        %3051 = vdwg.mxu0
        %v3052 = vld [vmem:[#allocation4] sm:$0xff]
        %v3053 = vld [vmem:[#allocation4 + $0x8] sm:$0xff]
        %v3054 = vld [vmem:[#allocation4 + $0x10] sm:$0xff]
        %v3055 = vld [vmem:[#allocation4 + $0x18] sm:$0xff]
        %v3056 = vld [vmem:[#allocation4 + $0x20] sm:$0xff]
        %v3057 = vld [vmem:[#allocation4 + $0x28] sm:$0xff]
        %v3058 = vld [vmem:[#allocation4 + $0x30] sm:$0xff]
        %v3059 = vld [vmem:[#allocation4 + $0x38] sm:$0xff]
        %v3060 = vld [vmem:[#allocation4 + $0x40] sm:$0xff]
        %v3061 = vld [vmem:[#allocation4 + $0x48] sm:$0xff]
        %v3062 = vld [vmem:[#allocation4 + $0x50] sm:$0xff]
        %v3063 = vld [vmem:[#allocation4 + $0x58] sm:$0xff]
        %v3064 = vld [vmem:[#allocation4 + $0x60] sm:$0xff]
        %v3065 = vld [vmem:[#allocation4 + $0x68] sm:$0xff]
        %v3066 = vld [vmem:[#allocation4 + $0x70] sm:$0xff]
        %v3067 = vld [vmem:[#allocation4 + $0x78] sm:$0xff]
        %v3068 = vadd.f32 %v3052, %v3005
        %v3069 = vadd.f32 %v3053, %v3008
        %v3070 = vadd.f32 %v3054, %v3011
        %v3071 = vadd.f32 %v3055, %v3014
        %v3072 = vadd.f32 %v3056, %v3017
        %v3073 = vadd.f32 %v3057, %v3020
        %v3074 = vadd.f32 %v3058, %v3023
        %v3075 = vadd.f32 %v3059, %v3026
        %v3076 = vadd.f32 %v3060, %v3029
        %v3077 = vadd.f32 %v3061, %v3032
        %v3078 = vadd.f32 %v3062, %v3035
        %v3079 = vadd.f32 %v3063, %v3038
        %v3080 = vadd.f32 %v3064, %v3041
        %v3081 = vadd.f32 %v3065, %v3044
        %v3082 = vadd.f32 %v3066, %v3047
        %v3083 = vadd.f32 %v3067, %v3050
        %3084 = vst [vmem:[#allocation4] sm:$0xff] %v3068
        %3085 = vst [vmem:[#allocation4 + $0x8] sm:$0xff] %v3069
        %3086 = vst [vmem:[#allocation4 + $0x10] sm:$0xff] %v3070
        %3087 = vst [vmem:[#allocation4 + $0x18] sm:$0xff] %v3071
        %3088 = vst [vmem:[#allocation4 + $0x20] sm:$0xff] %v3072
        %3089 = vst [vmem:[#allocation4 + $0x28] sm:$0xff] %v3073
        %3090 = vst [vmem:[#allocation4 + $0x30] sm:$0xff] %v3074
        %3091 = vst [vmem:[#allocation4 + $0x38] sm:$0xff] %v3075
        %3092 = vst [vmem:[#allocation4 + $0x40] sm:$0xff] %v3076
        %3093 = vst [vmem:[#allocation4 + $0x48] sm:$0xff] %v3077
        %3094 = vst [vmem:[#allocation4 + $0x50] sm:$0xff] %v3078
        %3095 = vst [vmem:[#allocation4 + $0x58] sm:$0xff] %v3079
        %3096 = vst [vmem:[#allocation4 + $0x60] sm:$0xff] %v3080
        %3097 = vst [vmem:[#allocation4 + $0x68] sm:$0xff] %v3081
        %3098 = vst [vmem:[#allocation4 + $0x70] sm:$0xff] %v3082
        %3099 = vst [vmem:[#allocation4 + $0x78] sm:$0xff] %v3083
        %s3100 = scalar_lea.vmem [#allocation3], 72
        %v3101 = vld [vmem:[%s3100] sm:$0xff]
        %v3102 = vld [vmem:[%s3100 + $0x8] sm:$0xff]
        %v3103 = vld [vmem:[%s3100 + $0x10] sm:$0x3]
        %v3104 = vld [vmem:[%s3100 + $0x18] sm:$0xff]
        %v3105 = vld [vmem:[%s3100 + $0x20] sm:$0xff]
        %v3106 = vld [vmem:[%s3100 + $0x28] sm:$0x3]
        %v3107 = vld [vmem:[%s3100 + $0x30] sm:$0xff]
        %v3108 = vld [vmem:[%s3100 + $0x38] sm:$0xff]
        %v3109 = vld [vmem:[%s3100 + $0x40] sm:$0x3]
        %v3110 = vld [vmem:[%s3100 + $0x48] sm:$0xff]
        %v3111 = vld [vmem:[%s3100 + $0x50] sm:$0xff]
        %v3112 = vld [vmem:[%s3100 + $0x58] sm:$0x3]
        %v3113 = vld [vmem:[%s3100 + $0x60] sm:$0xff]
        %v3114 = vld [vmem:[%s3100 + $0x68] sm:$0xff]
        %v3115 = vld [vmem:[%s3100 + $0x70] sm:$0x3]
        %v3116 = vld [vmem:[%s3100 + $0x78] sm:$0xff]
        %v3117 = vld [vmem:[%s3100 + $0x80] sm:$0xff]
        %v3118 = vld [vmem:[%s3100 + $0x88] sm:$0x3]
        %v3119 = vld [vmem:[%s3100 + $0x90] sm:$0xff]
        %v3120 = vld [vmem:[%s3100 + $0x98] sm:$0xff]
        %v3121 = vld [vmem:[%s3100 + $0xa0] sm:$0x3]
        %v3122 = vld [vmem:[%s3100 + $0xa8] sm:$0xff]
        %v3123 = vld [vmem:[%s3100 + $0xb0] sm:$0xff]
        %v3124 = vld [vmem:[%s3100 + $0xb8] sm:$0x3]
        %v3149 = vrot.slane %v3101, 1
        %v3150 = vrot.slane %v3102, 1
        %v3151 = vsel %vm629, %v3149, %v3150
        %v3152 = vrot.slane %v3103, 1
        %v3153 = vsel %vm629, %v3150, %v3152
        %v3154 = vrot.slane %v3104, 1
        %v3155 = vrot.slane %v3105, 1
        %v3156 = vsel %vm629, %v3154, %v3155
        %v3157 = vrot.slane %v3106, 1
        %v3158 = vsel %vm629, %v3155, %v3157
        %v3159 = vrot.slane %v3107, 1
        %v3160 = vrot.slane %v3108, 1
        %v3161 = vsel %vm629, %v3159, %v3160
        %v3162 = vrot.slane %v3109, 1
        %v3163 = vsel %vm629, %v3160, %v3162
        %v3164 = vrot.slane %v3110, 1
        %v3165 = vrot.slane %v3111, 1
        %v3166 = vsel %vm629, %v3164, %v3165
        %v3167 = vrot.slane %v3112, 1
        %v3168 = vsel %vm629, %v3165, %v3167
        %v3169 = vrot.slane %v3113, 1
        %v3170 = vrot.slane %v3114, 1
        %v3171 = vsel %vm629, %v3169, %v3170
        %v3172 = vrot.slane %v3115, 1
        %v3173 = vsel %vm629, %v3170, %v3172
        %v3174 = vrot.slane %v3116, 1
        %v3175 = vrot.slane %v3117, 1
        %v3176 = vsel %vm629, %v3174, %v3175
        %v3177 = vrot.slane %v3118, 1
        %v3178 = vsel %vm629, %v3175, %v3177
        %v3179 = vrot.slane %v3119, 1
        %v3180 = vrot.slane %v3120, 1
        %v3181 = vsel %vm629, %v3179, %v3180
        %v3182 = vrot.slane %v3121, 1
        %v3183 = vsel %vm629, %v3180, %v3182
        %v3184 = vrot.slane %v3122, 1
        %v3185 = vrot.slane %v3123, 1
        %v3186 = vsel %vm629, %v3184, %v3185
        %v3187 = vrot.slane %v3124, 1
        %v3188 = vsel %vm629, %v3185, %v3187
        %v3205 = vrot.slane %v3101, 2
        %v3206 = vrot.slane %v3102, 2
        %v3207 = vsel %vm700, %v3205, %v3206
        %v3208 = vrot.slane %v3103, 2
        %v3209 = vsel %vm700, %v3206, %v3208
        %v3210 = vrot.slane %v3104, 2
        %v3211 = vrot.slane %v3105, 2
        %v3212 = vsel %vm700, %v3210, %v3211
        %v3213 = vrot.slane %v3106, 2
        %v3214 = vsel %vm700, %v3211, %v3213
        %v3215 = vrot.slane %v3107, 2
        %v3216 = vrot.slane %v3108, 2
        %v3217 = vsel %vm700, %v3215, %v3216
        %v3218 = vrot.slane %v3109, 2
        %v3219 = vsel %vm700, %v3216, %v3218
        %v3220 = vrot.slane %v3110, 2
        %v3221 = vrot.slane %v3111, 2
        %v3222 = vsel %vm700, %v3220, %v3221
        %v3223 = vrot.slane %v3112, 2
        %v3224 = vsel %vm700, %v3221, %v3223
        %v3225 = vrot.slane %v3113, 2
        %v3226 = vrot.slane %v3114, 2
        %v3227 = vsel %vm700, %v3225, %v3226
        %v3228 = vrot.slane %v3115, 2
        %v3229 = vsel %vm700, %v3226, %v3228
        %v3230 = vrot.slane %v3116, 2
        %v3231 = vrot.slane %v3117, 2
        %v3232 = vsel %vm700, %v3230, %v3231
        %v3233 = vrot.slane %v3118, 2
        %v3234 = vsel %vm700, %v3231, %v3233
        %v3235 = vrot.slane %v3119, 2
        %v3236 = vrot.slane %v3120, 2
        %v3237 = vsel %vm700, %v3235, %v3236
        %v3238 = vrot.slane %v3121, 2
        %v3239 = vsel %vm700, %v3236, %v3238
        %v3240 = vrot.slane %v3122, 2
        %v3241 = vrot.slane %v3123, 2
        %v3242 = vsel %vm700, %v3240, %v3241
        %v3243 = vrot.slane %v3124, 2
        %v3244 = vsel %vm700, %v3241, %v3243
        %s3261 = scalar_lea.vmem [#allocation11], 1920
        %v3262 = vld [vmem:[%s3261] sm:$0xff]
        %v3263 = vld [vmem:[%s3261 + $0x8] sm:$0xff]
        %v3264 = vld [vmem:[%s3261 + $0x10] sm:$0xff]
        %v3265 = vld [vmem:[%s3261 + $0x18] sm:$0xff]
        %v3266 = vld [vmem:[%s3261 + $0x20] sm:$0xff]
        %v3267 = vld [vmem:[%s3261 + $0x28] sm:$0xff]
        %v3268 = vld [vmem:[%s3261 + $0x30] sm:$0xff]
        %v3269 = vld [vmem:[%s3261 + $0x38] sm:$0xff]
        %v3270 = vld [vmem:[%s3261 + $0x40] sm:$0xff]
        %v3271 = vld [vmem:[%s3261 + $0x48] sm:$0xff]
        %v3272 = vld [vmem:[%s3261 + $0x50] sm:$0xff]
        %v3273 = vld [vmem:[%s3261 + $0x58] sm:$0xff]
        %v3274 = vld [vmem:[%s3261 + $0x60] sm:$0xff]
        %v3275 = vld [vmem:[%s3261 + $0x68] sm:$0xff]
        %v3276 = vld [vmem:[%s3261 + $0x70] sm:$0xff]
        %v3277 = vld [vmem:[%s3261 + $0x78] sm:$0xff]
        %v3278 = vld [vmem:[%s3261 + $0x80] sm:$0xff]
        %v3279 = vld [vmem:[%s3261 + $0x88] sm:$0xff]
        %v3280 = vld [vmem:[%s3261 + $0x90] sm:$0xff]
        %v3281 = vld [vmem:[%s3261 + $0x98] sm:$0xff]
        %v3282 = vld [vmem:[%s3261 + $0xa0] sm:$0xff]
        %v3283 = vld [vmem:[%s3261 + $0xa8] sm:$0xff]
        %v3284 = vld [vmem:[%s3261 + $0xb0] sm:$0xff]
        %v3285 = vld [vmem:[%s3261 + $0xb8] sm:$0xff]
        %v3286 = vld [vmem:[%s3261 + $0xc0] sm:$0xff]
        %v3287 = vld [vmem:[%s3261 + $0xc8] sm:$0xff]
        %v3288 = vld [vmem:[%s3261 + $0xd0] sm:$0xff]
        %v3289 = vld [vmem:[%s3261 + $0xd8] sm:$0xff]
        %v3290 = vld [vmem:[%s3261 + $0xe0] sm:$0xff]
        %v3291 = vld [vmem:[%s3261 + $0xe8] sm:$0xff]
        %v3292 = vld [vmem:[%s3261 + $0xf0] sm:$0xff]
        %v3293 = vld [vmem:[%s3261 + $0xf8] sm:$0xff]
        %v3294 = vld [vmem:[%s3261 + $0x100] sm:$0xff]
        %v3295 = vld [vmem:[%s3261 + $0x108] sm:$0xff]
        %v3296 = vld [vmem:[%s3261 + $0x110] sm:$0xff]
        %v3297 = vld [vmem:[%s3261 + $0x118] sm:$0xff]
        %v3298 = vld [vmem:[%s3261 + $0x120] sm:$0xff]
        %v3299 = vld [vmem:[%s3261 + $0x128] sm:$0xff]
        %v3300 = vld [vmem:[%s3261 + $0x130] sm:$0xff]
        %v3301 = vld [vmem:[%s3261 + $0x138] sm:$0xff]
        %v3302 = vld [vmem:[%s3261 + $0x140] sm:$0xff]
        %v3303 = vld [vmem:[%s3261 + $0x148] sm:$0xff]
        %v3304 = vld [vmem:[%s3261 + $0x150] sm:$0xff]
        %v3305 = vld [vmem:[%s3261 + $0x158] sm:$0xff]
        %v3306 = vld [vmem:[%s3261 + $0x160] sm:$0xff]
        %v3307 = vld [vmem:[%s3261 + $0x168] sm:$0xff]
        %v3308 = vld [vmem:[%s3261 + $0x170] sm:$0xff]
        %v3309 = vld [vmem:[%s3261 + $0x178] sm:$0xff]
        %3310 = vmatpush.msra.mxu0 %v3277
        %3311 = vmatpush.msra.mxu0 %v3276
        %3312 = vmatpush.msra.mxu0 %v3275
        %3313 = vmatpush.msra.mxu0 %v3274
        %3314 = vmatpush.msra.mxu0 %v3273
        %3315 = vmatpush.msra.mxu0 %v3272
        %3316 = vmatpush.msra.mxu0 %v3271
        %3317 = vmatpush.msra.mxu0 %v3270
        %3318 = vmatpush.msra.mxu0 %v3269
        %3319 = vmatpush.msra.mxu0 %v3268
        %3320 = vmatpush.msra.mxu0 %v3267
        %3321 = vmatpush.msra.mxu0 %v3266
        %3322 = vmatpush.msra.mxu0 %v3265
        %3323 = vmatpush.msra.mxu0 %v3264
        %3324 = vmatpush.msra.mxu0 %v3263
        %3325 = vmatpush.msra.mxu0 %v3262
        %3326 = vmatmul.f32.gmra.mxu0 %v3101
        %v3327 = vpop.f32.mrf.mxu0
        %v3328 = vadd.f32 0.0, %v3327
        %3329 = vmatmul.f32.gmra.mxu0 %v3102
        %v3330 = vpop.f32.mrf.mxu0
        %v3331 = vadd.f32 0.0, %v3330
        %3332 = vmatmul.f32.gmra.mxu0 %v3104
        %v3333 = vpop.f32.mrf.mxu0
        %v3334 = vadd.f32 0.0, %v3333
        %3335 = vmatmul.f32.gmra.mxu0 %v3105
        %v3336 = vpop.f32.mrf.mxu0
        %v3337 = vadd.f32 0.0, %v3336
        %3338 = vmatmul.f32.gmra.mxu0 %v3107
        %v3339 = vpop.f32.mrf.mxu0
        %v3340 = vadd.f32 0.0, %v3339
        %3341 = vmatmul.f32.gmra.mxu0 %v3108
        %v3342 = vpop.f32.mrf.mxu0
        %v3343 = vadd.f32 0.0, %v3342
        %3344 = vmatmul.f32.gmra.mxu0 %v3110
        %v3345 = vpop.f32.mrf.mxu0
        %v3346 = vadd.f32 0.0, %v3345
        %3347 = vmatmul.f32.gmra.mxu0 %v3111
        %v3348 = vpop.f32.mrf.mxu0
        %v3349 = vadd.f32 0.0, %v3348
        %3350 = vmatmul.f32.gmra.mxu0 %v3113
        %v3351 = vpop.f32.mrf.mxu0
        %v3352 = vadd.f32 0.0, %v3351
        %3353 = vmatmul.f32.gmra.mxu0 %v3114
        %v3354 = vpop.f32.mrf.mxu0
        %v3355 = vadd.f32 0.0, %v3354
        %3356 = vmatmul.f32.gmra.mxu0 %v3116
        %v3357 = vpop.f32.mrf.mxu0
        %v3358 = vadd.f32 0.0, %v3357
        %3359 = vmatmul.f32.gmra.mxu0 %v3117
        %v3360 = vpop.f32.mrf.mxu0
        %v3361 = vadd.f32 0.0, %v3360
        %3362 = vmatmul.f32.gmra.mxu0 %v3119
        %v3363 = vpop.f32.mrf.mxu0
        %v3364 = vadd.f32 0.0, %v3363
        %3365 = vmatmul.f32.gmra.mxu0 %v3120
        %v3366 = vpop.f32.mrf.mxu0
        %v3367 = vadd.f32 0.0, %v3366
        %3368 = vmatmul.f32.gmra.mxu0 %v3122
        %v3369 = vpop.f32.mrf.mxu0
        %v3370 = vadd.f32 0.0, %v3369
        %3371 = vmatmul.f32.gmra.mxu0 %v3123
        %v3372 = vpop.f32.mrf.mxu0
        %v3373 = vadd.f32 0.0, %v3372
        %3374 = vdwg.mxu0
        %3375 = vmatpush.msra.mxu0 %v3293
        %3376 = vmatpush.msra.mxu0 %v3292
        %3377 = vmatpush.msra.mxu0 %v3291
        %3378 = vmatpush.msra.mxu0 %v3290
        %3379 = vmatpush.msra.mxu0 %v3289
        %3380 = vmatpush.msra.mxu0 %v3288
        %3381 = vmatpush.msra.mxu0 %v3287
        %3382 = vmatpush.msra.mxu0 %v3286
        %3383 = vmatpush.msra.mxu0 %v3285
        %3384 = vmatpush.msra.mxu0 %v3284
        %3385 = vmatpush.msra.mxu0 %v3283
        %3386 = vmatpush.msra.mxu0 %v3282
        %3387 = vmatpush.msra.mxu0 %v3281
        %3388 = vmatpush.msra.mxu0 %v3280
        %3389 = vmatpush.msra.mxu0 %v3279
        %3390 = vmatpush.msra.mxu0 %v3278
        %3391 = vmatmul.f32.gmra.mxu0 %v3151
        %v3392 = vpop.f32.mrf.mxu0
        %v3393 = vadd.f32 %v3328, %v3392
        %3394 = vmatmul.f32.gmra.mxu0 %v3153
        %v3395 = vpop.f32.mrf.mxu0
        %v3396 = vadd.f32 %v3331, %v3395
        %3397 = vmatmul.f32.gmra.mxu0 %v3156
        %v3398 = vpop.f32.mrf.mxu0
        %v3399 = vadd.f32 %v3334, %v3398
        %3400 = vmatmul.f32.gmra.mxu0 %v3158
        %v3401 = vpop.f32.mrf.mxu0
        %v3402 = vadd.f32 %v3337, %v3401
        %3403 = vmatmul.f32.gmra.mxu0 %v3161
        %v3404 = vpop.f32.mrf.mxu0
        %v3405 = vadd.f32 %v3340, %v3404
        %3406 = vmatmul.f32.gmra.mxu0 %v3163
        %v3407 = vpop.f32.mrf.mxu0
        %v3408 = vadd.f32 %v3343, %v3407
        %3409 = vmatmul.f32.gmra.mxu0 %v3166
        %v3410 = vpop.f32.mrf.mxu0
        %v3411 = vadd.f32 %v3346, %v3410
        %3412 = vmatmul.f32.gmra.mxu0 %v3168
        %v3413 = vpop.f32.mrf.mxu0
        %v3414 = vadd.f32 %v3349, %v3413
        %3415 = vmatmul.f32.gmra.mxu0 %v3171
        %v3416 = vpop.f32.mrf.mxu0
        %v3417 = vadd.f32 %v3352, %v3416
        %3418 = vmatmul.f32.gmra.mxu0 %v3173
        %v3419 = vpop.f32.mrf.mxu0
        %v3420 = vadd.f32 %v3355, %v3419
        %3421 = vmatmul.f32.gmra.mxu0 %v3176
        %v3422 = vpop.f32.mrf.mxu0
        %v3423 = vadd.f32 %v3358, %v3422
        %3424 = vmatmul.f32.gmra.mxu0 %v3178
        %v3425 = vpop.f32.mrf.mxu0
        %v3426 = vadd.f32 %v3361, %v3425
        %3427 = vmatmul.f32.gmra.mxu0 %v3181
        %v3428 = vpop.f32.mrf.mxu0
        %v3429 = vadd.f32 %v3364, %v3428
        %3430 = vmatmul.f32.gmra.mxu0 %v3183
        %v3431 = vpop.f32.mrf.mxu0
        %v3432 = vadd.f32 %v3367, %v3431
        %3433 = vmatmul.f32.gmra.mxu0 %v3186
        %v3434 = vpop.f32.mrf.mxu0
        %v3435 = vadd.f32 %v3370, %v3434
        %3436 = vmatmul.f32.gmra.mxu0 %v3188
        %v3437 = vpop.f32.mrf.mxu0
        %v3438 = vadd.f32 %v3373, %v3437
        %3439 = vdwg.mxu0
        %3440 = vmatpush.msra.mxu0 %v3309
        %3441 = vmatpush.msra.mxu0 %v3308
        %3442 = vmatpush.msra.mxu0 %v3307
        %3443 = vmatpush.msra.mxu0 %v3306
        %3444 = vmatpush.msra.mxu0 %v3305
        %3445 = vmatpush.msra.mxu0 %v3304
        %3446 = vmatpush.msra.mxu0 %v3303
        %3447 = vmatpush.msra.mxu0 %v3302
        %3448 = vmatpush.msra.mxu0 %v3301
        %3449 = vmatpush.msra.mxu0 %v3300
        %3450 = vmatpush.msra.mxu0 %v3299
        %3451 = vmatpush.msra.mxu0 %v3298
        %3452 = vmatpush.msra.mxu0 %v3297
        %3453 = vmatpush.msra.mxu0 %v3296
        %3454 = vmatpush.msra.mxu0 %v3295
        %3455 = vmatpush.msra.mxu0 %v3294
        %3456 = vmatmul.f32.gmra.mxu0 %v3207
        %v3457 = vpop.f32.mrf.mxu0
        %v3458 = vadd.f32 %v3393, %v3457
        %3459 = vmatmul.f32.gmra.mxu0 %v3209
        %v3460 = vpop.f32.mrf.mxu0
        %v3461 = vadd.f32 %v3396, %v3460
        %3462 = vmatmul.f32.gmra.mxu0 %v3212
        %v3463 = vpop.f32.mrf.mxu0
        %v3464 = vadd.f32 %v3399, %v3463
        %3465 = vmatmul.f32.gmra.mxu0 %v3214
        %v3466 = vpop.f32.mrf.mxu0
        %v3467 = vadd.f32 %v3402, %v3466
        %3468 = vmatmul.f32.gmra.mxu0 %v3217
        %v3469 = vpop.f32.mrf.mxu0
        %v3470 = vadd.f32 %v3405, %v3469
        %3471 = vmatmul.f32.gmra.mxu0 %v3219
        %v3472 = vpop.f32.mrf.mxu0
        %v3473 = vadd.f32 %v3408, %v3472
        %3474 = vmatmul.f32.gmra.mxu0 %v3222
        %v3475 = vpop.f32.mrf.mxu0
        %v3476 = vadd.f32 %v3411, %v3475
        %3477 = vmatmul.f32.gmra.mxu0 %v3224
        %v3478 = vpop.f32.mrf.mxu0
        %v3479 = vadd.f32 %v3414, %v3478
        %3480 = vmatmul.f32.gmra.mxu0 %v3227
        %v3481 = vpop.f32.mrf.mxu0
        %v3482 = vadd.f32 %v3417, %v3481
        %3483 = vmatmul.f32.gmra.mxu0 %v3229
        %v3484 = vpop.f32.mrf.mxu0
        %v3485 = vadd.f32 %v3420, %v3484
        %3486 = vmatmul.f32.gmra.mxu0 %v3232
        %v3487 = vpop.f32.mrf.mxu0
        %v3488 = vadd.f32 %v3423, %v3487
        %3489 = vmatmul.f32.gmra.mxu0 %v3234
        %v3490 = vpop.f32.mrf.mxu0
        %v3491 = vadd.f32 %v3426, %v3490
        %3492 = vmatmul.f32.gmra.mxu0 %v3237
        %v3493 = vpop.f32.mrf.mxu0
        %v3494 = vadd.f32 %v3429, %v3493
        %3495 = vmatmul.f32.gmra.mxu0 %v3239
        %v3496 = vpop.f32.mrf.mxu0
        %v3497 = vadd.f32 %v3432, %v3496
        %3498 = vmatmul.f32.gmra.mxu0 %v3242
        %v3499 = vpop.f32.mrf.mxu0
        %v3500 = vadd.f32 %v3435, %v3499
        %3501 = vmatmul.f32.gmra.mxu0 %v3244
        %v3502 = vpop.f32.mrf.mxu0
        %v3503 = vadd.f32 %v3438, %v3502
        %3504 = vdwg.mxu0
        %v3505 = vld [vmem:[#allocation4] sm:$0xff]
        %v3506 = vld [vmem:[#allocation4 + $0x8] sm:$0xff]
        %v3507 = vld [vmem:[#allocation4 + $0x10] sm:$0xff]
        %v3508 = vld [vmem:[#allocation4 + $0x18] sm:$0xff]
        %v3509 = vld [vmem:[#allocation4 + $0x20] sm:$0xff]
        %v3510 = vld [vmem:[#allocation4 + $0x28] sm:$0xff]
        %v3511 = vld [vmem:[#allocation4 + $0x30] sm:$0xff]
        %v3512 = vld [vmem:[#allocation4 + $0x38] sm:$0xff]
        %v3513 = vld [vmem:[#allocation4 + $0x40] sm:$0xff]
        %v3514 = vld [vmem:[#allocation4 + $0x48] sm:$0xff]
        %v3515 = vld [vmem:[#allocation4 + $0x50] sm:$0xff]
        %v3516 = vld [vmem:[#allocation4 + $0x58] sm:$0xff]
        %v3517 = vld [vmem:[#allocation4 + $0x60] sm:$0xff]
        %v3518 = vld [vmem:[#allocation4 + $0x68] sm:$0xff]
        %v3519 = vld [vmem:[#allocation4 + $0x70] sm:$0xff]
        %v3520 = vld [vmem:[#allocation4 + $0x78] sm:$0xff]
        %v3521 = vadd.f32 %v3505, %v3458
        %v3522 = vadd.f32 %v3506, %v3461
        %v3523 = vadd.f32 %v3507, %v3464
        %v3524 = vadd.f32 %v3508, %v3467
        %v3525 = vadd.f32 %v3509, %v3470
        %v3526 = vadd.f32 %v3510, %v3473
        %v3527 = vadd.f32 %v3511, %v3476
        %v3528 = vadd.f32 %v3512, %v3479
        %v3529 = vadd.f32 %v3513, %v3482
        %v3530 = vadd.f32 %v3514, %v3485
        %v3531 = vadd.f32 %v3515, %v3488
        %v3532 = vadd.f32 %v3516, %v3491
        %v3533 = vadd.f32 %v3517, %v3494
        %v3534 = vadd.f32 %v3518, %v3497
        %v3535 = vadd.f32 %v3519, %v3500
        %v3536 = vadd.f32 %v3520, %v3503
        %3537 = vst [vmem:[#allocation4] sm:$0xff] %v3521
        %3538 = vst [vmem:[#allocation4 + $0x8] sm:$0xff] %v3522
        %3539 = vst [vmem:[#allocation4 + $0x10] sm:$0xff] %v3523
        %3540 = vst [vmem:[#allocation4 + $0x18] sm:$0xff] %v3524
        %3541 = vst [vmem:[#allocation4 + $0x20] sm:$0xff] %v3525
        %3542 = vst [vmem:[#allocation4 + $0x28] sm:$0xff] %v3526
        %3543 = vst [vmem:[#allocation4 + $0x30] sm:$0xff] %v3527
        %3544 = vst [vmem:[#allocation4 + $0x38] sm:$0xff] %v3528
        %3545 = vst [vmem:[#allocation4 + $0x40] sm:$0xff] %v3529
        %3546 = vst [vmem:[#allocation4 + $0x48] sm:$0xff] %v3530
        %3547 = vst [vmem:[#allocation4 + $0x50] sm:$0xff] %v3531
        %3548 = vst [vmem:[#allocation4 + $0x58] sm:$0xff] %v3532
        %3549 = vst [vmem:[#allocation4 + $0x60] sm:$0xff] %v3533
        %3550 = vst [vmem:[#allocation4 + $0x68] sm:$0xff] %v3534
        %3551 = vst [vmem:[#allocation4 + $0x70] sm:$0xff] %v3535
        %3552 = vst [vmem:[#allocation4 + $0x78] sm:$0xff] %v3536
        %v3553 = vld [vmem:[#allocation4] sm:$0xff]
        %v3554 = vld [vmem:[#allocation4 + $0x8] sm:$0xff]
        %v3555 = vld [vmem:[#allocation4 + $0x10] sm:$0xff]
        %v3556 = vld [vmem:[#allocation4 + $0x18] sm:$0xff]
        %v3557 = vld [vmem:[#allocation4 + $0x20] sm:$0xff]
        %v3558 = vld [vmem:[#allocation4 + $0x28] sm:$0xff]
        %v3559 = vld [vmem:[#allocation4 + $0x30] sm:$0xff]
        %v3560 = vld [vmem:[#allocation4 + $0x38] sm:$0xff]
        %v3561 = vld [vmem:[#allocation4 + $0x40] sm:$0xff]
        %v3562 = vld [vmem:[#allocation4 + $0x48] sm:$0xff]
        %v3563 = vld [vmem:[#allocation4 + $0x50] sm:$0xff]
        %v3564 = vld [vmem:[#allocation4 + $0x58] sm:$0xff]
        %v3565 = vld [vmem:[#allocation4 + $0x60] sm:$0xff]
        %v3566 = vld [vmem:[#allocation4 + $0x68] sm:$0xff]
        %v3567 = vld [vmem:[#allocation4 + $0x70] sm:$0xff]
        %v3568 = vld [vmem:[#allocation4 + $0x78] sm:$0xff]
        %v3569 = vld [vmem:[%s342] sm:$0xff]
        %v3570 = vld [vmem:[%s342 + $0x8] sm:$0xff]
        %v3571 = vld [vmem:[%s342 + $0x10] sm:$0xff]
        %v3572 = vld [vmem:[%s342 + $0x18] sm:$0xff]
        %v3573 = vld [vmem:[%s342 + $0x20] sm:$0xff]
        %v3574 = vld [vmem:[%s342 + $0x28] sm:$0xff]
        %v3575 = vld [vmem:[%s342 + $0x30] sm:$0xff]
        %v3576 = vld [vmem:[%s342 + $0x38] sm:$0xff]
        %v3577 = vld [vmem:[%s342 + $0x40] sm:$0xff]
        %v3578 = vld [vmem:[%s342 + $0x48] sm:$0xff]
        %v3579 = vld [vmem:[%s342 + $0x50] sm:$0xff]
        %v3580 = vld [vmem:[%s342 + $0x58] sm:$0xff]
        %v3581 = vld [vmem:[%s342 + $0x60] sm:$0xff]
        %v3582 = vld [vmem:[%s342 + $0x68] sm:$0xff]
        %v3583 = vld [vmem:[%s342 + $0x70] sm:$0xff]
        %v3584 = vld [vmem:[%s342 + $0x78] sm:$0xff]
        %v3585 = vadd.f32 %v3553, %v3569
        %v3586 = vadd.f32 %v3554, %v3570
        %v3587 = vadd.f32 %v3555, %v3571
        %v3588 = vadd.f32 %v3556, %v3572
        %v3589 = vadd.f32 %v3557, %v3573
        %v3590 = vadd.f32 %v3558, %v3574
        %v3591 = vadd.f32 %v3559, %v3575
        %v3592 = vadd.f32 %v3560, %v3576
        %v3593 = vadd.f32 %v3561, %v3577
        %v3594 = vadd.f32 %v3562, %v3578
        %v3595 = vadd.f32 %v3563, %v3579
        %v3596 = vadd.f32 %v3564, %v3580
        %v3597 = vadd.f32 %v3565, %v3581
        %v3598 = vadd.f32 %v3566, %v3582
        %v3599 = vadd.f32 %v3567, %v3583
        %v3600 = vadd.f32 %v3568, %v3584
        %3601 = vst [vmem:[%s409] sm:$0xff] %v3585
        %3602 = vst [vmem:[%s409 + $0x8] sm:$0xff] %v3586
        %3603 = vst [vmem:[%s409 + $0x10] sm:$0xff] %v3587
        %3604 = vst [vmem:[%s409 + $0x18] sm:$0xff] %v3588
        %3605 = vst [vmem:[%s409 + $0x20] sm:$0xff] %v3589
        %3606 = vst [vmem:[%s409 + $0x28] sm:$0xff] %v3590
        %3607 = vst [vmem:[%s409 + $0x30] sm:$0xff] %v3591
        %3608 = vst [vmem:[%s409 + $0x38] sm:$0xff] %v3592
        %3609 = vst [vmem:[%s409 + $0x40] sm:$0xff] %v3593
        %3610 = vst [vmem:[%s409 + $0x48] sm:$0xff] %v3594
        %3611 = vst [vmem:[%s409 + $0x50] sm:$0xff] %v3595
        %3612 = vst [vmem:[%s409 + $0x58] sm:$0xff] %v3596
        %3613 = vst [vmem:[%s409 + $0x60] sm:$0xff] %v3597
        %3614 = vst [vmem:[%s409 + $0x68] sm:$0xff] %v3598
        %3615 = vst [vmem:[%s409 + $0x70] sm:$0xff] %v3599
        %3616 = vst [vmem:[%s409 + $0x78] sm:$0xff] %v3600
        %s3617 = sand.u32 %s190, 1
        %s3618 = scalar_lea.sflag [#allocation7], %s3617
        %s3619 = sand.u32 %s190, 1
        %s3620 = smul.addr %s3619, 128
        %s3621 = scalar_lea.vmem [#allocation14], %s3620
        // Predicated region
        $region85: #{tpu_custom_call.1} parent=39 // pred_check
          %p3622 = pneg %p200
        $region86: #{tpu_custom_call.1} parent=39 // pred_check_branch
          %3624 = sbr.rel (%p3622) target = $region88
        $region87: #{tpu_custom_call.1} parent=39 // pred_region
          %s3625 = smul.u32 8, %s31
          %3627 = vsyncadd %s3618, 0
          %s3628 = smul.addr %s3625, 2
          %s3629 = smul.addr %s30, 32
          %s3630 = sadd.s32 %s3628, %s3629
          %s3631 = smul.addr %s3630, 8
          %s3632 = scalar_lea.hbm %s5, %s3631
          %s3633 = sshll.u32 %s3621, 4
          %s3634 = int_to_ptr.vmem [resolvable:$true] %s3633
          %s3635 = sshll.u32 %s3632, 4
          %s3636 = int_to_ptr.hbm [resolvable:$true] %s3635
          %3641 = dma.vmem_to_hbm [thread:$0]  %s3634, 2048, %s3636, %s3618, 128, 128, 8
        $region88: #{tpu_custom_call.1} parent=39 // pred_fallthru
          _
      $region40: #{tpu_custom_call.1} parent=5 // pred_fallthru
        _
      %p3642 = scmp.le.s32.totalorder 2, %s21
      // Predicated region
      $region89: #{tpu_custom_call.1} parent=5 // pred_check
        %p3643 = pneg %p3642
      $region90: #{tpu_custom_call.1} parent=5 // pred_check_branch
        %3645 = sbr.rel (%p3643) target = $region92
      $region91: #{tpu_custom_call.1} parent=5 // pred_region
        %s3646 = ssub.s32 %s21, 2
        // Predicated region
        $region93: #{tpu_custom_call.1} parent=91 // pred_check
          %p3647 = pneg %p206
        $region94: #{tpu_custom_call.1} parent=91 // pred_check_branch
          %3649 = sbr.rel (%p3647) target = $region96
        $region95: #{tpu_custom_call.1} parent=91 // pred_region
          %s3650 = sand.u32 %s191, 1
          %s3651 = scalar_lea.sflag [#allocation7], %s3650
          %s3652 = sand.u32 %s191, 1
          %s3653 = smul.addr %s3652, 128
          %s3654 = scalar_lea.vmem [#allocation14], %s3653
          %3656 = dma.done %s3651, 2048
        $region96: #{tpu_custom_call.1} parent=91 // pred_fallthru
          _
      $region92: #{tpu_custom_call.1} parent=5 // pred_fallthru
        _
    $region6: #{tpu_custom_call.1} parent=1 // loop_footer
      %s25 = sadd.s32 1, %s21
    $region7: #{tpu_custom_call.1} parent=1 // loop_footer_branch
      %20 = sbr.rel target = $region3
    $region8: #{tpu_custom_call.1} parent=1 // loop_exit
      _
    %3657 = vsyncpa [#allocation6], 1
    %s3658 = scalar_lea.sflag [#allocation6], 1
    %3659 = vsyncpa %s3658, 1
    %3660 = vsyncpa [#allocation9], 1
    %s3661 = scalar_lea.sflag [#allocation9], 1
    %3662 = vsyncpa %s3661, 1
    %3663 = vsyncpa [#allocation12], 1
    %3664 = vsyncpa [#allocation7], 1
    %s3665 = scalar_lea.sflag [#allocation7], 1
    %3666 = vsyncpa %s3665, 1

</llo_original>
